<compile_context>
chip_gen: v5e
topology: v5e:2x2
jax: 0.10.0
libtpu: 0.0.40
codegen_flags: <defaults>
</compile_context>

<pallas_src>
import jax
import jax.numpy as jnp
from jax.experimental import pallas as pl
from jax.experimental.pallas import tpu as pltpu


def _round_up(x, m):
    return -(-x // m) * m


# ----------------------------------------------------------------------------
# Static geometry for the (N, 2, 8, 8, 8) input implied by the module.
# ----------------------------------------------------------------------------
IC1, OC1, OC2, NFC = 2, 64, 128, 128
D = H = W = 8                        # conv1 spatial extent
PD = D // 2                          # extent after maxpool1 (= 4)
PPD = PD + 2                         # conv2 zero-padded extent (= 6)

C1_ROWS = D * H * W                  # 512 conv1 output rows per sample
K1 = _round_up(27 * IC1, 8) if _round_up(27 * IC1, 8) >= 64 else 64
K1 = 64                              # 27 taps * 2 ch = 54, lane-padded to 64
POOL1_SLAB = C1_ROWS // 8            # 64 rows per (dd,hh,ww) pool-phase slab

KW_KIN = 3 * OC1                     # 192: conv2 K with kw folded into lanes
TAP2_OFFS = tuple(kd * PPD * PPD + kh * PPD for kd in range(3) for kh in range(3))
C2_ROWS = _round_up((PD - 1) * PPD * PPD + (PD - 1) * PPD + (PD - 1) + 1, 8)   # 136
B_ROWS = _round_up(max(TAP2_OFFS) + C2_ROWS, 8)                                # 224
P2_ROWS = _round_up(2 + B_ROWS, 8)                                             # 232

POOL2_OFFS = tuple(dd * PPD * PPD + hh * PPD + ww
                   for dd in (0, 1) for hh in (0, 1) for ww in (0, 1))
MEAN_OFFS = tuple(d3 * 2 * PPD * PPD + h3 * 2 * PPD + w3 * 2
                  for d3 in (0, 1) for h3 in (0, 1) for w3 in (0, 1))
M2_ROWS = _round_up(max(MEAN_OFFS) + 1, 8)                                     # 88

# Static in-bounds guarantees for every pl.ds read/write in the kernel.
assert max(TAP2_OFFS) + C2_ROWS <= B_ROWS
assert 2 + B_ROWS <= P2_ROWS
assert PD * PPD * PPD + PD * PPD + 1 + PD <= P2_ROWS          # scatter destination rows
assert max(POOL2_OFFS) + M2_ROWS <= C2_ROWS
assert max(MEAN_OFFS) + max(POOL2_OFFS) + 1 <= C2_ROWS


# ----------------------------------------------------------------------------
# The fused per-sample kernel
# ----------------------------------------------------------------------------
def _simple_cnn_kernel(a1_ref, w1_ref, b1_ref, w2_ref, b2_ref,
                       wfc_ref, bfc_ref, wout_ref, bout_ref,
                       o_ref, p2_ref, b_ref, h2_ref):
    # ---- conv1: a single K=64 matmul over the 27-tap folded input, bias + ReLU.
    h1 = jnp.dot(a1_ref[...], w1_ref[...], preferred_element_type=jnp.float32)
    h1 = jnp.maximum(h1 + b1_ref[...], 0.0)                        # (512, 64) f32

    # ---- maxpool1: rows are ordered (dd,hh,ww, d2,h2,w2), so the 2x2x2 window is an
    # elementwise max of eight ALIGNED 64-row slabs; the pooled map is already compact.
    pooled1 = h1[0:POOL1_SLAB, :]
    for k in range(1, 8):
        pooled1 = jnp.maximum(pooled1, h1[k * POOL1_SLAB:(k + 1) * POOL1_SLAB, :])

    # ---- scatter the compact pooled map into the zero-padded 6x6x6 conv2 grid (VMEM only).
    p2_ref[...] = jnp.zeros_like(p2_ref)
    for d2 in range(PD):
        for h2 in range(PD):
            src = (d2 * PD + h2) * PD
            dst = (d2 + 1) * PPD * PPD + (h2 + 1) * PPD + 1
            p2_ref[pl.ds(dst, PD), :] = pooled1[src:src + PD, :]

    # ---- fold kw into the lane axis: b[r, kw*64:(kw+1)*64] = p2[r + kw]  (bf16 once).
    b_ref[...] = jnp.concatenate(
        [p2_ref[pl.ds(kw, B_ROWS), :] for kw in range(3)], axis=1
    ).astype(jnp.bfloat16)

    # ---- conv2: 9 tap matmuls (K=192), accumulated in registers (no acc_ref RMW).
    acc = None
    for t, off in enumerate(TAP2_OFFS):
        lhs = b_ref[pl.ds(off, C2_ROWS), :]
        rhs = w2_ref[pl.ds(t * KW_KIN, KW_KIN), :]
        contrib = jnp.dot(lhs, rhs, preferred_element_type=jnp.float32)
        acc = contrib if acc is None else acc + contrib
    h2_ref[...] = jnp.maximum(acc + b2_ref[...], 0.0)               # (136, 128) f32

    # ---- maxpool2 (8-neighbour max) + adaptive_avg_pool3d((1,1,1)) as a selection matmul.
    m2 = h2_ref[pl.ds(POOL2_OFFS[0], M2_ROWS), :]
    for off in POOL2_OFFS[1:]:
        m2 = jnp.maximum(m2, h2_ref[pl.ds(off, M2_ROWS), :])        # (88, 128) f32
    ridx = jax.lax.broadcasted_iota(jnp.int32, (1, M2_ROWS), 1)
    sel = jnp.zeros((1, M2_ROWS), jnp.float32)
    for off in MEAN_OFFS:
        sel = sel + (ridx == off).astype(jnp.float32)
    sel = sel * (1.0 / len(MEAN_OFFS))
    feat = jnp.dot(sel, m2, preferred_element_type=jnp.float32)     # (1, 128) f32

    # ---- FC head: linear_fc -> linear -> sigmoid (only lane 0 of the output is real).
    hfc = jnp.dot(feat.astype(jnp.bfloat16), wfc_ref[...],
                  preferred_element_type=jnp.float32) + bfc_ref[...]
    logits = jnp.dot(hfc.astype(jnp.bfloat16), wout_ref[...],
                     preferred_element_type=jnp.float32) + bout_ref[...]
    o_ref[...] = jax.nn.sigmoid(logits).reshape(1, 1, NFC)


# ----------------------------------------------------------------------------
# Wrapper-side layout helpers
# ----------------------------------------------------------------------------
def _build_conv1_input(x):
    """(N, 2, 8, 8, 8) NCDHW -> (N*512, 64) bf16: 27 taps folded into lanes, rows ordered
    (dd,hh,ww, d2,h2,w2) so maxpool1 becomes eight aligned slab maxes in-kernel."""
    n = x.shape[0]
    xh = jnp.transpose(x, (0, 2, 3, 4, 1))                          # (N, D, H, W, C)
    xp = jnp.pad(xh, ((0, 0), (1, 1), (1, 1), (1, 1), (0, 0)))
    taps = [xp[:, kd:kd + D, kh:kh + H, kw:kw + W, :]
            for kd in range(3) for kh in range(3) for kw in range(3)]
    a = jnp.concatenate(taps, axis=-1)                              # (N, 8, 8, 8, 54)
    a = a.reshape(n, PD, 2, PD, 2, PD, 2, 27 * IC1)
    a = a.transpose(0, 2, 4, 6, 1, 3, 5, 7)                         # (N, dd,hh,ww, d2,h2,w2, 54)
    a = a.reshape(n * C1_ROWS, 27 * IC1)
    a = jnp.pad(a, ((0, 0), (0, K1 - 27 * IC1)))
    return a.astype(jnp.bfloat16)


def prepack_params(params):
    """One-time repacking of PyTorch-layout parameters into bf16 MXU operands."""
    w1 = jnp.transpose(params["w1"], (2, 3, 4, 1, 0)).reshape(27 * IC1, OC1)
    w1 = jnp.pad(w1, ((0, K1 - 27 * IC1), (0, 0))).astype(jnp.bfloat16)        # (64, 64)
    w2 = jnp.transpose(params["w2"], (2, 3, 4, 1, 0)).reshape(27 * OC1, OC2)
    w2 = w2.astype(jnp.bfloat16)                                               # (1728, 128)
    wout = jnp.zeros((NFC, NFC), jnp.float32).at[:, 0].set(params["wout"][0])
    bout = jnp.zeros((1, NFC), jnp.float32).at[0, 0].set(params["bout"][0])
    return {
        "w1": w1,
        "b1": params["b1"].reshape(1, OC1).astype(jnp.float32),
        "w2": w2,
        "b2": params["b2"].reshape(1, OC2).astype(jnp.float32),
        "wfc_t": params["wfc"].T.astype(jnp.bfloat16),                         # (in, out)
        "bfc": params["bfc"].reshape(1, NFC).astype(jnp.float32),
        "wout": wout.astype(jnp.bfloat16),
        "bout": bout,
    }


@jax.jit
def simple_cnn_forward(packed, x):
    n = x.shape[0]
    a1 = _build_conv1_input(x)
    out = pl.pallas_call(
        _simple_cnn_kernel,
        out_shape=jax.ShapeDtypeStruct((n, 1, NFC), jnp.float32),
        grid=(n,),
        in_specs=[
            pl.BlockSpec((C1_ROWS, K1), lambda i: (i, 0)),          # per-sample activations
            pl.BlockSpec((K1, OC1), lambda i: (0, 0)),
            pl.BlockSpec((1, OC1), lambda i: (0, 0)),
            pl.BlockSpec((9 * KW_KIN, OC2), lambda i: (0, 0)),
            pl.BlockSpec((1, OC2), lambda i: (0, 0)),
            pl.BlockSpec((NFC, NFC), lambda i: (0, 0)),
            pl.BlockSpec((1, NFC), lambda i: (0, 0)),
            pl.BlockSpec((NFC, NFC), lambda i: (0, 0)),
            pl.BlockSpec((1, NFC), lambda i: (0, 0)),
        ],
        out_specs=pl.BlockSpec((1, 1, NFC), lambda i: (i, 0, 0)),
        scratch_shapes=[
            pltpu.VMEM((P2_ROWS, OC1), jnp.float32),                # zero-padded pooled map
            pltpu.VMEM((B_ROWS, KW_KIN), jnp.bfloat16),             # kw-folded conv2 input
            pltpu.VMEM((C2_ROWS, OC2), jnp.float32),                # conv2 output
        ],
        compiler_params=pltpu.CompilerParams(
            dimension_semantics=("parallel",)),
    )(a1, packed["w1"], packed["b1"], packed["w2"], packed["b2"],
      packed["wfc_t"], packed["bfc"], packed["wout"], packed["bout"])
    return out[:, 0, 0:1]


# ----------------------------------------------------------------------------
# Parameters (deterministic, PyTorch-style uniform(-1/sqrt(fan_in), +))
# ----------------------------------------------------------------------------
def _uniform(key, shape, fan_in):
    bound = 1.0 / jnp.sqrt(jnp.float32(fan_in))
    return jax.random.uniform(key, shape, jnp.float32, -bound, bound)


def init_params(key):
    ks = jax.random.split(key, 8)
    p = {}
    p["w1"] = _uniform(ks[0], (64, 2, 3, 3, 3), 2 * 27)
    p["b1"] = _uniform(ks[1], (64,), 2 * 27)
    p["w2"] = _uniform(ks[2], (128, 64, 3, 3, 3), 64 * 27)
    p["b2"] = _uniform(ks[3], (128,), 64 * 27)
    p["wfc"] = _uniform(ks[4], (128, 128), 128)      # PyTorch Linear: (out, in)
    p["bfc"] = _uniform(ks[5], (128,), 128)
    p["wout"] = _uniform(ks[6], (1, 128), 128)
    p["bout"] = _uniform(ks[7], (1,), 128)
    return p


# ----------------------------------------------------------------------------
# Pure-JAX reference (for numerical validation)
# ----------------------------------------------------------------------------
def _ref_maxpool(y):
    n, c, d, h, w = y.shape
    return y.reshape(n, c, d // 2, 2, h // 2, 2, w // 2, 2).max(axis=(3, 5, 7))


def reference_forward(params, x):
    dn = ("NCDHW", "OIDHW", "NCDHW")
    y = jax.lax.conv_general_dilated(x, params["w1"], (1, 1, 1), ((1, 1),) * 3,
                                     dimension_numbers=dn)
    y = jnp.maximum(y + params["b1"].reshape(1, -1, 1, 1, 1), 0.0)
    y = _ref_maxpool(y)
    y = jax.lax.conv_general_dilated(y, params["w2"], (1, 1, 1), ((1, 1),) * 3,
                                     dimension_numbers=dn)
    y = jnp.maximum(y + params["b2"].reshape(1, -1, 1, 1, 1), 0.0)
    y = _ref_maxpool(y)
    f = y.mean(axis=(2, 3, 4))
    f = f @ params["wfc"].T + params["bfc"]
    f = f @ params["wout"].T + params["bout"]
    return jax.nn.sigmoid(f)


if __name__ == "__main__":
    key = jax.random.PRNGKey(0)
    pkey, xkey = jax.random.split(key)
    params = init_params(pkey)
    packed = prepack_params(params)

    # Small input consistent with the module: N=2, C=2, D=H=W=8.
    x = jax.random.normal(xkey, (2, 2, 8, 8, 8), jnp.float32)

    out = jax.block_until_ready(simple_cnn_forward(packed, x))
    assert out.shape == (2, 1)
    assert bool(jnp.all((out >= 0.0) & (out <= 1.0)))

    ref = reference_forward(params, x)
    assert float(jnp.max(jnp.abs(out - ref))) < 5e-2

    print("KERNEL_OK")
</pallas_src>

<mosaic_0001>
module attributes {stable_mosaic.version = 11 : i64} {
  func.func @_simple_cnn_kernel(%arg0: i32, %arg1: memref<512x64xbf16, #tpu.memory_space<vmem>>, %arg2: memref<64x64xbf16, #tpu.memory_space<vmem>>, %arg3: memref<1x64xf32, #tpu.memory_space<vmem>>, %arg4: memref<1728x128xbf16, #tpu.memory_space<vmem>>, %arg5: memref<1x128xf32, #tpu.memory_space<vmem>>, %arg6: memref<128x128xbf16, #tpu.memory_space<vmem>>, %arg7: memref<1x128xf32, #tpu.memory_space<vmem>>, %arg8: memref<128x128xbf16, #tpu.memory_space<vmem>>, %arg9: memref<1x128xf32, #tpu.memory_space<vmem>>, %arg10: memref<1x1x128xf32, #tpu.memory_space<vmem>>, %arg11: memref<232x64xf32, #tpu.memory_space<vmem>>, %arg12: memref<224x192xbf16, #tpu.memory_space<vmem>>, %arg13: memref<136x128xf32, #tpu.memory_space<vmem>>) attributes {dimension_semantics = [#tpu.dimension_semantics<parallel>], iteration_bounds = array<i64: 2>, scalar_prefetch = 0 : i64, scratch_operands = 3 : i64, tpu.core_type = #tpu.core_type<tc>, window_params = [{transform_indices = @transform_0, window_bounds = array<i64: 512, 64>}, {pipeline_mode = #tpu.pipeline_mode<synchronous>, transform_indices = @transform_1, window_bounds = array<i64: 64, 64>}, {pipeline_mode = #tpu.pipeline_mode<synchronous>, transform_indices = @transform_2, window_bounds = array<i64: 1, 64>}, {pipeline_mode = #tpu.pipeline_mode<synchronous>, transform_indices = @transform_3, window_bounds = array<i64: 1728, 128>}, {pipeline_mode = #tpu.pipeline_mode<synchronous>, transform_indices = @transform_4, window_bounds = array<i64: 1, 128>}, {pipeline_mode = #tpu.pipeline_mode<synchronous>, transform_indices = @transform_5, window_bounds = array<i64: 128, 128>}, {pipeline_mode = #tpu.pipeline_mode<synchronous>, transform_indices = @transform_6, window_bounds = array<i64: 1, 128>}, {pipeline_mode = #tpu.pipeline_mode<synchronous>, transform_indices = @transform_7, window_bounds = array<i64: 128, 128>}, {pipeline_mode = #tpu.pipeline_mode<synchronous>, transform_indices = @transform_8, window_bounds = array<i64: 1, 128>}, {transform_indices = @transform_9, window_bounds = array<i64: 1, 1, 128>}]} {
    %c0 = arith.constant 0 : index
    %c0_0 = arith.constant 0 : index
    %0 = vector.load %arg1[%c0, %c0_0] : memref<512x64xbf16, #tpu.memory_space<vmem>>, vector<512x64xbf16>
    %c0_1 = arith.constant 0 : index
    %c0_2 = arith.constant 0 : index
    %1 = vector.load %arg2[%c0_1, %c0_2] : memref<64x64xbf16, #tpu.memory_space<vmem>>, vector<64x64xbf16>
    %cst = arith.constant dense<0.000000e+00> : vector<512x64xf32>
    %2 = tpu.matmul %0, %1, %cst {dimension_numbers = #tpu.dot_dimension_numbers<[1], [0], [0], [1], [0, 0, 1, 1], [], []>} : vector<512x64xbf16>, vector<64x64xbf16>, vector<512x64xf32> -> vector<512x64xf32>
    %c0_3 = arith.constant 0 : index
    %c0_4 = arith.constant 0 : index
    %3 = vector.load %arg3[%c0_3, %c0_4] : memref<1x64xf32, #tpu.memory_space<vmem>>, vector<1x64xf32>
    %4 = vector.broadcast %3 : vector<1x64xf32> to vector<512x64xf32>
    %5 = arith.addf %2, %4 : vector<512x64xf32>
    %cst_5 = arith.constant 0.000000e+00 : f32
    %6 = vector.broadcast %cst_5 : f32 to vector<512x64xf32>
    %7 = arith.maximumf %5, %6 : vector<512x64xf32>
    %8 = vector.extract_strided_slice %7 {offsets = [0, 0], sizes = [64, 64], strides = [1, 1]} : vector<512x64xf32> to vector<64x64xf32>
    %9 = vector.extract_strided_slice %7 {offsets = [64, 0], sizes = [64, 64], strides = [1, 1]} : vector<512x64xf32> to vector<64x64xf32>
    %10 = arith.maximumf %8, %9 : vector<64x64xf32>
    %11 = vector.extract_strided_slice %7 {offsets = [128, 0], sizes = [64, 64], strides = [1, 1]} : vector<512x64xf32> to vector<64x64xf32>
    %12 = arith.maximumf %10, %11 : vector<64x64xf32>
    %13 = vector.extract_strided_slice %7 {offsets = [192, 0], sizes = [64, 64], strides = [1, 1]} : vector<512x64xf32> to vector<64x64xf32>
    %14 = arith.maximumf %12, %13 : vector<64x64xf32>
    %15 = vector.extract_strided_slice %7 {offsets = [256, 0], sizes = [64, 64], strides = [1, 1]} : vector<512x64xf32> to vector<64x64xf32>
    %16 = arith.maximumf %14, %15 : vector<64x64xf32>
    %17 = vector.extract_strided_slice %7 {offsets = [320, 0], sizes = [64, 64], strides = [1, 1]} : vector<512x64xf32> to vector<64x64xf32>
    %18 = arith.maximumf %16, %17 : vector<64x64xf32>
    %19 = vector.extract_strided_slice %7 {offsets = [384, 0], sizes = [64, 64], strides = [1, 1]} : vector<512x64xf32> to vector<64x64xf32>
    %20 = arith.maximumf %18, %19 : vector<64x64xf32>
    %21 = vector.extract_strided_slice %7 {offsets = [448, 0], sizes = [64, 64], strides = [1, 1]} : vector<512x64xf32> to vector<64x64xf32>
    %22 = arith.maximumf %20, %21 : vector<64x64xf32>
    %cst_6 = arith.constant 0.000000e+00 : f32
    %23 = vector.broadcast %cst_6 : f32 to vector<232x64xf32>
    %c0_7 = arith.constant 0 : index
    %c0_8 = arith.constant 0 : index
    %24 = vector.load %arg11[%c0_7, %c0_8] : memref<232x64xf32, #tpu.memory_space<vmem>>, vector<232x64xf32>
    tpu.vector_store %arg11[%c0_7, %c0_8], %23 {strides = array<i32>} : memref<232x64xf32, #tpu.memory_space<vmem>>, vector<232x64xf32>,
    %25 = vector.extract_strided_slice %22 {offsets = [0, 0], sizes = [4, 64], strides = [1, 1]} : vector<64x64xf32> to vector<4x64xf32>
    %c43 = arith.constant 43 : index
    %c0_9 = arith.constant 0 : index
    %26 = vector.load %arg11[%c43, %c0_9] : memref<232x64xf32, #tpu.memory_space<vmem>>, vector<4x64xf32>
    tpu.vector_store %arg11[%c43, %c0_9], %25 {strides = array<i32>} : memref<232x64xf32, #tpu.memory_space<vmem>>, vector<4x64xf32>,
    %27 = vector.extract_strided_slice %22 {offsets = [4, 0], sizes = [4, 64], strides = [1, 1]} : vector<64x64xf32> to vector<4x64xf32>
    %c49 = arith.constant 49 : index
    %c0_10 = arith.constant 0 : index
    %28 = vector.load %arg11[%c49, %c0_10] : memref<232x64xf32, #tpu.memory_space<vmem>>, vector<4x64xf32>
    tpu.vector_store %arg11[%c49, %c0_10], %27 {strides = array<i32>} : memref<232x64xf32, #tpu.memory_space<vmem>>, vector<4x64xf32>,
    %29 = vector.extract_strided_slice %22 {offsets = [8, 0], sizes = [4, 64], strides = [1, 1]} : vector<64x64xf32> to vector<4x64xf32>
    %c55 = arith.constant 55 : index
    %c0_11 = arith.constant 0 : index
    %30 = vector.load %arg11[%c55, %c0_11] : memref<232x64xf32, #tpu.memory_space<vmem>>, vector<4x64xf32>
    tpu.vector_store %arg11[%c55, %c0_11], %29 {strides = array<i32>} : memref<232x64xf32, #tpu.memory_space<vmem>>, vector<4x64xf32>,
    %31 = vector.extract_strided_slice %22 {offsets = [12, 0], sizes = [4, 64], strides = [1, 1]} : vector<64x64xf32> to vector<4x64xf32>
    %c61 = arith.constant 61 : index
    %c0_12 = arith.constant 0 : index
    %32 = vector.load %arg11[%c61, %c0_12] : memref<232x64xf32, #tpu.memory_space<vmem>>, vector<4x64xf32>
    tpu.vector_store %arg11[%c61, %c0_12], %31 {strides = array<i32>} : memref<232x64xf32, #tpu.memory_space<vmem>>, vector<4x64xf32>,
    %33 = vector.extract_strided_slice %22 {offsets = [16, 0], sizes = [4, 64], strides = [1, 1]} : vector<64x64xf32> to vector<4x64xf32>
    %c79 = arith.constant 79 : index
    %c0_13 = arith.constant 0 : index
    %34 = vector.load %arg11[%c79, %c0_13] : memref<232x64xf32, #tpu.memory_space<vmem>>, vector<4x64xf32>
    tpu.vector_store %arg11[%c79, %c0_13], %33 {strides = array<i32>} : memref<232x64xf32, #tpu.memory_space<vmem>>, vector<4x64xf32>,
    %35 = vector.extract_strided_slice %22 {offsets = [20, 0], sizes = [4, 64], strides = [1, 1]} : vector<64x64xf32> to vector<4x64xf32>
    %c85 = arith.constant 85 : index
    %c0_14 = arith.constant 0 : index
    %36 = vector.load %arg11[%c85, %c0_14] : memref<232x64xf32, #tpu.memory_space<vmem>>, vector<4x64xf32>
    tpu.vector_store %arg11[%c85, %c0_14], %35 {strides = array<i32>} : memref<232x64xf32, #tpu.memory_space<vmem>>, vector<4x64xf32>,
    %37 = vector.extract_strided_slice %22 {offsets = [24, 0], sizes = [4, 64], strides = [1, 1]} : vector<64x64xf32> to vector<4x64xf32>
    %c91 = arith.constant 91 : index
    %c0_15 = arith.constant 0 : index
    %38 = vector.load %arg11[%c91, %c0_15] : memref<232x64xf32, #tpu.memory_space<vmem>>, vector<4x64xf32>
    tpu.vector_store %arg11[%c91, %c0_15], %37 {strides = array<i32>} : memref<232x64xf32, #tpu.memory_space<vmem>>, vector<4x64xf32>,
    %39 = vector.extract_strided_slice %22 {offsets = [28, 0], sizes = [4, 64], strides = [1, 1]} : vector<64x64xf32> to vector<4x64xf32>
    %c97 = arith.constant 97 : index
    %c0_16 = arith.constant 0 : index
    %40 = vector.load %arg11[%c97, %c0_16] : memref<232x64xf32, #tpu.memory_space<vmem>>, vector<4x64xf32>
    tpu.vector_store %arg11[%c97, %c0_16], %39 {strides = array<i32>} : memref<232x64xf32, #tpu.memory_space<vmem>>, vector<4x64xf32>,
    %41 = vector.extract_strided_slice %22 {offsets = [32, 0], sizes = [4, 64], strides = [1, 1]} : vector<64x64xf32> to vector<4x64xf32>
    %c115 = arith.constant 115 : index
    %c0_17 = arith.constant 0 : index
    %42 = vector.load %arg11[%c115, %c0_17] : memref<232x64xf32, #tpu.memory_space<vmem>>, vector<4x64xf32>
    tpu.vector_store %arg11[%c115, %c0_17], %41 {strides = array<i32>} : memref<232x64xf32, #tpu.memory_space<vmem>>, vector<4x64xf32>,
    %43 = vector.extract_strided_slice %22 {offsets = [36, 0], sizes = [4, 64], strides = [1, 1]} : vector<64x64xf32> to vector<4x64xf32>
    %c121 = arith.constant 121 : index
    %c0_18 = arith.constant 0 : index
    %44 = vector.load %arg11[%c121, %c0_18] : memref<232x64xf32, #tpu.memory_space<vmem>>, vector<4x64xf32>
    tpu.vector_store %arg11[%c121, %c0_18], %43 {strides = array<i32>} : memref<232x64xf32, #tpu.memory_space<vmem>>, vector<4x64xf32>,
    %45 = vector.extract_strided_slice %22 {offsets = [40, 0], sizes = [4, 64], strides = [1, 1]} : vector<64x64xf32> to vector<4x64xf32>
    %c127 = arith.constant 127 : index
    %c0_19 = arith.constant 0 : index
    %46 = vector.load %arg11[%c127, %c0_19] : memref<232x64xf32, #tpu.memory_space<vmem>>, vector<4x64xf32>
    tpu.vector_store %arg11[%c127, %c0_19], %45 {strides = array<i32>} : memref<232x64xf32, #tpu.memory_space<vmem>>, vector<4x64xf32>,
    %47 = vector.extract_strided_slice %22 {offsets = [44, 0], sizes = [4, 64], strides = [1, 1]} : vector<64x64xf32> to vector<4x64xf32>
    %c133 = arith.constant 133 : index
    %c0_20 = arith.constant 0 : index
    %48 = vector.load %arg11[%c133, %c0_20] : memref<232x64xf32, #tpu.memory_space<vmem>>, vector<4x64xf32>
    tpu.vector_store %arg11[%c133, %c0_20], %47 {strides = array<i32>} : memref<232x64xf32, #tpu.memory_space<vmem>>, vector<4x64xf32>,
    %49 = vector.extract_strided_slice %22 {offsets = [48, 0], sizes = [4, 64], strides = [1, 1]} : vector<64x64xf32> to vector<4x64xf32>
    %c151 = arith.constant 151 : index
    %c0_21 = arith.constant 0 : index
    %50 = vector.load %arg11[%c151, %c0_21] : memref<232x64xf32, #tpu.memory_space<vmem>>, vector<4x64xf32>
    tpu.vector_store %arg11[%c151, %c0_21], %49 {strides = array<i32>} : memref<232x64xf32, #tpu.memory_space<vmem>>, vector<4x64xf32>,
    %51 = vector.extract_strided_slice %22 {offsets = [52, 0], sizes = [4, 64], strides = [1, 1]} : vector<64x64xf32> to vector<4x64xf32>
    %c157 = arith.constant 157 : index
    %c0_22 = arith.constant 0 : index
    %52 = vector.load %arg11[%c157, %c0_22] : memref<232x64xf32, #tpu.memory_space<vmem>>, vector<4x64xf32>
    tpu.vector_store %arg11[%c157, %c0_22], %51 {strides = array<i32>} : memref<232x64xf32, #tpu.memory_space<vmem>>, vector<4x64xf32>,
    %53 = vector.extract_strided_slice %22 {offsets = [56, 0], sizes = [4, 64], strides = [1, 1]} : vector<64x64xf32> to vector<4x64xf32>
    %c163 = arith.constant 163 : index
    %c0_23 = arith.constant 0 : index
    %54 = vector.load %arg11[%c163, %c0_23] : memref<232x64xf32, #tpu.memory_space<vmem>>, vector<4x64xf32>
    tpu.vector_store %arg11[%c163, %c0_23], %53 {strides = array<i32>} : memref<232x64xf32, #tpu.memory_space<vmem>>, vector<4x64xf32>,
    %55 = vector.extract_strided_slice %22 {offsets = [60, 0], sizes = [4, 64], strides = [1, 1]} : vector<64x64xf32> to vector<4x64xf32>
    %c169 = arith.constant 169 : index
    %c0_24 = arith.constant 0 : index
    %56 = vector.load %arg11[%c169, %c0_24] : memref<232x64xf32, #tpu.memory_space<vmem>>, vector<4x64xf32>
    tpu.vector_store %arg11[%c169, %c0_24], %55 {strides = array<i32>} : memref<232x64xf32, #tpu.memory_space<vmem>>, vector<4x64xf32>,
    %c0_25 = arith.constant 0 : index
    %c0_26 = arith.constant 0 : index
    %57 = vector.load %arg11[%c0_25, %c0_26] : memref<232x64xf32, #tpu.memory_space<vmem>>, vector<224x64xf32>
    %c1 = arith.constant 1 : index
    %c0_27 = arith.constant 0 : index
    %58 = vector.load %arg11[%c1, %c0_27] : memref<232x64xf32, #tpu.memory_space<vmem>>, vector<224x64xf32>
    %c2 = arith.constant 2 : index
    %c0_28 = arith.constant 0 : index
    %59 = vector.load %arg11[%c2, %c0_28] : memref<232x64xf32, #tpu.memory_space<vmem>>, vector<224x64xf32>
    %60 = tpu.concatenate %57, %58, %59 in 1 : vector<224x64xf32>, vector<224x64xf32>, vector<224x64xf32> -> vector<224x192xf32>
    %61 = arith.truncf %60 : vector<224x192xf32> to vector<224x192xbf16>
    %c0_29 = arith.constant 0 : index
    %c0_30 = arith.constant 0 : index
    %62 = vector.load %arg12[%c0_29, %c0_30] : memref<224x192xbf16, #tpu.memory_space<vmem>>, vector<224x192xbf16>
    tpu.vector_store %arg12[%c0_29, %c0_30], %61 {strides = array<i32>} : memref<224x192xbf16, #tpu.memory_space<vmem>>, vector<224x192xbf16>,
    %c0_31 = arith.constant 0 : index
    %c0_32 = arith.constant 0 : index
    %63 = vector.load %arg12[%c0_31, %c0_32] : memref<224x192xbf16, #tpu.memory_space<vmem>>, vector<136x192xbf16>
    %c0_33 = arith.constant 0 : index
    %c0_34 = arith.constant 0 : index
    %64 = vector.load %arg4[%c0_33, %c0_34] : memref<1728x128xbf16, #tpu.memory_space<vmem>>, vector<192x128xbf16>
    %cst_35 = arith.constant dense<0.000000e+00> : vector<136x128xf32>
    %65 = tpu.matmul %63, %64, %cst_35 {dimension_numbers = #tpu.dot_dimension_numbers<[1], [0], [0], [1], [0, 0, 1, 1], [], []>} : vector<136x192xbf16>, vector<192x128xbf16>, vector<136x128xf32> -> vector<136x128xf32>
    %c6 = arith.constant 6 : index
    %c0_36 = arith.constant 0 : index
    %66 = vector.load %arg12[%c6, %c0_36] : memref<224x192xbf16, #tpu.memory_space<vmem>>, vector<136x192xbf16>
    %c192 = arith.constant 192 : index
    %c0_37 = arith.constant 0 : index
    %67 = vector.load %arg4[%c192, %c0_37] : memref<1728x128xbf16, #tpu.memory_space<vmem>>, vector<192x128xbf16>
    %cst_38 = arith.constant dense<0.000000e+00> : vector<136x128xf32>
    %68 = tpu.matmul %66, %67, %cst_38 {dimension_numbers = #tpu.dot_dimension_numbers<[1], [0], [0], [1], [0, 0, 1, 1], [], []>} : vector<136x192xbf16>, vector<192x128xbf16>, vector<136x128xf32> -> vector<136x128xf32>
    %69 = arith.addf %65, %68 : vector<136x128xf32>
    %c12 = arith.constant 12 : index
    %c0_39 = arith.constant 0 : index
    %70 = vector.load %arg12[%c12, %c0_39] : memref<224x192xbf16, #tpu.memory_space<vmem>>, vector<136x192xbf16>
    %c384 = arith.constant 384 : index
    %c0_40 = arith.constant 0 : index
    %71 = vector.load %arg4[%c384, %c0_40] : memref<1728x128xbf16, #tpu.memory_space<vmem>>, vector<192x128xbf16>
    %cst_41 = arith.constant dense<0.000000e+00> : vector<136x128xf32>
    %72 = tpu.matmul %70, %71, %cst_41 {dimension_numbers = #tpu.dot_dimension_numbers<[1], [0], [0], [1], [0, 0, 1, 1], [], []>} : vector<136x192xbf16>, vector<192x128xbf16>, vector<136x128xf32> -> vector<136x128xf32>
    %73 = arith.addf %69, %72 : vector<136x128xf32>
    %c36 = arith.constant 36 : index
    %c0_42 = arith.constant 0 : index
    %74 = vector.load %arg12[%c36, %c0_42] : memref<224x192xbf16, #tpu.memory_space<vmem>>, vector<136x192xbf16>
    %c576 = arith.constant 576 : index
    %c0_43 = arith.constant 0 : index
    %75 = vector.load %arg4[%c576, %c0_43] : memref<1728x128xbf16, #tpu.memory_space<vmem>>, vector<192x128xbf16>
    %cst_44 = arith.constant dense<0.000000e+00> : vector<136x128xf32>
    %76 = tpu.matmul %74, %75, %cst_44 {dimension_numbers = #tpu.dot_dimension_numbers<[1], [0], [0], [1], [0, 0, 1, 1], [], []>} : vector<136x192xbf16>, vector<192x128xbf16>, vector<136x128xf32> -> vector<136x128xf32>
    %77 = arith.addf %73, %76 : vector<136x128xf32>
    %c42 = arith.constant 42 : index
    %c0_45 = arith.constant 0 : index
    %78 = vector.load %arg12[%c42, %c0_45] : memref<224x192xbf16, #tpu.memory_space<vmem>>, vector<136x192xbf16>
    %c768 = arith.constant 768 : index
    %c0_46 = arith.constant 0 : index
    %79 = vector.load %arg4[%c768, %c0_46] : memref<1728x128xbf16, #tpu.memory_space<vmem>>, vector<192x128xbf16>
    %cst_47 = arith.constant dense<0.000000e+00> : vector<136x128xf32>
    %80 = tpu.matmul %78, %79, %cst_47 {dimension_numbers = #tpu.dot_dimension_numbers<[1], [0], [0], [1], [0, 0, 1, 1], [], []>} : vector<136x192xbf16>, vector<192x128xbf16>, vector<136x128xf32> -> vector<136x128xf32>
    %81 = arith.addf %77, %80 : vector<136x128xf32>
    %c48 = arith.constant 48 : index
    %c0_48 = arith.constant 0 : index
    %82 = vector.load %arg12[%c48, %c0_48] : memref<224x192xbf16, #tpu.memory_space<vmem>>, vector<136x192xbf16>
    %c960 = arith.constant 960 : index
    %c0_49 = arith.constant 0 : index
    %83 = vector.load %arg4[%c960, %c0_49] : memref<1728x128xbf16, #tpu.memory_space<vmem>>, vector<192x128xbf16>
    %cst_50 = arith.constant dense<0.000000e+00> : vector<136x128xf32>
    %84 = tpu.matmul %82, %83, %cst_50 {dimension_numbers = #tpu.dot_dimension_numbers<[1], [0], [0], [1], [0, 0, 1, 1], [], []>} : vector<136x192xbf16>, vector<192x128xbf16>, vector<136x128xf32> -> vector<136x128xf32>
    %85 = arith.addf %81, %84 : vector<136x128xf32>
    %c72 = arith.constant 72 : index
    %c0_51 = arith.constant 0 : index
    %86 = vector.load %arg12[%c72, %c0_51] : memref<224x192xbf16, #tpu.memory_space<vmem>>, vector<136x192xbf16>
    %c1152 = arith.constant 1152 : index
    %c0_52 = arith.constant 0 : index
    %87 = vector.load %arg4[%c1152, %c0_52] : memref<1728x128xbf16, #tpu.memory_space<vmem>>, vector<192x128xbf16>
    %cst_53 = arith.constant dense<0.000000e+00> : vector<136x128xf32>
    %88 = tpu.matmul %86, %87, %cst_53 {dimension_numbers = #tpu.dot_dimension_numbers<[1], [0], [0], [1], [0, 0, 1, 1], [], []>} : vector<136x192xbf16>, vector<192x128xbf16>, vector<136x128xf32> -> vector<136x128xf32>
    %89 = arith.addf %85, %88 : vector<136x128xf32>
    %c78 = arith.constant 78 : index
    %c0_54 = arith.constant 0 : index
    %90 = vector.load %arg12[%c78, %c0_54] : memref<224x192xbf16, #tpu.memory_space<vmem>>, vector<136x192xbf16>
    %c1344 = arith.constant 1344 : index
    %c0_55 = arith.constant 0 : index
    %91 = vector.load %arg4[%c1344, %c0_55] : memref<1728x128xbf16, #tpu.memory_space<vmem>>, vector<192x128xbf16>
    %cst_56 = arith.constant dense<0.000000e+00> : vector<136x128xf32>
    %92 = tpu.matmul %90, %91, %cst_56 {dimension_numbers = #tpu.dot_dimension_numbers<[1], [0], [0], [1], [0, 0, 1, 1], [], []>} : vector<136x192xbf16>, vector<192x128xbf16>, vector<136x128xf32> -> vector<136x128xf32>
    %93 = arith.addf %89, %92 : vector<136x128xf32>
    %c84 = arith.constant 84 : index
    %c0_57 = arith.constant 0 : index
    %94 = vector.load %arg12[%c84, %c0_57] : memref<224x192xbf16, #tpu.memory_space<vmem>>, vector<136x192xbf16>
    %c1536 = arith.constant 1536 : index
    %c0_58 = arith.constant 0 : index
    %95 = vector.load %arg4[%c1536, %c0_58] : memref<1728x128xbf16, #tpu.memory_space<vmem>>, vector<192x128xbf16>
    %cst_59 = arith.constant dense<0.000000e+00> : vector<136x128xf32>
    %96 = tpu.matmul %94, %95, %cst_59 {dimension_numbers = #tpu.dot_dimension_numbers<[1], [0], [0], [1], [0, 0, 1, 1], [], []>} : vector<136x192xbf16>, vector<192x128xbf16>, vector<136x128xf32> -> vector<136x128xf32>
    %97 = arith.addf %93, %96 : vector<136x128xf32>
    %c0_60 = arith.constant 0 : index
    %c0_61 = arith.constant 0 : index
    %98 = vector.load %arg5[%c0_60, %c0_61] : memref<1x128xf32, #tpu.memory_space<vmem>>, vector<1x128xf32>
    %99 = vector.broadcast %98 : vector<1x128xf32> to vector<136x128xf32>
    %100 = arith.addf %97, %99 : vector<136x128xf32>
    %cst_62 = arith.constant 0.000000e+00 : f32
    %101 = vector.broadcast %cst_62 : f32 to vector<136x128xf32>
    %102 = arith.maximumf %100, %101 : vector<136x128xf32>
    %c0_63 = arith.constant 0 : index
    %c0_64 = arith.constant 0 : index
    %103 = vector.load %arg13[%c0_63, %c0_64] : memref<136x128xf32, #tpu.memory_space<vmem>>, vector<136x128xf32>
    tpu.vector_store %arg13[%c0_63, %c0_64], %102 {strides = array<i32>} : memref<136x128xf32, #tpu.memory_space<vmem>>, vector<136x128xf32>,
    %c0_65 = arith.constant 0 : index
    %c0_66 = arith.constant 0 : index
    %104 = vector.load %arg13[%c0_65, %c0_66] : memref<136x128xf32, #tpu.memory_space<vmem>>, vector<88x128xf32>
    %c1_67 = arith.constant 1 : index
    %c0_68 = arith.constant 0 : index
    %105 = vector.load %arg13[%c1_67, %c0_68] : memref<136x128xf32, #tpu.memory_space<vmem>>, vector<88x128xf32>
    %106 = arith.maximumf %104, %105 : vector<88x128xf32>
    %c6_69 = arith.constant 6 : index
    %c0_70 = arith.constant 0 : index
    %107 = vector.load %arg13[%c6_69, %c0_70] : memref<136x128xf32, #tpu.memory_space<vmem>>, vector<88x128xf32>
    %108 = arith.maximumf %106, %107 : vector<88x128xf32>
    %c7 = arith.constant 7 : index
    %c0_71 = arith.constant 0 : index
    %109 = vector.load %arg13[%c7, %c0_71] : memref<136x128xf32, #tpu.memory_space<vmem>>, vector<88x128xf32>
    %110 = arith.maximumf %108, %109 : vector<88x128xf32>
    %c36_72 = arith.constant 36 : index
    %c0_73 = arith.constant 0 : index
    %111 = vector.load %arg13[%c36_72, %c0_73] : memref<136x128xf32, #tpu.memory_space<vmem>>, vector<88x128xf32>
    %112 = arith.maximumf %110, %111 : vector<88x128xf32>
    %c37 = arith.constant 37 : index
    %c0_74 = arith.constant 0 : index
    %113 = vector.load %arg13[%c37, %c0_74] : memref<136x128xf32, #tpu.memory_space<vmem>>, vector<88x128xf32>
    %114 = arith.maximumf %112, %113 : vector<88x128xf32>
    %c42_75 = arith.constant 42 : index
    %c0_76 = arith.constant 0 : index
    %115 = vector.load %arg13[%c42_75, %c0_76] : memref<136x128xf32, #tpu.memory_space<vmem>>, vector<88x128xf32>
    %116 = arith.maximumf %114, %115 : vector<88x128xf32>
    %c43_77 = arith.constant 43 : index
    %c0_78 = arith.constant 0 : index
    %117 = vector.load %arg13[%c43_77, %c0_78] : memref<136x128xf32, #tpu.memory_space<vmem>>, vector<88x128xf32>
    %118 = arith.maximumf %116, %117 : vector<88x128xf32>
    %119 = tpu.iota {dimensions = array<i32: 1>} : vector<1x88xi32>
    %cst_79 = arith.constant 0.000000e+00 : f32
    %120 = vector.broadcast %cst_79 : f32 to vector<1x88xf32>
    %c0_i32 = arith.constant 0 : i32
    %121 = vector.broadcast %c0_i32 : i32 to vector<1x88xi32>
    %122 = arith.cmpi eq, %119, %121 : vector<1x88xi32>
    %123 = arith.extui %122 : vector<1x88xi1> to vector<1x88xi32>
    %124 = arith.sitofp %123 : vector<1x88xi32> to vector<1x88xf32>
    %125 = arith.addf %120, %124 : vector<1x88xf32>
    %c2_i32 = arith.constant 2 : i32
    %126 = vector.broadcast %c2_i32 : i32 to vector<1x88xi32>
    %127 = arith.cmpi eq, %119, %126 : vector<1x88xi32>
    %128 = arith.extui %127 : vector<1x88xi1> to vector<1x88xi32>
    %129 = arith.sitofp %128 : vector<1x88xi32> to vector<1x88xf32>
    %130 = arith.addf %125, %129 : vector<1x88xf32>
    %c12_i32 = arith.constant 12 : i32
    %131 = vector.broadcast %c12_i32 : i32 to vector<1x88xi32>
    %132 = arith.cmpi eq, %119, %131 : vector<1x88xi32>
    %133 = arith.extui %132 : vector<1x88xi1> to vector<1x88xi32>
    %134 = arith.sitofp %133 : vector<1x88xi32> to vector<1x88xf32>
    %135 = arith.addf %130, %134 : vector<1x88xf32>
    %c14_i32 = arith.constant 14 : i32
    %136 = vector.broadcast %c14_i32 : i32 to vector<1x88xi32>
    %137 = arith.cmpi eq, %119, %136 : vector<1x88xi32>
    %138 = arith.extui %137 : vector<1x88xi1> to vector<1x88xi32>
    %139 = arith.sitofp %138 : vector<1x88xi32> to vector<1x88xf32>
    %140 = arith.addf %135, %139 : vector<1x88xf32>
    %c72_i32 = arith.constant 72 : i32
    %141 = vector.broadcast %c72_i32 : i32 to vector<1x88xi32>
    %142 = arith.cmpi eq, %119, %141 : vector<1x88xi32>
    %143 = arith.extui %142 : vector<1x88xi1> to vector<1x88xi32>
    %144 = arith.sitofp %143 : vector<1x88xi32> to vector<1x88xf32>
    %145 = arith.addf %140, %144 : vector<1x88xf32>
    %c74_i32 = arith.constant 74 : i32
    %146 = vector.broadcast %c74_i32 : i32 to vector<1x88xi32>
    %147 = arith.cmpi eq, %119, %146 : vector<1x88xi32>
    %148 = arith.extui %147 : vector<1x88xi1> to vector<1x88xi32>
    %149 = arith.sitofp %148 : vector<1x88xi32> to vector<1x88xf32>
    %150 = arith.addf %145, %149 : vector<1x88xf32>
    %c84_i32 = arith.constant 84 : i32
    %151 = vector.broadcast %c84_i32 : i32 to vector<1x88xi32>
    %152 = arith.cmpi eq, %119, %151 : vector<1x88xi32>
    %153 = arith.extui %152 : vector<1x88xi1> to vector<1x88xi32>
    %154 = arith.sitofp %153 : vector<1x88xi32> to vector<1x88xf32>
    %155 = arith.addf %150, %154 : vector<1x88xf32>
    %c86_i32 = arith.constant 86 : i32
    %156 = vector.broadcast %c86_i32 : i32 to vector<1x88xi32>
    %157 = arith.cmpi eq, %119, %156 : vector<1x88xi32>
    %158 = arith.extui %157 : vector<1x88xi1> to vector<1x88xi32>
    %159 = arith.sitofp %158 : vector<1x88xi32> to vector<1x88xf32>
    %160 = arith.addf %155, %159 : vector<1x88xf32>
    %cst_80 = arith.constant 1.250000e-01 : f32
    %161 = vector.broadcast %cst_80 : f32 to vector<1x88xf32>
    %162 = arith.mulf %160, %161 : vector<1x88xf32>
    %cst_81 = arith.constant dense<0.000000e+00> : vector<1x128xf32>
    %163 = tpu.matmul %162, %118, %cst_81 {dimension_numbers = #tpu.dot_dimension_numbers<[1], [0], [0], [1], [0, 0, 1, 1], [], []>} : vector<1x88xf32>, vector<88x128xf32>, vector<1x128xf32> -> vector<1x128xf32>
    %164 = arith.truncf %163 : vector<1x128xf32> to vector<1x128xbf16>
    %c0_82 = arith.constant 0 : index
    %c0_83 = arith.constant 0 : index
    %165 = vector.load %arg6[%c0_82, %c0_83] : memref<128x128xbf16, #tpu.memory_space<vmem>>, vector<128x128xbf16>
    %cst_84 = arith.constant dense<0.000000e+00> : vector<1x128xf32>
    %166 = tpu.matmul %164, %165, %cst_84 {dimension_numbers = #tpu.dot_dimension_numbers<[1], [0], [0], [1], [0, 0, 1, 1], [], []>} : vector<1x128xbf16>, vector<128x128xbf16>, vector<1x128xf32> -> vector<1x128xf32>
    %c0_85 = arith.constant 0 : index
    %c0_86 = arith.constant 0 : index
    %167 = vector.load %arg7[%c0_85, %c0_86] : memref<1x128xf32, #tpu.memory_space<vmem>>, vector<1x128xf32>
    %168 = arith.addf %166, %167 : vector<1x128xf32>
    %169 = arith.truncf %168 : vector<1x128xf32> to vector<1x128xbf16>
    %c0_87 = arith.constant 0 : index
    %c0_88 = arith.constant 0 : index
    %170 = vector.load %arg8[%c0_87, %c0_88] : memref<128x128xbf16, #tpu.memory_space<vmem>>, vector<128x128xbf16>
    %cst_89 = arith.constant dense<0.000000e+00> : vector<1x128xf32>
    %171 = tpu.matmul %169, %170, %cst_89 {dimension_numbers = #tpu.dot_dimension_numbers<[1], [0], [0], [1], [0, 0, 1, 1], [], []>} : vector<1x128xbf16>, vector<128x128xbf16>, vector<1x128xf32> -> vector<1x128xf32>
    %c0_90 = arith.constant 0 : index
    %c0_91 = arith.constant 0 : index
    %172 = vector.load %arg9[%c0_90, %c0_91] : memref<1x128xf32, #tpu.memory_space<vmem>>, vector<1x128xf32>
    %173 = arith.addf %171, %172 : vector<1x128xf32>
    %174 = arith.negf %173 : vector<1x128xf32>
    %175 = math.exp %174 : vector<1x128xf32>
    %cst_92 = arith.constant 1.000000e+00 : f32
    %176 = vector.broadcast %cst_92 : f32 to vector<1x128xf32>
    %177 = arith.addf %176, %175 : vector<1x128xf32>
    %178 = arith.divf %176, %177 : vector<1x128xf32>
    %179 = vector.shape_cast %178 : vector<1x128xf32> to vector<1x1x128xf32>
    %c0_93 = arith.constant 0 : index
    %c0_94 = arith.constant 0 : index
    %c0_95 = arith.constant 0 : index
    %180 = vector.load %arg10[%c0_93, %c0_94, %c0_95] : memref<1x1x128xf32, #tpu.memory_space<vmem>>, vector<1x1x128xf32>
    tpu.vector_store %arg10[%c0_93, %c0_94, %c0_95], %179 {strides = array<i32>} : memref<1x1x128xf32, #tpu.memory_space<vmem>>, vector<1x1x128xf32>,
    return
  }
  func.func @transform_0(%arg0: i32) -> (i32, i32) {
    %c0_i32 = arith.constant 0 : i32
    %c0_i32_0 = arith.constant 0 : i32
    return %arg0, %c0_i32 : i32, i32
  }
  func.func @transform_1(%arg0: i32) -> (i32, i32) {
    %c0_i32 = arith.constant 0 : i32
    %c0_i32_0 = arith.constant 0 : i32
    %c0_i32_1 = arith.constant 0 : i32
    return %c0_i32, %c0_i32_0 : i32, i32
  }
  func.func @transform_2(%arg0: i32) -> (i32, i32) {
    %c0_i32 = arith.constant 0 : i32
    %c0_i32_0 = arith.constant 0 : i32
    %c0_i32_1 = arith.constant 0 : i32
    return %c0_i32, %c0_i32_0 : i32, i32
  }
  func.func @transform_3(%arg0: i32) -> (i32, i32) {
    %c0_i32 = arith.constant 0 : i32
    %c0_i32_0 = arith.constant 0 : i32
    %c0_i32_1 = arith.constant 0 : i32
    return %c0_i32, %c0_i32_0 : i32, i32
  }
  func.func @transform_4(%arg0: i32) -> (i32, i32) {
    %c0_i32 = arith.constant 0 : i32
    %c0_i32_0 = arith.constant 0 : i32
    %c0_i32_1 = arith.constant 0 : i32
    return %c0_i32, %c0_i32_0 : i32, i32
  }
  func.func @transform_5(%arg0: i32) -> (i32, i32) {
    %c0_i32 = arith.constant 0 : i32
    %c0_i32_0 = arith.constant 0 : i32
    %c0_i32_1 = arith.constant 0 : i32
    return %c0_i32, %c0_i32_0 : i32, i32
  }
  func.func @transform_6(%arg0: i32) -> (i32, i32) {
    %c0_i32 = arith.constant 0 : i32
    %c0_i32_0 = arith.constant 0 : i32
    %c0_i32_1 = arith.constant 0 : i32
    return %c0_i32, %c0_i32_0 : i32, i32
  }
  func.func @transform_7(%arg0: i32) -> (i32, i32) {
    %c0_i32 = arith.constant 0 : i32
    %c0_i32_0 = arith.constant 0 : i32
    %c0_i32_1 = arith.constant 0 : i32
    return %c0_i32, %c0_i32_0 : i32, i32
  }
  func.func @transform_8(%arg0: i32) -> (i32, i32) {
    %c0_i32 = arith.constant 0 : i32
    %c0_i32_0 = arith.constant 0 : i32
    %c0_i32_1 = arith.constant 0 : i32
    return %c0_i32, %c0_i32_0 : i32, i32
  }
  func.func @transform_9(%arg0: i32) -> (i32, i32, i32) {
    %c0_i32 = arith.constant 0 : i32
    %c0_i32_0 = arith.constant 0 : i32
    %c0_i32_1 = arith.constant 0 : i32
    return %arg0, %c0_i32, %c0_i32_0 : i32, i32, i32
  }
}

</mosaic_0001>

<llo_original>
// kernel: simple_cnn_forward.1
$region0: #{simple_cnn_forward.1}
  #allocation0 [shape = 'u32[]', space=smem, size = 0x4, offset = 0x4, fixed_abs, tag = 'smem constant byte address 0x4 - core index']
  #allocation1 [shape = 'u32[72,128]{1,0:T(1,128)}', space=vmem, size = 0x9000, scoped, tag = 'internal scratch']
  #allocation2 [shape = 'f32[232,64]{1,0:T(8,128)}', space=vmem, size = 0x1d000, scoped, tag = 'scratch operand']
  #allocation3 [shape = 'bf16[224,192]{1,0:T(8,128)(2,1)}', space=vmem, size = 0x1c000, scoped, tag = 'scratch operand']
  #allocation4 [shape = 'f32[136,128]{1,0:T(8,128)}', space=vmem, size = 0x11000, scoped, tag = 'scratch operand']
  %s0 = inlined_call_operand.vmem [shape: bf16[1024,64], index: 0, kind: input, shape index: {}]
  %s1 = inlined_call_operand.vmem [shape: bf16[64,64], index: 1, kind: input, shape index: {}]
  %s2 = inlined_call_operand.vmem [shape: f32[1,64], index: 2, kind: input, shape index: {}]
  %s3 = inlined_call_operand.vmem [shape: bf16[1728,128], index: 3, kind: input, shape index: {}]
  %s4 = inlined_call_operand.vmem [shape: f32[1,128], index: 4, kind: input, shape index: {}]
  %s5 = inlined_call_operand.vmem [shape: bf16[128,128], index: 5, kind: input, shape index: {}]
  %s6 = inlined_call_operand.vmem [shape: f32[1,128], index: 6, kind: input, shape index: {}]
  %s7 = inlined_call_operand.vmem [shape: bf16[128,128], index: 7, kind: input, shape index: {}]
  %s8 = inlined_call_operand.vmem [shape: f32[1,128], index: 8, kind: input, shape index: {}]
  %s9 = inlined_call_operand.vmem [shape: f32[2,1,128], index: 9, kind: output, shape index: {}]
  %s10 = sld [smem:[#allocation0]]
  $region69: #{simple_cnn_forward.1} parent=0
    _
  %s12 = ssub.s32 1, %s10
  %s13 = scalar_select 0, %s12, %s10
  loop: start=0, step=1, limit=4
  $region2: #{simple_cnn_forward.1} parent=0 // loop_pre_header
    _
  $region3: #{simple_cnn_forward.1} parent=0 // loop_header
    %s15 = sphi 0, %s19
    %p16 = scmp.ge.s32.totalorder %s15, 4
    %s25 = sphi 0, %s27
    %s28 = sphi 0, %s25
    %s29 = sphi 0, %s28
    %s45 = sphi 0, %s29
    %s49 = sphi 0, %s49
    %s51 = sphi 0, %s49
    %s52 = sphi 0, %s51
    %s66 = sphi 0, %s52
    %s70 = sphi 0, %s70
    %s72 = sphi 0, %s70
    %s73 = sphi 0, %s72
    %s87 = sphi 0, %s73
    %s91 = sphi 0, %s91
    %s93 = sphi 0, %s91
    %s94 = sphi 0, %s93
    %s108 = sphi 0, %s94
    %s112 = sphi 0, %s112
    %s114 = sphi 0, %s112
    %s115 = sphi 0, %s114
    %s129 = sphi 0, %s115
    %s133 = sphi 0, %s133
    %s135 = sphi 0, %s133
    %s136 = sphi 0, %s135
    %s150 = sphi 0, %s136
    %s154 = sphi 0, %s154
    %s156 = sphi 0, %s154
    %s157 = sphi 0, %s156
    %s171 = sphi 0, %s157
    %s175 = sphi 0, %s175
    %s177 = sphi 0, %s175
    %s178 = sphi 0, %s177
    %s192 = sphi 0, %s178
    %s196 = sphi 0, %s196
    %s198 = sphi 0, %s196
    %s199 = sphi 0, %s198
    %s213 = sphi 0, %s199
    %s219 = sphi 0, %s221
    %s222 = sphi 0, %s219
    %s223 = sphi 0, %s222
    %s239 = sphi 0, %s223
  $region4: #{simple_cnn_forward.1} parent=0 // loop_header_branch
    %18 = sbr.rel (%p16) target = $region8
  $region5: #{simple_cnn_forward.1} parent=0 // loop_body
    %s20 = ssub.s32 %s15, 1
    %s21 = ssub.s32 %s15, 2
    %s22 = sadd.s32 %s15, 1
    %s23 = ssub.s32 %s15, %s22
    %p24 = scmp.eq.s32.totalorder %s23, 0
    %s26 = sadd.s32 %s25, 1
    %s27 = scalar_select %p24, %s25, %s26
    %p30 = pneg %p24
    %p31 = scmp.eq.s32.totalorder %s15, 1
    %p32 = por %p30, %p31
    %p33 = scmp.ne.s32.totalorder %s25, %s28
    %p34 = scmp.eq.s32.totalorder %s15, 0
    %p35 = por %p33, %p34
    %p36 = scmp.ne.s32.totalorder %s25, %s28
    %p37 = scmp.eq.s32.totalorder %s20, 1
    %p38 = por %p36, %p37
    %p39 = scmp.ne.s32.totalorder %s28, %s29
    %p40 = scmp.eq.s32.totalorder %s20, 0
    %p41 = por %p39, %p40
    %p42 = scmp.ne.s32.totalorder %s28, %s29
    %p43 = scmp.eq.s32.totalorder %s21, 1
    %p44 = por %p42, %p43
    %p46 = scmp.ne.s32.totalorder %s29, %s45
    %p47 = scmp.eq.s32.totalorder %s21, 0
    %p48 = por %p46, %p47
    %s50 = sadd.s32 %s49, 1
    %p53 = scmp.eq.s32.totalorder %s15, 1
    %p54 = scmp.ne.s32.totalorder %s49, %s51
    %p55 = scmp.eq.s32.totalorder %s15, 0
    %p56 = por %p54, %p55
    %p57 = scmp.ne.s32.totalorder %s49, %s51
    %p58 = scmp.eq.s32.totalorder %s20, 1
    %p59 = por %p57, %p58
    %p60 = scmp.ne.s32.totalorder %s51, %s52
    %p61 = scmp.eq.s32.totalorder %s20, 0
    %p62 = por %p60, %p61
    %p63 = scmp.ne.s32.totalorder %s51, %s52
    %p64 = scmp.eq.s32.totalorder %s21, 1
    %p65 = por %p63, %p64
    %p67 = scmp.ne.s32.totalorder %s52, %s66
    %p68 = scmp.eq.s32.totalorder %s21, 0
    %p69 = por %p67, %p68
    %s71 = sadd.s32 %s70, 1
    %p74 = scmp.eq.s32.totalorder %s15, 1
    %p75 = scmp.ne.s32.totalorder %s70, %s72
    %p76 = scmp.eq.s32.totalorder %s15, 0
    %p77 = por %p75, %p76
    %p78 = scmp.ne.s32.totalorder %s70, %s72
    %p79 = scmp.eq.s32.totalorder %s20, 1
    %p80 = por %p78, %p79
    %p81 = scmp.ne.s32.totalorder %s72, %s73
    %p82 = scmp.eq.s32.totalorder %s20, 0
    %p83 = por %p81, %p82
    %p84 = scmp.ne.s32.totalorder %s72, %s73
    %p85 = scmp.eq.s32.totalorder %s21, 1
    %p86 = por %p84, %p85
    %p88 = scmp.ne.s32.totalorder %s73, %s87
    %p89 = scmp.eq.s32.totalorder %s21, 0
    %p90 = por %p88, %p89
    %s92 = sadd.s32 %s91, 1
    %p95 = scmp.eq.s32.totalorder %s15, 1
    %p96 = scmp.ne.s32.totalorder %s91, %s93
    %p97 = scmp.eq.s32.totalorder %s15, 0
    %p98 = por %p96, %p97
    %p99 = scmp.ne.s32.totalorder %s91, %s93
    %p100 = scmp.eq.s32.totalorder %s20, 1
    %p101 = por %p99, %p100
    %p102 = scmp.ne.s32.totalorder %s93, %s94
    %p103 = scmp.eq.s32.totalorder %s20, 0
    %p104 = por %p102, %p103
    %p105 = scmp.ne.s32.totalorder %s93, %s94
    %p106 = scmp.eq.s32.totalorder %s21, 1
    %p107 = por %p105, %p106
    %p109 = scmp.ne.s32.totalorder %s94, %s108
    %p110 = scmp.eq.s32.totalorder %s21, 0
    %p111 = por %p109, %p110
    %s113 = sadd.s32 %s112, 1
    %p116 = scmp.eq.s32.totalorder %s15, 1
    %p117 = scmp.ne.s32.totalorder %s112, %s114
    %p118 = scmp.eq.s32.totalorder %s15, 0
    %p119 = por %p117, %p118
    %p120 = scmp.ne.s32.totalorder %s112, %s114
    %p121 = scmp.eq.s32.totalorder %s20, 1
    %p122 = por %p120, %p121
    %p123 = scmp.ne.s32.totalorder %s114, %s115
    %p124 = scmp.eq.s32.totalorder %s20, 0
    %p125 = por %p123, %p124
    %p126 = scmp.ne.s32.totalorder %s114, %s115
    %p127 = scmp.eq.s32.totalorder %s21, 1
    %p128 = por %p126, %p127
    %p130 = scmp.ne.s32.totalorder %s115, %s129
    %p131 = scmp.eq.s32.totalorder %s21, 0
    %p132 = por %p130, %p131
    %s134 = sadd.s32 %s133, 1
    %p137 = scmp.eq.s32.totalorder %s15, 1
    %p138 = scmp.ne.s32.totalorder %s133, %s135
    %p139 = scmp.eq.s32.totalorder %s15, 0
    %p140 = por %p138, %p139
    %p141 = scmp.ne.s32.totalorder %s133, %s135
    %p142 = scmp.eq.s32.totalorder %s20, 1
    %p143 = por %p141, %p142
    %p144 = scmp.ne.s32.totalorder %s135, %s136
    %p145 = scmp.eq.s32.totalorder %s20, 0
    %p146 = por %p144, %p145
    %p147 = scmp.ne.s32.totalorder %s135, %s136
    %p148 = scmp.eq.s32.totalorder %s21, 1
    %p149 = por %p147, %p148
    %p151 = scmp.ne.s32.totalorder %s136, %s150
    %p152 = scmp.eq.s32.totalorder %s21, 0
    %p153 = por %p151, %p152
    %s155 = sadd.s32 %s154, 1
    %p158 = scmp.eq.s32.totalorder %s15, 1
    %p159 = scmp.ne.s32.totalorder %s154, %s156
    %p160 = scmp.eq.s32.totalorder %s15, 0
    %p161 = por %p159, %p160
    %p162 = scmp.ne.s32.totalorder %s154, %s156
    %p163 = scmp.eq.s32.totalorder %s20, 1
    %p164 = por %p162, %p163
    %p165 = scmp.ne.s32.totalorder %s156, %s157
    %p166 = scmp.eq.s32.totalorder %s20, 0
    %p167 = por %p165, %p166
    %p168 = scmp.ne.s32.totalorder %s156, %s157
    %p169 = scmp.eq.s32.totalorder %s21, 1
    %p170 = por %p168, %p169
    %p172 = scmp.ne.s32.totalorder %s157, %s171
    %p173 = scmp.eq.s32.totalorder %s21, 0
    %p174 = por %p172, %p173
    %s176 = sadd.s32 %s175, 1
    %p179 = scmp.eq.s32.totalorder %s15, 1
    %p180 = scmp.ne.s32.totalorder %s175, %s177
    %p181 = scmp.eq.s32.totalorder %s15, 0
    %p182 = por %p180, %p181
    %p183 = scmp.ne.s32.totalorder %s175, %s177
    %p184 = scmp.eq.s32.totalorder %s20, 1
    %p185 = por %p183, %p184
    %p186 = scmp.ne.s32.totalorder %s177, %s178
    %p187 = scmp.eq.s32.totalorder %s20, 0
    %p188 = por %p186, %p187
    %p189 = scmp.ne.s32.totalorder %s177, %s178
    %p190 = scmp.eq.s32.totalorder %s21, 1
    %p191 = por %p189, %p190
    %p193 = scmp.ne.s32.totalorder %s178, %s192
    %p194 = scmp.eq.s32.totalorder %s21, 0
    %p195 = por %p193, %p194
    %s197 = sadd.s32 %s196, 1
    %p200 = scmp.eq.s32.totalorder %s15, 1
    %p201 = scmp.ne.s32.totalorder %s196, %s198
    %p202 = scmp.eq.s32.totalorder %s15, 0
    %p203 = por %p201, %p202
    %p204 = scmp.ne.s32.totalorder %s196, %s198
    %p205 = scmp.eq.s32.totalorder %s20, 1
    %p206 = por %p204, %p205
    %p207 = scmp.ne.s32.totalorder %s198, %s199
    %p208 = scmp.eq.s32.totalorder %s20, 0
    %p209 = por %p207, %p208
    %p210 = scmp.ne.s32.totalorder %s198, %s199
    %p211 = scmp.eq.s32.totalorder %s21, 1
    %p212 = por %p210, %p211
    %p214 = scmp.ne.s32.totalorder %s199, %s213
    %p215 = scmp.eq.s32.totalorder %s21, 0
    %p216 = por %p214, %p215
    %s217 = ssub.s32 %s15, %s22
    %p218 = scmp.eq.s32.totalorder %s217, 0
    %s220 = sadd.s32 %s219, 1
    %s221 = scalar_select %p218, %s219, %s220
    %p224 = pneg %p218
    %p225 = scmp.eq.s32.totalorder %s15, 1
    %p226 = por %p224, %p225
    %p227 = scmp.ne.s32.totalorder %s219, %s222
    %p228 = scmp.eq.s32.totalorder %s15, 0
    %p229 = por %p227, %p228
    %p230 = scmp.ne.s32.totalorder %s219, %s222
    %p231 = scmp.eq.s32.totalorder %s20, 1
    %p232 = por %p230, %p231
    %p233 = scmp.ne.s32.totalorder %s222, %s223
    %p234 = scmp.eq.s32.totalorder %s20, 0
    %p235 = por %p233, %p234
    %p236 = scmp.ne.s32.totalorder %s222, %s223
    %p237 = scmp.eq.s32.totalorder %s21, 1
    %p238 = por %p236, %p237
    %p240 = scmp.ne.s32.totalorder %s223, %s239
    %p241 = scmp.eq.s32.totalorder %s21, 0
    %p242 = por %p240, %p241
    %p243 = scmp.le.s32.totalorder 1, %s15
    %p244 = scmp.lt.s32.totalorder %s15, 3
    %p245 = pnand %p243, %p244
    %p246 = pneg %p245
    // Predicated region
    $region9: #{simple_cnn_forward.1} parent=5 // pred_check
      _
    $region10: #{simple_cnn_forward.1} parent=5 // pred_check_branch
      %248 = sbr.rel (%p245) target = $region12
    $region11: #{simple_cnn_forward.1} parent=5 // pred_region
      %s249 = ssub.s32 %s15, 1
      // Predicated region
      $region13: #{simple_cnn_forward.1} parent=11 // pred_check
        %p250 = pneg %p62
      $region14: #{simple_cnn_forward.1} parent=11 // pred_check_branch
        %252 = sbr.rel (%p250) target = $region16
      $region15: #{simple_cnn_forward.1} parent=11 // pred_region
        _
      $region16: #{simple_cnn_forward.1} parent=11 // pred_fallthru
        _
      // Predicated region
      $region17: #{simple_cnn_forward.1} parent=11 // pred_check
        %p253 = pneg %p83
      $region18: #{simple_cnn_forward.1} parent=11 // pred_check_branch
        %255 = sbr.rel (%p253) target = $region20
      $region19: #{simple_cnn_forward.1} parent=11 // pred_region
        _
      $region20: #{simple_cnn_forward.1} parent=11 // pred_fallthru
        _
      // Predicated region
      $region21: #{simple_cnn_forward.1} parent=11 // pred_check
        %p256 = pneg %p104
      $region22: #{simple_cnn_forward.1} parent=11 // pred_check_branch
        %258 = sbr.rel (%p256) target = $region24
      $region23: #{simple_cnn_forward.1} parent=11 // pred_region
        _
      $region24: #{simple_cnn_forward.1} parent=11 // pred_fallthru
        _
      // Predicated region
      $region25: #{simple_cnn_forward.1} parent=11 // pred_check
        %p259 = pneg %p125
      $region26: #{simple_cnn_forward.1} parent=11 // pred_check_branch
        %261 = sbr.rel (%p259) target = $region28
      $region27: #{simple_cnn_forward.1} parent=11 // pred_region
        _
      $region28: #{simple_cnn_forward.1} parent=11 // pred_fallthru
        _
      // Predicated region
      $region29: #{simple_cnn_forward.1} parent=11 // pred_check
        %p262 = pneg %p146
      $region30: #{simple_cnn_forward.1} parent=11 // pred_check_branch
        %264 = sbr.rel (%p262) target = $region32
      $region31: #{simple_cnn_forward.1} parent=11 // pred_region
        _
      $region32: #{simple_cnn_forward.1} parent=11 // pred_fallthru
        _
      // Predicated region
      $region33: #{simple_cnn_forward.1} parent=11 // pred_check
        %p265 = pneg %p167
      $region34: #{simple_cnn_forward.1} parent=11 // pred_check_branch
        %267 = sbr.rel (%p265) target = $region36
      $region35: #{simple_cnn_forward.1} parent=11 // pred_region
        _
      $region36: #{simple_cnn_forward.1} parent=11 // pred_fallthru
        _
      // Predicated region
      $region37: #{simple_cnn_forward.1} parent=11 // pred_check
        %p268 = pneg %p188
      $region38: #{simple_cnn_forward.1} parent=11 // pred_check_branch
        %270 = sbr.rel (%p268) target = $region40
      $region39: #{simple_cnn_forward.1} parent=11 // pred_region
        _
      $region40: #{simple_cnn_forward.1} parent=11 // pred_fallthru
        _
      // Predicated region
      $region41: #{simple_cnn_forward.1} parent=11 // pred_check
        %p271 = pneg %p209
      $region42: #{simple_cnn_forward.1} parent=11 // pred_check_branch
        %273 = sbr.rel (%p271) target = $region44
      $region43: #{simple_cnn_forward.1} parent=11 // pred_region
        _
      $region44: #{simple_cnn_forward.1} parent=11 // pred_fallthru
        _
    $region12: #{simple_cnn_forward.1} parent=5 // pred_fallthru
      _
    %p274 = scmp.lt.s32.totalorder %s15, 2
    // Predicated region
    $region45: #{simple_cnn_forward.1} parent=5 // pred_check
      %p275 = pneg %p274
    $region46: #{simple_cnn_forward.1} parent=5 // pred_check_branch
      %277 = sbr.rel (%p275) target = $region48
    $region47: #{simple_cnn_forward.1} parent=5 // pred_region
      // Predicated region
      $region49: #{simple_cnn_forward.1} parent=47 // pred_check
        %p278 = pneg %p35
      $region50: #{simple_cnn_forward.1} parent=47 // pred_check_branch
        %280 = sbr.rel (%p278) target = $region52
      $region51: #{simple_cnn_forward.1} parent=47 // pred_region
        %s281 = smul.u32 64, %s15
        %p282 = scmp.lt.s32.totalorder %s281, 127
        %s283 = scalar_select %p282, %s281, 127
        %s284 = smul.addr %s283, 4
        %s285 = scalar_lea.vmem %s0, %s284
        %s286 = smul.u32 64, %s15
      $region52: #{simple_cnn_forward.1} parent=47 // pred_fallthru
        _
    $region48: #{simple_cnn_forward.1} parent=5 // pred_fallthru
      _
    %p287 = scmp.le.s32.totalorder 1, %s15
    %p288 = scmp.lt.s32.totalorder %s15, 3
    %p289 = pnand %p287, %p288
    %p290 = pneg %p289
    // Predicated region
    $region53: #{simple_cnn_forward.1} parent=5 // pred_check
      _
    $region54: #{simple_cnn_forward.1} parent=5 // pred_check_branch
      %292 = sbr.rel (%p289) target = $region56
    $region55: #{simple_cnn_forward.1} parent=5 // pred_region
      %s293 = ssub.s32 %s15, 1
      %s294 = smul.u32 64, %s20
      %p295 = scmp.lt.s32.totalorder %s294, 127
      %s296 = scalar_select %p295, %s294, 127
      %s297 = smul.addr %s296, 4
      %s298 = scalar_lea.vmem %s0, %s297
      %p299 = pneg %p41
      %p300 = pneg %p38
      %p301 = pneg %p62
      %p302 = pneg %p59
      %p303 = pneg %p83
      %p304 = pneg %p80
      %p305 = pneg %p104
      %p306 = pneg %p101
      %p307 = pneg %p125
      %p308 = pneg %p122
      %p309 = pneg %p146
      %p310 = pneg %p143
      %p311 = pneg %p167
      %p312 = pneg %p164
      %p313 = pneg %p188
      %p314 = pneg %p185
      %p315 = pneg %p209
      %p316 = pneg %p206
      %p317 = pneg %p235
      %p318 = pneg %p232
      %p319 = scmp.lt.s32.totalorder %s20, 1
      %s320 = scalar_select %p319, %s20, 1
      %s321 = scalar_lea.vmem %s9, %s320
      %s322 = smul.u32 64, %s20
      %p323 = scmp.lt.s32.totalorder %s322, 127
      %s324 = scalar_select %p323, %s322, 127
      %s325 = smul.addr %s324, 4
      %s326 = scalar_lea.vmem %s0, %s325
      %s327 = smul.u32 64, %s20
      %p328 = scmp.lt.s32.totalorder %s20, 1
      %s329 = scalar_select %p328, %s20, 1
      %s330 = scalar_lea.vmem %s9, %s329
      %v332 = vld [vmem:[%s326] sm:$0xf]
      %v333 = vld [vmem:[%s326 + $0x4] sm:$0xf]
      %v334 = vld [vmem:[%s326 + $0x8] sm:$0xf]
      %v335 = vld [vmem:[%s326 + $0xc] sm:$0xf]
      %v336 = vld [vmem:[%s326 + $0x10] sm:$0xf]
      %v337 = vld [vmem:[%s326 + $0x14] sm:$0xf]
      %v338 = vld [vmem:[%s326 + $0x18] sm:$0xf]
      %v339 = vld [vmem:[%s326 + $0x1c] sm:$0xf]
      %v340 = vld [vmem:[%s326 + $0x20] sm:$0xf]
      %v341 = vld [vmem:[%s326 + $0x24] sm:$0xf]
      %v342 = vld [vmem:[%s326 + $0x28] sm:$0xf]
      %v343 = vld [vmem:[%s326 + $0x2c] sm:$0xf]
      %v344 = vld [vmem:[%s326 + $0x30] sm:$0xf]
      %v345 = vld [vmem:[%s326 + $0x34] sm:$0xf]
      %v346 = vld [vmem:[%s326 + $0x38] sm:$0xf]
      %v347 = vld [vmem:[%s326 + $0x3c] sm:$0xf]
      %v348 = vld [vmem:[%s326 + $0x40] sm:$0xf]
      %v349 = vld [vmem:[%s326 + $0x44] sm:$0xf]
      %v350 = vld [vmem:[%s326 + $0x48] sm:$0xf]
      %v351 = vld [vmem:[%s326 + $0x4c] sm:$0xf]
      %v352 = vld [vmem:[%s326 + $0x50] sm:$0xf]
      %v353 = vld [vmem:[%s326 + $0x54] sm:$0xf]
      %v354 = vld [vmem:[%s326 + $0x58] sm:$0xf]
      %v355 = vld [vmem:[%s326 + $0x5c] sm:$0xf]
      %v356 = vld [vmem:[%s326 + $0x60] sm:$0xf]
      %v357 = vld [vmem:[%s326 + $0x64] sm:$0xf]
      %v358 = vld [vmem:[%s326 + $0x68] sm:$0xf]
      %v359 = vld [vmem:[%s326 + $0x6c] sm:$0xf]
      %v360 = vld [vmem:[%s326 + $0x70] sm:$0xf]
      %v361 = vld [vmem:[%s326 + $0x74] sm:$0xf]
      %v362 = vld [vmem:[%s326 + $0x78] sm:$0xf]
      %v363 = vld [vmem:[%s326 + $0x7c] sm:$0xf]
      %v364 = vld [vmem:[%s326 + $0x80] sm:$0xf]
      %v365 = vld [vmem:[%s326 + $0x84] sm:$0xf]
      %v366 = vld [vmem:[%s326 + $0x88] sm:$0xf]
      %v367 = vld [vmem:[%s326 + $0x8c] sm:$0xf]
      %v368 = vld [vmem:[%s326 + $0x90] sm:$0xf]
      %v369 = vld [vmem:[%s326 + $0x94] sm:$0xf]
      %v370 = vld [vmem:[%s326 + $0x98] sm:$0xf]
      %v371 = vld [vmem:[%s326 + $0x9c] sm:$0xf]
      %v372 = vld [vmem:[%s326 + $0xa0] sm:$0xf]
      %v373 = vld [vmem:[%s326 + $0xa4] sm:$0xf]
      %v374 = vld [vmem:[%s326 + $0xa8] sm:$0xf]
      %v375 = vld [vmem:[%s326 + $0xac] sm:$0xf]
      %v376 = vld [vmem:[%s326 + $0xb0] sm:$0xf]
      %v377 = vld [vmem:[%s326 + $0xb4] sm:$0xf]
      %v378 = vld [vmem:[%s326 + $0xb8] sm:$0xf]
      %v379 = vld [vmem:[%s326 + $0xbc] sm:$0xf]
      %v380 = vld [vmem:[%s326 + $0xc0] sm:$0xf]
      %v381 = vld [vmem:[%s326 + $0xc4] sm:$0xf]
      %v382 = vld [vmem:[%s326 + $0xc8] sm:$0xf]
      %v383 = vld [vmem:[%s326 + $0xcc] sm:$0xf]
      %v384 = vld [vmem:[%s326 + $0xd0] sm:$0xf]
      %v385 = vld [vmem:[%s326 + $0xd4] sm:$0xf]
      %v386 = vld [vmem:[%s326 + $0xd8] sm:$0xf]
      %v387 = vld [vmem:[%s326 + $0xdc] sm:$0xf]
      %v388 = vld [vmem:[%s326 + $0xe0] sm:$0xf]
      %v389 = vld [vmem:[%s326 + $0xe4] sm:$0xf]
      %v390 = vld [vmem:[%s326 + $0xe8] sm:$0xf]
      %v391 = vld [vmem:[%s326 + $0xec] sm:$0xf]
      %v392 = vld [vmem:[%s326 + $0xf0] sm:$0xf]
      %v393 = vld [vmem:[%s326 + $0xf4] sm:$0xf]
      %v394 = vld [vmem:[%s326 + $0xf8] sm:$0xf]
      %v395 = vld [vmem:[%s326 + $0xfc] sm:$0xf]
      %v396 = vld [vmem:[%s1] sm:$0xf]
      %v397 = vld [vmem:[%s1 + $0x4] sm:$0xf]
      %v398 = vld [vmem:[%s1 + $0x8] sm:$0xf]
      %v399 = vld [vmem:[%s1 + $0xc] sm:$0xf]
      %v400 = vld [vmem:[%s1 + $0x10] sm:$0xf]
      %v401 = vld [vmem:[%s1 + $0x14] sm:$0xf]
      %v402 = vld [vmem:[%s1 + $0x18] sm:$0xf]
      %v403 = vld [vmem:[%s1 + $0x1c] sm:$0xf]
      %v404 = vld [vmem:[%s2] sm:$0x1]
      %v406 = vperm.slane %v404, 0
      %v472 = vunpack.c.l.b16 %v332
      %v473 = vunpack.c.l.b16 %v333
      %v474 = vunpack.c.l.b16 %v334
      %v475 = vunpack.c.l.b16 %v335
      %v476 = vunpack.c.l.b16 %v336
      %v477 = vunpack.c.l.b16 %v337
      %v478 = vunpack.c.l.b16 %v338
      %v479 = vunpack.c.l.b16 %v339
      %v480 = vunpack.c.l.b16 %v340
      %v481 = vunpack.c.l.b16 %v341
      %v482 = vunpack.c.l.b16 %v342
      %v483 = vunpack.c.l.b16 %v343
      %v484 = vunpack.c.l.b16 %v344
      %v485 = vunpack.c.l.b16 %v345
      %v486 = vunpack.c.l.b16 %v346
      %v487 = vunpack.c.l.b16 %v347
      %v488 = vunpack.c.l.b16 %v348
      %v489 = vunpack.c.l.b16 %v349
      %v490 = vunpack.c.l.b16 %v350
      %v491 = vunpack.c.l.b16 %v351
      %v492 = vunpack.c.l.b16 %v352
      %v493 = vunpack.c.l.b16 %v353
      %v494 = vunpack.c.l.b16 %v354
      %v495 = vunpack.c.l.b16 %v355
      %v496 = vunpack.c.l.b16 %v356
      %v497 = vunpack.c.l.b16 %v357
      %v498 = vunpack.c.l.b16 %v358
      %v499 = vunpack.c.l.b16 %v359
      %v500 = vunpack.c.l.b16 %v360
      %v501 = vunpack.c.l.b16 %v361
      %v502 = vunpack.c.l.b16 %v362
      %v503 = vunpack.c.l.b16 %v363
      %v504 = vunpack.c.l.b16 %v364
      %v505 = vunpack.c.l.b16 %v365
      %v506 = vunpack.c.l.b16 %v366
      %v507 = vunpack.c.l.b16 %v367
      %v508 = vunpack.c.l.b16 %v368
      %v509 = vunpack.c.l.b16 %v369
      %v510 = vunpack.c.l.b16 %v370
      %v511 = vunpack.c.l.b16 %v371
      %v512 = vunpack.c.l.b16 %v372
      %v513 = vunpack.c.l.b16 %v373
      %v514 = vunpack.c.l.b16 %v374
      %v515 = vunpack.c.l.b16 %v375
      %v516 = vunpack.c.l.b16 %v376
      %v517 = vunpack.c.l.b16 %v377
      %v518 = vunpack.c.l.b16 %v378
      %v519 = vunpack.c.l.b16 %v379
      %v520 = vunpack.c.l.b16 %v380
      %v521 = vunpack.c.l.b16 %v381
      %v522 = vunpack.c.l.b16 %v382
      %v523 = vunpack.c.l.b16 %v383
      %v524 = vunpack.c.l.b16 %v384
      %v525 = vunpack.c.l.b16 %v385
      %v526 = vunpack.c.l.b16 %v386
      %v527 = vunpack.c.l.b16 %v387
      %v528 = vunpack.c.l.b16 %v388
      %v529 = vunpack.c.l.b16 %v389
      %v530 = vunpack.c.l.b16 %v390
      %v531 = vunpack.c.l.b16 %v391
      %v532 = vunpack.c.l.b16 %v392
      %v533 = vunpack.c.l.b16 %v393
      %v534 = vunpack.c.l.b16 %v394
      %v535 = vunpack.c.l.b16 %v395
      %v536 = vpack.c.b16 %v473, %v472
      %v537 = vpack.c.b16 %v475, %v474
      %v538 = vpack.c.b16 %v477, %v476
      %v539 = vpack.c.b16 %v479, %v478
      %v540 = vpack.c.b16 %v481, %v480
      %v541 = vpack.c.b16 %v483, %v482
      %v542 = vpack.c.b16 %v485, %v484
      %v543 = vpack.c.b16 %v487, %v486
      %v544 = vpack.c.b16 %v489, %v488
      %v545 = vpack.c.b16 %v491, %v490
      %v546 = vpack.c.b16 %v493, %v492
      %v547 = vpack.c.b16 %v495, %v494
      %v548 = vpack.c.b16 %v497, %v496
      %v549 = vpack.c.b16 %v499, %v498
      %v550 = vpack.c.b16 %v501, %v500
      %v551 = vpack.c.b16 %v503, %v502
      %v552 = vpack.c.b16 %v505, %v504
      %v553 = vpack.c.b16 %v507, %v506
      %v554 = vpack.c.b16 %v509, %v508
      %v555 = vpack.c.b16 %v511, %v510
      %v556 = vpack.c.b16 %v513, %v512
      %v557 = vpack.c.b16 %v515, %v514
      %v558 = vpack.c.b16 %v517, %v516
      %v559 = vpack.c.b16 %v519, %v518
      %v560 = vpack.c.b16 %v521, %v520
      %v561 = vpack.c.b16 %v523, %v522
      %v562 = vpack.c.b16 %v525, %v524
      %v563 = vpack.c.b16 %v527, %v526
      %v564 = vpack.c.b16 %v529, %v528
      %v565 = vpack.c.b16 %v531, %v530
      %v566 = vpack.c.b16 %v533, %v532
      %v567 = vpack.c.b16 %v535, %v534
      %v576 = vunpack.c.l.b16 %v396
      %v577 = vunpack.c.l.b16 %v397
      %v578 = vunpack.c.l.b16 %v398
      %v579 = vunpack.c.l.b16 %v399
      %v580 = vunpack.c.l.b16 %v400
      %v581 = vunpack.c.l.b16 %v401
      %v582 = vunpack.c.l.b16 %v402
      %v583 = vunpack.c.l.b16 %v403
      %v584 = vpack.c.b16 %v577, %v576
      %v585 = vpack.c.b16 %v579, %v578
      %v586 = vpack.c.b16 %v581, %v580
      %v587 = vpack.c.b16 %v583, %v582
      %vm592 = vcmask 523264
      %v594 = vsel %vm592, %v536, 0
      %v597 = vsel %vm592, %v537, 0
      %v600 = vsel %vm592, %v538, 0
      %v603 = vsel %vm592, %v539, 0
      %v606 = vsel %vm592, %v540, 0
      %v609 = vsel %vm592, %v541, 0
      %v612 = vsel %vm592, %v542, 0
      %v615 = vsel %vm592, %v543, 0
      %v618 = vsel %vm592, %v544, 0
      %v621 = vsel %vm592, %v545, 0
      %v624 = vsel %vm592, %v546, 0
      %v627 = vsel %vm592, %v547, 0
      %v630 = vsel %vm592, %v548, 0
      %v633 = vsel %vm592, %v549, 0
      %v636 = vsel %vm592, %v550, 0
      %v639 = vsel %vm592, %v551, 0
      %v642 = vsel %vm592, %v552, 0
      %v645 = vsel %vm592, %v553, 0
      %v648 = vsel %vm592, %v554, 0
      %v651 = vsel %vm592, %v555, 0
      %v654 = vsel %vm592, %v556, 0
      %v657 = vsel %vm592, %v557, 0
      %v660 = vsel %vm592, %v558, 0
      %v663 = vsel %vm592, %v559, 0
      %v666 = vsel %vm592, %v560, 0
      %v669 = vsel %vm592, %v561, 0
      %v672 = vsel %vm592, %v562, 0
      %v675 = vsel %vm592, %v563, 0
      %v678 = vsel %vm592, %v564, 0
      %v681 = vsel %vm592, %v565, 0
      %v684 = vsel %vm592, %v566, 0
      %v687 = vsel %vm592, %v567, 0
      %689 = vmatpush.bf16.msra.mxu0 0
      %690 = vmatpush.bf16.msra.mxu0 0
      %691 = vmatpush.bf16.msra.mxu0 0
      %692 = vmatpush.bf16.msra.mxu0 0
      %693 = vmatpush.bf16.msra.mxu0 %v587
      %694 = vmatpush.bf16.msra.mxu0 %v586
      %695 = vmatpush.bf16.msra.mxu0 %v585
      %696 = vmatpush.bf16.msra.mxu0 %v584
      %697 = vmatmul.bf16.gmra.mxu0 %v594
      %v698 = vpop.f32.mrf.mxu0
      %v699 = vadd.f32 %v406, %v698
      %v700 = vpop.f32.mrf.mxu0
      %v701 = vadd.f32 %v406, %v700
      %702 = vmatmul.bf16.gmra.mxu0 %v597
      %v703 = vpop.f32.mrf.mxu0
      %v704 = vadd.f32 %v406, %v703
      %v705 = vpop.f32.mrf.mxu0
      %v706 = vadd.f32 %v406, %v705
      %707 = vmatmul.bf16.gmra.mxu0 %v600
      %v708 = vpop.f32.mrf.mxu0
      %v709 = vadd.f32 %v406, %v708
      %v710 = vpop.f32.mrf.mxu0
      %v711 = vadd.f32 %v406, %v710
      %712 = vmatmul.bf16.gmra.mxu0 %v603
      %v713 = vpop.f32.mrf.mxu0
      %v714 = vadd.f32 %v406, %v713
      %v715 = vpop.f32.mrf.mxu0
      %v716 = vadd.f32 %v406, %v715
      %717 = vmatmul.bf16.gmra.mxu0 %v606
      %v718 = vpop.f32.mrf.mxu0
      %v719 = vadd.f32 %v406, %v718
      %v720 = vpop.f32.mrf.mxu0
      %v721 = vadd.f32 %v406, %v720
      %722 = vmatmul.bf16.gmra.mxu0 %v609
      %v723 = vpop.f32.mrf.mxu0
      %v724 = vadd.f32 %v406, %v723
      %v725 = vpop.f32.mrf.mxu0
      %v726 = vadd.f32 %v406, %v725
      %727 = vmatmul.bf16.gmra.mxu0 %v612
      %v728 = vpop.f32.mrf.mxu0
      %v729 = vadd.f32 %v406, %v728
      %v730 = vpop.f32.mrf.mxu0
      %v731 = vadd.f32 %v406, %v730
      %732 = vmatmul.bf16.gmra.mxu0 %v615
      %v733 = vpop.f32.mrf.mxu0
      %v734 = vadd.f32 %v406, %v733
      %v735 = vpop.f32.mrf.mxu0
      %v736 = vadd.f32 %v406, %v735
      %737 = vmatmul.bf16.gmra.mxu0 %v618
      %v738 = vpop.f32.mrf.mxu0
      %v739 = vadd.f32 %v406, %v738
      %v740 = vpop.f32.mrf.mxu0
      %v741 = vadd.f32 %v406, %v740
      %742 = vmatmul.bf16.gmra.mxu0 %v621
      %v743 = vpop.f32.mrf.mxu0
      %v744 = vadd.f32 %v406, %v743
      %v745 = vpop.f32.mrf.mxu0
      %v746 = vadd.f32 %v406, %v745
      %747 = vmatmul.bf16.gmra.mxu0 %v624
      %v748 = vpop.f32.mrf.mxu0
      %v749 = vadd.f32 %v406, %v748
      %v750 = vpop.f32.mrf.mxu0
      %v751 = vadd.f32 %v406, %v750
      %752 = vmatmul.bf16.gmra.mxu0 %v627
      %v753 = vpop.f32.mrf.mxu0
      %v754 = vadd.f32 %v406, %v753
      %v755 = vpop.f32.mrf.mxu0
      %v756 = vadd.f32 %v406, %v755
      %757 = vmatmul.bf16.gmra.mxu0 %v630
      %v758 = vpop.f32.mrf.mxu0
      %v759 = vadd.f32 %v406, %v758
      %v760 = vpop.f32.mrf.mxu0
      %v761 = vadd.f32 %v406, %v760
      %762 = vmatmul.bf16.gmra.mxu0 %v633
      %v763 = vpop.f32.mrf.mxu0
      %v764 = vadd.f32 %v406, %v763
      %v765 = vpop.f32.mrf.mxu0
      %v766 = vadd.f32 %v406, %v765
      %767 = vmatmul.bf16.gmra.mxu0 %v636
      %v768 = vpop.f32.mrf.mxu0
      %v769 = vadd.f32 %v406, %v768
      %v770 = vpop.f32.mrf.mxu0
      %v771 = vadd.f32 %v406, %v770
      %772 = vmatmul.bf16.gmra.mxu0 %v639
      %v773 = vpop.f32.mrf.mxu0
      %v774 = vadd.f32 %v406, %v773
      %v775 = vpop.f32.mrf.mxu0
      %v776 = vadd.f32 %v406, %v775
      %777 = vmatmul.bf16.gmra.mxu0 %v642
      %v778 = vpop.f32.mrf.mxu0
      %v779 = vadd.f32 %v406, %v778
      %v780 = vpop.f32.mrf.mxu0
      %v781 = vadd.f32 %v406, %v780
      %782 = vmatmul.bf16.gmra.mxu0 %v645
      %v783 = vpop.f32.mrf.mxu0
      %v784 = vadd.f32 %v406, %v783
      %v785 = vpop.f32.mrf.mxu0
      %v786 = vadd.f32 %v406, %v785
      %787 = vmatmul.bf16.gmra.mxu0 %v648
      %v788 = vpop.f32.mrf.mxu0
      %v789 = vadd.f32 %v406, %v788
      %v790 = vpop.f32.mrf.mxu0
      %v791 = vadd.f32 %v406, %v790
      %792 = vmatmul.bf16.gmra.mxu0 %v651
      %v793 = vpop.f32.mrf.mxu0
      %v794 = vadd.f32 %v406, %v793
      %v795 = vpop.f32.mrf.mxu0
      %v796 = vadd.f32 %v406, %v795
      %797 = vmatmul.bf16.gmra.mxu0 %v654
      %v798 = vpop.f32.mrf.mxu0
      %v799 = vadd.f32 %v406, %v798
      %v800 = vpop.f32.mrf.mxu0
      %v801 = vadd.f32 %v406, %v800
      %802 = vmatmul.bf16.gmra.mxu0 %v657
      %v803 = vpop.f32.mrf.mxu0
      %v804 = vadd.f32 %v406, %v803
      %v805 = vpop.f32.mrf.mxu0
      %v806 = vadd.f32 %v406, %v805
      %807 = vmatmul.bf16.gmra.mxu0 %v660
      %v808 = vpop.f32.mrf.mxu0
      %v809 = vadd.f32 %v406, %v808
      %v810 = vpop.f32.mrf.mxu0
      %v811 = vadd.f32 %v406, %v810
      %812 = vmatmul.bf16.gmra.mxu0 %v663
      %v813 = vpop.f32.mrf.mxu0
      %v814 = vadd.f32 %v406, %v813
      %v815 = vpop.f32.mrf.mxu0
      %v816 = vadd.f32 %v406, %v815
      %817 = vmatmul.bf16.gmra.mxu0 %v666
      %v818 = vpop.f32.mrf.mxu0
      %v819 = vadd.f32 %v406, %v818
      %v820 = vpop.f32.mrf.mxu0
      %v821 = vadd.f32 %v406, %v820
      %822 = vmatmul.bf16.gmra.mxu0 %v669
      %v823 = vpop.f32.mrf.mxu0
      %v824 = vadd.f32 %v406, %v823
      %v825 = vpop.f32.mrf.mxu0
      %v826 = vadd.f32 %v406, %v825
      %827 = vmatmul.bf16.gmra.mxu0 %v672
      %v828 = vpop.f32.mrf.mxu0
      %v829 = vadd.f32 %v406, %v828
      %v830 = vpop.f32.mrf.mxu0
      %v831 = vadd.f32 %v406, %v830
      %832 = vmatmul.bf16.gmra.mxu0 %v675
      %v833 = vpop.f32.mrf.mxu0
      %v834 = vadd.f32 %v406, %v833
      %v835 = vpop.f32.mrf.mxu0
      %v836 = vadd.f32 %v406, %v835
      %837 = vmatmul.bf16.gmra.mxu0 %v678
      %v838 = vpop.f32.mrf.mxu0
      %v839 = vadd.f32 %v406, %v838
      %v840 = vpop.f32.mrf.mxu0
      %v841 = vadd.f32 %v406, %v840
      %842 = vmatmul.bf16.gmra.mxu0 %v681
      %v843 = vpop.f32.mrf.mxu0
      %v844 = vadd.f32 %v406, %v843
      %v845 = vpop.f32.mrf.mxu0
      %v846 = vadd.f32 %v406, %v845
      %847 = vmatmul.bf16.gmra.mxu0 %v684
      %v848 = vpop.f32.mrf.mxu0
      %v849 = vadd.f32 %v406, %v848
      %v850 = vpop.f32.mrf.mxu0
      %v851 = vadd.f32 %v406, %v850
      %852 = vmatmul.bf16.gmra.mxu0 %v687
      %v853 = vpop.f32.mrf.mxu0
      %v854 = vadd.f32 %v406, %v853
      %v855 = vpop.f32.mrf.mxu0
      %v856 = vadd.f32 %v406, %v855
      %857 = vdwg.mxu0
      %v858 = vmax.f32 %v699, 0.0
      %v859 = vmax.f32 %v701, 0.0
      %v860 = vmax.f32 %v704, 0.0
      %v861 = vmax.f32 %v706, 0.0
      %v862 = vmax.f32 %v709, 0.0
      %v863 = vmax.f32 %v711, 0.0
      %v864 = vmax.f32 %v714, 0.0
      %v865 = vmax.f32 %v716, 0.0
      %v866 = vmax.f32 %v719, 0.0
      %v867 = vmax.f32 %v721, 0.0
      %v868 = vmax.f32 %v724, 0.0
      %v869 = vmax.f32 %v726, 0.0
      %v870 = vmax.f32 %v729, 0.0
      %v871 = vmax.f32 %v731, 0.0
      %v872 = vmax.f32 %v734, 0.0
      %v873 = vmax.f32 %v736, 0.0
      %v874 = vmax.f32 %v739, 0.0
      %v875 = vmax.f32 %v741, 0.0
      %v876 = vmax.f32 %v744, 0.0
      %v877 = vmax.f32 %v746, 0.0
      %v878 = vmax.f32 %v749, 0.0
      %v879 = vmax.f32 %v751, 0.0
      %v880 = vmax.f32 %v754, 0.0
      %v881 = vmax.f32 %v756, 0.0
      %v882 = vmax.f32 %v759, 0.0
      %v883 = vmax.f32 %v761, 0.0
      %v884 = vmax.f32 %v764, 0.0
      %v885 = vmax.f32 %v766, 0.0
      %v886 = vmax.f32 %v769, 0.0
      %v887 = vmax.f32 %v771, 0.0
      %v888 = vmax.f32 %v774, 0.0
      %v889 = vmax.f32 %v776, 0.0
      %v890 = vmax.f32 %v779, 0.0
      %v891 = vmax.f32 %v781, 0.0
      %v892 = vmax.f32 %v784, 0.0
      %v893 = vmax.f32 %v786, 0.0
      %v894 = vmax.f32 %v789, 0.0
      %v895 = vmax.f32 %v791, 0.0
      %v896 = vmax.f32 %v794, 0.0
      %v897 = vmax.f32 %v796, 0.0
      %v898 = vmax.f32 %v799, 0.0
      %v899 = vmax.f32 %v801, 0.0
      %v900 = vmax.f32 %v804, 0.0
      %v901 = vmax.f32 %v806, 0.0
      %v902 = vmax.f32 %v809, 0.0
      %v903 = vmax.f32 %v811, 0.0
      %v904 = vmax.f32 %v814, 0.0
      %v905 = vmax.f32 %v816, 0.0
      %v906 = vmax.f32 %v819, 0.0
      %v907 = vmax.f32 %v821, 0.0
      %v908 = vmax.f32 %v824, 0.0
      %v909 = vmax.f32 %v826, 0.0
      %v910 = vmax.f32 %v829, 0.0
      %v911 = vmax.f32 %v831, 0.0
      %v912 = vmax.f32 %v834, 0.0
      %v913 = vmax.f32 %v836, 0.0
      %v914 = vmax.f32 %v839, 0.0
      %v915 = vmax.f32 %v841, 0.0
      %v916 = vmax.f32 %v844, 0.0
      %v917 = vmax.f32 %v846, 0.0
      %v918 = vmax.f32 %v849, 0.0
      %v919 = vmax.f32 %v851, 0.0
      %v920 = vmax.f32 %v854, 0.0
      %v921 = vmax.f32 %v856, 0.0
      %v922 = vmax.f32 %v858, %v866
      %v923 = vmax.f32 %v859, %v867
      %v924 = vmax.f32 %v860, %v868
      %v925 = vmax.f32 %v861, %v869
      %v926 = vmax.f32 %v862, %v870
      %v927 = vmax.f32 %v863, %v871
      %v928 = vmax.f32 %v864, %v872
      %v929 = vmax.f32 %v865, %v873
      %v930 = vmax.f32 %v922, %v874
      %v931 = vmax.f32 %v923, %v875
      %v932 = vmax.f32 %v924, %v876
      %v933 = vmax.f32 %v925, %v877
      %v934 = vmax.f32 %v926, %v878
      %v935 = vmax.f32 %v927, %v879
      %v936 = vmax.f32 %v928, %v880
      %v937 = vmax.f32 %v929, %v881
      %v938 = vmax.f32 %v930, %v882
      %v939 = vmax.f32 %v931, %v883
      %v940 = vmax.f32 %v932, %v884
      %v941 = vmax.f32 %v933, %v885
      %v942 = vmax.f32 %v934, %v886
      %v943 = vmax.f32 %v935, %v887
      %v944 = vmax.f32 %v936, %v888
      %v945 = vmax.f32 %v937, %v889
      %v946 = vmax.f32 %v938, %v890
      %v947 = vmax.f32 %v939, %v891
      %v948 = vmax.f32 %v940, %v892
      %v949 = vmax.f32 %v941, %v893
      %v950 = vmax.f32 %v942, %v894
      %v951 = vmax.f32 %v943, %v895
      %v952 = vmax.f32 %v944, %v896
      %v953 = vmax.f32 %v945, %v897
      %v954 = vmax.f32 %v946, %v898
      %v955 = vmax.f32 %v947, %v899
      %v956 = vmax.f32 %v948, %v900
      %v957 = vmax.f32 %v949, %v901
      %v958 = vmax.f32 %v950, %v902
      %v959 = vmax.f32 %v951, %v903
      %v960 = vmax.f32 %v952, %v904
      %v961 = vmax.f32 %v953, %v905
      %v962 = vmax.f32 %v954, %v906
      %v963 = vmax.f32 %v955, %v907
      %v964 = vmax.f32 %v956, %v908
      %v965 = vmax.f32 %v957, %v909
      %v966 = vmax.f32 %v958, %v910
      %v967 = vmax.f32 %v959, %v911
      %v968 = vmax.f32 %v960, %v912
      %v969 = vmax.f32 %v961, %v913
      %v970 = vmax.f32 %v962, %v914
      %v971 = vmax.f32 %v963, %v915
      %v972 = vmax.f32 %v964, %v916
      %v973 = vmax.f32 %v965, %v917
      %v974 = vmax.f32 %v966, %v918
      %v975 = vmax.f32 %v967, %v919
      %v976 = vmax.f32 %v968, %v920
      %v977 = vmax.f32 %v969, %v921
      %978 = vst.msk [vmem:[#allocation2] sm:$0xff] %vm592, 0.0
      %979 = vst.msk [vmem:[#allocation2 + $0x8] sm:$0xff] %vm592, 0.0
      %980 = vst.msk [vmem:[#allocation2 + $0x10] sm:$0xff] %vm592, 0.0
      %981 = vst.msk [vmem:[#allocation2 + $0x18] sm:$0xff] %vm592, 0.0
      %982 = vst.msk [vmem:[#allocation2 + $0x20] sm:$0xff] %vm592, 0.0
      %983 = vst.msk [vmem:[#allocation2 + $0x28] sm:$0xff] %vm592, 0.0
      %984 = vst.msk [vmem:[#allocation2 + $0x30] sm:$0xff] %vm592, 0.0
      %985 = vst.msk [vmem:[#allocation2 + $0x38] sm:$0xff] %vm592, 0.0
      %986 = vst.msk [vmem:[#allocation2 + $0x40] sm:$0xff] %vm592, 0.0
      %987 = vst.msk [vmem:[#allocation2 + $0x48] sm:$0xff] %vm592, 0.0
      %988 = vst.msk [vmem:[#allocation2 + $0x50] sm:$0xff] %vm592, 0.0
      %989 = vst.msk [vmem:[#allocation2 + $0x58] sm:$0xff] %vm592, 0.0
      %990 = vst.msk [vmem:[#allocation2 + $0x60] sm:$0xff] %vm592, 0.0
      %991 = vst.msk [vmem:[#allocation2 + $0x68] sm:$0xff] %vm592, 0.0
      %992 = vst.msk [vmem:[#allocation2 + $0x70] sm:$0xff] %vm592, 0.0
      %993 = vst.msk [vmem:[#allocation2 + $0x78] sm:$0xff] %vm592, 0.0
      %994 = vst.msk [vmem:[#allocation2 + $0x80] sm:$0xff] %vm592, 0.0
      %995 = vst.msk [vmem:[#allocation2 + $0x88] sm:$0xff] %vm592, 0.0
      %996 = vst.msk [vmem:[#allocation2 + $0x90] sm:$0xff] %vm592, 0.0
      %997 = vst.msk [vmem:[#allocation2 + $0x98] sm:$0xff] %vm592, 0.0
      %998 = vst.msk [vmem:[#allocation2 + $0xa0] sm:$0xff] %vm592, 0.0
      %999 = vst.msk [vmem:[#allocation2 + $0xa8] sm:$0xff] %vm592, 0.0
      %1000 = vst.msk [vmem:[#allocation2 + $0xb0] sm:$0xff] %vm592, 0.0
      %1001 = vst.msk [vmem:[#allocation2 + $0xb8] sm:$0xff] %vm592, 0.0
      %1002 = vst.msk [vmem:[#allocation2 + $0xc0] sm:$0xff] %vm592, 0.0
      %1003 = vst.msk [vmem:[#allocation2 + $0xc8] sm:$0xff] %vm592, 0.0
      %1004 = vst.msk [vmem:[#allocation2 + $0xd0] sm:$0xff] %vm592, 0.0
      %1005 = vst.msk [vmem:[#allocation2 + $0xd8] sm:$0xff] %vm592, 0.0
      %1006 = vst.msk [vmem:[#allocation2 + $0xe0] sm:$0xff] %vm592, 0.0
      %vm1007 = vcmask 519168
      %1008 = vst.msk [vmem:[#allocation2 + $0x2b] sm:$0xf] %vm1007, %v970
      %vm1009 = vcmask 523268
      %1010 = vst.msk [vmem:[#allocation2 + $0x2d] sm:$0xf0] %vm1009, %v970
      %1011 = vst.msk [vmem:[#allocation2 + $0x37] sm:$0xf] %vm1007, %v971
      %1012 = vst.msk [vmem:[#allocation2 + $0x39] sm:$0xf0] %vm1009, %v971
      %1013 = vst.msk [vmem:[#allocation2 + $0x4f] sm:$0xf] %vm1007, %v972
      %1014 = vst.msk [vmem:[#allocation2 + $0x51] sm:$0xf0] %vm1009, %v972
      %1015 = vst.msk [vmem:[#allocation2 + $0x5b] sm:$0xf] %vm1007, %v973
      %1016 = vst.msk [vmem:[#allocation2 + $0x5d] sm:$0xf0] %vm1009, %v973
      %1017 = vst.msk [vmem:[#allocation2 + $0x73] sm:$0xf] %vm1007, %v974
      %1018 = vst.msk [vmem:[#allocation2 + $0x75] sm:$0xf0] %vm1009, %v974
      %1019 = vst.msk [vmem:[#allocation2 + $0x7f] sm:$0xf] %vm1007, %v975
      %1020 = vst.msk [vmem:[#allocation2 + $0x81] sm:$0xf0] %vm1009, %v975
      %1021 = vst.msk [vmem:[#allocation2 + $0x97] sm:$0xf] %vm1007, %v976
      %1022 = vst.msk [vmem:[#allocation2 + $0x99] sm:$0xf0] %vm1009, %v976
      %1023 = vst.msk [vmem:[#allocation2 + $0xa3] sm:$0xf] %vm1007, %v977
      %1024 = vst.msk [vmem:[#allocation2 + $0xa5] sm:$0xf0] %vm1009, %v977
      %v1025 = vld [vmem:[#allocation2] sm:$0xff]
      %v1026 = vld [vmem:[#allocation2 + $0x8] sm:$0xff]
      %v1027 = vld [vmem:[#allocation2 + $0x10] sm:$0xff]
      %v1028 = vld [vmem:[#allocation2 + $0x18] sm:$0xff]
      %v1029 = vld [vmem:[#allocation2 + $0x20] sm:$0xff]
      %v1030 = vld [vmem:[#allocation2 + $0x28] sm:$0xff]
      %v1031 = vld [vmem:[#allocation2 + $0x30] sm:$0xff]
      %v1032 = vld [vmem:[#allocation2 + $0x38] sm:$0xff]
      %v1033 = vld [vmem:[#allocation2 + $0x40] sm:$0xff]
      %v1034 = vld [vmem:[#allocation2 + $0x48] sm:$0xff]
      %v1035 = vld [vmem:[#allocation2 + $0x50] sm:$0xff]
      %v1036 = vld [vmem:[#allocation2 + $0x58] sm:$0xff]
      %v1037 = vld [vmem:[#allocation2 + $0x60] sm:$0xff]
      %v1038 = vld [vmem:[#allocation2 + $0x68] sm:$0xff]
      %v1039 = vld [vmem:[#allocation2 + $0x70] sm:$0xff]
      %v1040 = vld [vmem:[#allocation2 + $0x78] sm:$0xff]
      %v1041 = vld [vmem:[#allocation2 + $0x80] sm:$0xff]
      %v1042 = vld [vmem:[#allocation2 + $0x88] sm:$0xff]
      %v1043 = vld [vmem:[#allocation2 + $0x90] sm:$0xff]
      %v1044 = vld [vmem:[#allocation2 + $0x98] sm:$0xff]
      %v1045 = vld [vmem:[#allocation2 + $0xa0] sm:$0xff]
      %v1046 = vld [vmem:[#allocation2 + $0xa8] sm:$0xff]
      %v1047 = vld [vmem:[#allocation2 + $0xb0] sm:$0xff]
      %v1048 = vld [vmem:[#allocation2 + $0xb8] sm:$0xff]
      %v1049 = vld [vmem:[#allocation2 + $0xc0] sm:$0xff]
      %v1050 = vld [vmem:[#allocation2 + $0xc8] sm:$0xff]
      %v1051 = vld [vmem:[#allocation2 + $0xd0] sm:$0xff]
      %v1052 = vld [vmem:[#allocation2 + $0xd8] sm:$0xff]
      %v1053 = vld [vmem:[#allocation2 + $0x1] sm:$0xff]
      %v1054 = vld [vmem:[#allocation2 + $0x9] sm:$0xff]
      %v1055 = vld [vmem:[#allocation2 + $0x11] sm:$0xff]
      %v1056 = vld [vmem:[#allocation2 + $0x19] sm:$0xff]
      %v1057 = vld [vmem:[#allocation2 + $0x21] sm:$0xff]
      %v1058 = vld [vmem:[#allocation2 + $0x29] sm:$0xff]
      %v1059 = vld [vmem:[#allocation2 + $0x31] sm:$0xff]
      %v1060 = vld [vmem:[#allocation2 + $0x39] sm:$0xff]
      %v1061 = vld [vmem:[#allocation2 + $0x41] sm:$0xff]
      %v1062 = vld [vmem:[#allocation2 + $0x49] sm:$0xff]
      %v1063 = vld [vmem:[#allocation2 + $0x51] sm:$0xff]
      %v1064 = vld [vmem:[#allocation2 + $0x59] sm:$0xff]
      %v1065 = vld [vmem:[#allocation2 + $0x61] sm:$0xff]
      %v1066 = vld [vmem:[#allocation2 + $0x69] sm:$0xff]
      %v1067 = vld [vmem:[#allocation2 + $0x71] sm:$0xff]
      %v1068 = vld [vmem:[#allocation2 + $0x79] sm:$0xff]
      %v1069 = vld [vmem:[#allocation2 + $0x81] sm:$0xff]
      %v1070 = vld [vmem:[#allocation2 + $0x89] sm:$0xff]
      %v1071 = vld [vmem:[#allocation2 + $0x91] sm:$0xff]
      %v1072 = vld [vmem:[#allocation2 + $0x99] sm:$0xff]
      %v1073 = vld [vmem:[#allocation2 + $0xa1] sm:$0xff]
      %v1074 = vld [vmem:[#allocation2 + $0xa9] sm:$0xff]
      %v1075 = vld [vmem:[#allocation2 + $0xb1] sm:$0xff]
      %v1076 = vld [vmem:[#allocation2 + $0xb9] sm:$0xff]
      %v1077 = vld [vmem:[#allocation2 + $0xc1] sm:$0xff]
      %v1078 = vld [vmem:[#allocation2 + $0xc9] sm:$0xff]
      %v1079 = vld [vmem:[#allocation2 + $0xd1] sm:$0xff]
      %v1080 = vld [vmem:[#allocation2 + $0xd9] sm:$0xff]
      %v1081 = vld [vmem:[#allocation2 + $0x2] sm:$0xff]
      %v1082 = vld [vmem:[#allocation2 + $0xa] sm:$0xff]
      %v1083 = vld [vmem:[#allocation2 + $0x12] sm:$0xff]
      %v1084 = vld [vmem:[#allocation2 + $0x1a] sm:$0xff]
      %v1085 = vld [vmem:[#allocation2 + $0x22] sm:$0xff]
      %v1086 = vld [vmem:[#allocation2 + $0x2a] sm:$0xff]
      %v1087 = vld [vmem:[#allocation2 + $0x32] sm:$0xff]
      %v1088 = vld [vmem:[#allocation2 + $0x3a] sm:$0xff]
      %v1089 = vld [vmem:[#allocation2 + $0x42] sm:$0xff]
      %v1090 = vld [vmem:[#allocation2 + $0x4a] sm:$0xff]
      %v1091 = vld [vmem:[#allocation2 + $0x52] sm:$0xff]
      %v1092 = vld [vmem:[#allocation2 + $0x5a] sm:$0xff]
      %v1093 = vld [vmem:[#allocation2 + $0x62] sm:$0xff]
      %v1094 = vld [vmem:[#allocation2 + $0x6a] sm:$0xff]
      %v1095 = vld [vmem:[#allocation2 + $0x72] sm:$0xff]
      %v1096 = vld [vmem:[#allocation2 + $0x7a] sm:$0xff]
      %v1097 = vld [vmem:[#allocation2 + $0x82] sm:$0xff]
      %v1098 = vld [vmem:[#allocation2 + $0x8a] sm:$0xff]
      %v1099 = vld [vmem:[#allocation2 + $0x92] sm:$0xff]
      %v1100 = vld [vmem:[#allocation2 + $0x9a] sm:$0xff]
      %v1101 = vld [vmem:[#allocation2 + $0xa2] sm:$0xff]
      %v1102 = vld [vmem:[#allocation2 + $0xaa] sm:$0xff]
      %v1103 = vld [vmem:[#allocation2 + $0xb2] sm:$0xff]
      %v1104 = vld [vmem:[#allocation2 + $0xba] sm:$0xff]
      %v1105 = vld [vmem:[#allocation2 + $0xc2] sm:$0xff]
      %v1106 = vld [vmem:[#allocation2 + $0xca] sm:$0xff]
      %v1107 = vld [vmem:[#allocation2 + $0xd2] sm:$0xff]
      %v1108 = vld [vmem:[#allocation2 + $0xda] sm:$0xff]
      %1137 = vrot.lane.b32.xlu0 %v1053, 64
      %v1138 = vpop.permute.xlu0 %1137
      %1139 = vrot.lane.b32.xlu0 %v1054, 64
      %v1140 = vpop.permute.xlu0 %1139
      %1141 = vrot.lane.b32.xlu0 %v1055, 64
      %v1142 = vpop.permute.xlu0 %1141
      %1143 = vrot.lane.b32.xlu0 %v1056, 64
      %v1144 = vpop.permute.xlu0 %1143
      %1145 = vrot.lane.b32.xlu0 %v1057, 64
      %v1146 = vpop.permute.xlu0 %1145
      %1147 = vrot.lane.b32.xlu0 %v1058, 64
      %v1148 = vpop.permute.xlu0 %1147
      %1149 = vrot.lane.b32.xlu0 %v1059, 64
      %v1150 = vpop.permute.xlu0 %1149
      %1151 = vrot.lane.b32.xlu0 %v1060, 64
      %v1152 = vpop.permute.xlu0 %1151
      %1153 = vrot.lane.b32.xlu0 %v1061, 64
      %v1154 = vpop.permute.xlu0 %1153
      %1155 = vrot.lane.b32.xlu0 %v1062, 64
      %v1156 = vpop.permute.xlu0 %1155
      %1157 = vrot.lane.b32.xlu0 %v1063, 64
      %v1158 = vpop.permute.xlu0 %1157
      %1159 = vrot.lane.b32.xlu0 %v1064, 64
      %v1160 = vpop.permute.xlu0 %1159
      %1161 = vrot.lane.b32.xlu0 %v1065, 64
      %v1162 = vpop.permute.xlu0 %1161
      %1163 = vrot.lane.b32.xlu0 %v1066, 64
      %v1164 = vpop.permute.xlu0 %1163
      %1165 = vrot.lane.b32.xlu0 %v1067, 64
      %v1166 = vpop.permute.xlu0 %1165
      %1167 = vrot.lane.b32.xlu0 %v1068, 64
      %v1168 = vpop.permute.xlu0 %1167
      %1169 = vrot.lane.b32.xlu0 %v1069, 64
      %v1170 = vpop.permute.xlu0 %1169
      %1171 = vrot.lane.b32.xlu0 %v1070, 64
      %v1172 = vpop.permute.xlu0 %1171
      %1173 = vrot.lane.b32.xlu0 %v1071, 64
      %v1174 = vpop.permute.xlu0 %1173
      %1175 = vrot.lane.b32.xlu0 %v1072, 64
      %v1176 = vpop.permute.xlu0 %1175
      %1177 = vrot.lane.b32.xlu0 %v1073, 64
      %v1178 = vpop.permute.xlu0 %1177
      %1179 = vrot.lane.b32.xlu0 %v1074, 64
      %v1180 = vpop.permute.xlu0 %1179
      %1181 = vrot.lane.b32.xlu0 %v1075, 64
      %v1182 = vpop.permute.xlu0 %1181
      %1183 = vrot.lane.b32.xlu0 %v1076, 64
      %v1184 = vpop.permute.xlu0 %1183
      %1185 = vrot.lane.b32.xlu0 %v1077, 64
      %v1186 = vpop.permute.xlu0 %1185
      %1187 = vrot.lane.b32.xlu0 %v1078, 64
      %v1188 = vpop.permute.xlu0 %1187
      %1189 = vrot.lane.b32.xlu0 %v1079, 64
      %v1190 = vpop.permute.xlu0 %1189
      %1191 = vrot.lane.b32.xlu0 %v1080, 64
      %v1192 = vpop.permute.xlu0 %1191
      %v1221 = vsel %vm592, %v1025, %v1138
      %v1222 = vsel %vm592, %v1026, %v1140
      %v1223 = vsel %vm592, %v1027, %v1142
      %v1224 = vsel %vm592, %v1028, %v1144
      %v1225 = vsel %vm592, %v1029, %v1146
      %v1226 = vsel %vm592, %v1030, %v1148
      %v1227 = vsel %vm592, %v1031, %v1150
      %v1228 = vsel %vm592, %v1032, %v1152
      %v1229 = vsel %vm592, %v1033, %v1154
      %v1230 = vsel %vm592, %v1034, %v1156
      %v1231 = vsel %vm592, %v1035, %v1158
      %v1232 = vsel %vm592, %v1036, %v1160
      %v1233 = vsel %vm592, %v1037, %v1162
      %v1234 = vsel %vm592, %v1038, %v1164
      %v1235 = vsel %vm592, %v1039, %v1166
      %v1236 = vsel %vm592, %v1040, %v1168
      %v1237 = vsel %vm592, %v1041, %v1170
      %v1238 = vsel %vm592, %v1042, %v1172
      %v1239 = vsel %vm592, %v1043, %v1174
      %v1240 = vsel %vm592, %v1044, %v1176
      %v1241 = vsel %vm592, %v1045, %v1178
      %v1242 = vsel %vm592, %v1046, %v1180
      %v1243 = vsel %vm592, %v1047, %v1182
      %v1244 = vsel %vm592, %v1048, %v1184
      %v1245 = vsel %vm592, %v1049, %v1186
      %v1246 = vsel %vm592, %v1050, %v1188
      %v1247 = vsel %vm592, %v1051, %v1190
      %v1248 = vsel %vm592, %v1052, %v1192
      %v1249 = vpack.c.bf16 %v1081, %v1221
      %v1250 = vpack.c.bf16 %v1082, %v1222
      %v1251 = vpack.c.bf16 %v1083, %v1223
      %v1252 = vpack.c.bf16 %v1084, %v1224
      %v1253 = vpack.c.bf16 %v1085, %v1225
      %v1254 = vpack.c.bf16 %v1086, %v1226
      %v1255 = vpack.c.bf16 %v1087, %v1227
      %v1256 = vpack.c.bf16 %v1088, %v1228
      %v1257 = vpack.c.bf16 %v1089, %v1229
      %v1258 = vpack.c.bf16 %v1090, %v1230
      %v1259 = vpack.c.bf16 %v1091, %v1231
      %v1260 = vpack.c.bf16 %v1092, %v1232
      %v1261 = vpack.c.bf16 %v1093, %v1233
      %v1262 = vpack.c.bf16 %v1094, %v1234
      %v1263 = vpack.c.bf16 %v1095, %v1235
      %v1264 = vpack.c.bf16 %v1096, %v1236
      %v1265 = vpack.c.bf16 %v1097, %v1237
      %v1266 = vpack.c.bf16 %v1098, %v1238
      %v1267 = vpack.c.bf16 %v1099, %v1239
      %v1268 = vpack.c.bf16 %v1100, %v1240
      %v1269 = vpack.c.bf16 %v1101, %v1241
      %v1270 = vpack.c.bf16 %v1102, %v1242
      %v1271 = vpack.c.bf16 %v1103, %v1243
      %v1272 = vpack.c.bf16 %v1104, %v1244
      %v1273 = vpack.c.bf16 %v1105, %v1245
      %v1274 = vpack.c.bf16 %v1106, %v1246
      %v1275 = vpack.c.bf16 %v1107, %v1247
      %v1276 = vpack.c.bf16 %v1108, %v1248
      %vm1277 = vcmask 1043456
      %vm1278 = vmor %vm1009, %vm1277
      %1279 = vst.msk [vmem:[#allocation3] sm:$0xff] %vm1278, %v1249
      %1280 = vst.msk [vmem:[#allocation3 + $0x8] sm:$0xff] %vm1278, %v1250
      %1281 = vst.msk [vmem:[#allocation3 + $0x10] sm:$0xff] %vm1278, %v1251
      %1282 = vst.msk [vmem:[#allocation3 + $0x18] sm:$0xff] %vm1278, %v1252
      %1283 = vst.msk [vmem:[#allocation3 + $0x20] sm:$0xff] %vm1278, %v1253
      %1284 = vst.msk [vmem:[#allocation3 + $0x28] sm:$0xff] %vm1278, %v1254
      %1285 = vst.msk [vmem:[#allocation3 + $0x30] sm:$0xff] %vm1278, %v1255
      %1286 = vst.msk [vmem:[#allocation3 + $0x38] sm:$0xff] %vm1278, %v1256
      %1287 = vst.msk [vmem:[#allocation3 + $0x40] sm:$0xff] %vm1278, %v1257
      %1288 = vst.msk [vmem:[#allocation3 + $0x48] sm:$0xff] %vm1278, %v1258
      %1289 = vst.msk [vmem:[#allocation3 + $0x50] sm:$0xff] %vm1278, %v1259
      %1290 = vst.msk [vmem:[#allocation3 + $0x58] sm:$0xff] %vm1278, %v1260
      %1291 = vst.msk [vmem:[#allocation3 + $0x60] sm:$0xff] %vm1278, %v1261
      %1292 = vst.msk [vmem:[#allocation3 + $0x68] sm:$0xff] %vm1278, %v1262
      %1293 = vst.msk [vmem:[#allocation3 + $0x70] sm:$0xff] %vm1278, %v1263
      %1294 = vst.msk [vmem:[#allocation3 + $0x78] sm:$0xff] %vm1278, %v1264
      %1295 = vst.msk [vmem:[#allocation3 + $0x80] sm:$0xff] %vm1278, %v1265
      %1296 = vst.msk [vmem:[#allocation3 + $0x88] sm:$0xff] %vm1278, %v1266
      %1297 = vst.msk [vmem:[#allocation3 + $0x90] sm:$0xff] %vm1278, %v1267
      %1298 = vst.msk [vmem:[#allocation3 + $0x98] sm:$0xff] %vm1278, %v1268
      %1299 = vst.msk [vmem:[#allocation3 + $0xa0] sm:$0xff] %vm1278, %v1269
      %1300 = vst.msk [vmem:[#allocation3 + $0xa8] sm:$0xff] %vm1278, %v1270
      %1301 = vst.msk [vmem:[#allocation3 + $0xb0] sm:$0xff] %vm1278, %v1271
      %1302 = vst.msk [vmem:[#allocation3 + $0xb8] sm:$0xff] %vm1278, %v1272
      %1303 = vst.msk [vmem:[#allocation3 + $0xc0] sm:$0xff] %vm1278, %v1273
      %1304 = vst.msk [vmem:[#allocation3 + $0xc8] sm:$0xff] %vm1278, %v1274
      %1305 = vst.msk [vmem:[#allocation3 + $0xd0] sm:$0xff] %vm1278, %v1275
      %1306 = vst.msk [vmem:[#allocation3 + $0xd8] sm:$0xff] %vm1278, %v1276
      %v1307 = vld [vmem:[#allocation3] sm:$0xff]
      %v1308 = vld [vmem:[#allocation3 + $0x8] sm:$0xff]
      %v1309 = vld [vmem:[#allocation3 + $0x10] sm:$0xff]
      %v1310 = vld [vmem:[#allocation3 + $0x18] sm:$0xff]
      %v1311 = vld [vmem:[#allocation3 + $0x20] sm:$0xff]
      %v1312 = vld [vmem:[#allocation3 + $0x28] sm:$0xff]
      %v1313 = vld [vmem:[#allocation3 + $0x30] sm:$0xff]
      %v1314 = vld [vmem:[#allocation3 + $0x38] sm:$0xff]
      %v1315 = vld [vmem:[#allocation3 + $0x40] sm:$0xff]
      %v1316 = vld [vmem:[#allocation3 + $0x48] sm:$0xff]
      %v1317 = vld [vmem:[#allocation3 + $0x50] sm:$0xff]
      %v1318 = vld [vmem:[#allocation3 + $0x58] sm:$0xff]
      %v1319 = vld [vmem:[#allocation3 + $0x60] sm:$0xff]
      %v1320 = vld [vmem:[#allocation3 + $0x68] sm:$0xff]
      %v1321 = vld [vmem:[#allocation3 + $0x70] sm:$0xff]
      %v1322 = vld [vmem:[#allocation3 + $0x78] sm:$0xff]
      %v1323 = vld [vmem:[#allocation3 + $0x80] sm:$0xff]
      %v1324 = vld [vmem:[%s3] sm:$0xf]
      %v1325 = vld [vmem:[%s3 + $0x4] sm:$0xf]
      %v1326 = vld [vmem:[%s3 + $0x8] sm:$0xf]
      %v1327 = vld [vmem:[%s3 + $0xc] sm:$0xf]
      %v1328 = vld [vmem:[%s3 + $0x10] sm:$0xf]
      %v1329 = vld [vmem:[%s3 + $0x14] sm:$0xf]
      %v1330 = vld [vmem:[%s3 + $0x18] sm:$0xf]
      %v1331 = vld [vmem:[%s3 + $0x1c] sm:$0xf]
      %v1332 = vld [vmem:[%s3 + $0x20] sm:$0xf]
      %v1333 = vld [vmem:[%s3 + $0x24] sm:$0xf]
      %v1334 = vld [vmem:[%s3 + $0x28] sm:$0xf]
      %v1335 = vld [vmem:[%s3 + $0x2c] sm:$0xf]
      %v1336 = vld [vmem:[%s3 + $0x30] sm:$0xf]
      %v1337 = vld [vmem:[%s3 + $0x34] sm:$0xf]
      %v1338 = vld [vmem:[%s3 + $0x38] sm:$0xf]
      %v1339 = vld [vmem:[%s3 + $0x3c] sm:$0xf]
      %v1340 = vld [vmem:[%s3 + $0x40] sm:$0xf]
      %v1341 = vld [vmem:[%s3 + $0x44] sm:$0xf]
      %v1342 = vld [vmem:[%s3 + $0x48] sm:$0xf]
      %v1343 = vld [vmem:[%s3 + $0x4c] sm:$0xf]
      %v1344 = vld [vmem:[%s3 + $0x50] sm:$0xf]
      %v1345 = vld [vmem:[%s3 + $0x54] sm:$0xf]
      %v1346 = vld [vmem:[%s3 + $0x58] sm:$0xf]
      %v1347 = vld [vmem:[%s3 + $0x5c] sm:$0xf]
      %v1348 = vld [vmem:[#allocation3] sm:$0x88]
      %v1349 = vld [vmem:[#allocation3 + $0x88] sm:$0x77]
      %v1350 = vld [vmem:[%s3 + $0x60] sm:$0xf]
      %v1351 = vld [vmem:[%s3 + $0x64] sm:$0xf]
      %v1352 = vld [vmem:[%s3 + $0x68] sm:$0xf]
      %v1353 = vld [vmem:[%s3 + $0x6c] sm:$0xf]
      %v1354 = vld [vmem:[%s3 + $0x70] sm:$0xf]
      %v1355 = vld [vmem:[%s3 + $0x74] sm:$0xf]
      %v1356 = vld [vmem:[%s3 + $0x78] sm:$0xf]
      %v1357 = vld [vmem:[%s3 + $0x7c] sm:$0xf]
      %v1358 = vld [vmem:[%s3 + $0x80] sm:$0xf]
      %v1359 = vld [vmem:[%s3 + $0x84] sm:$0xf]
      %v1360 = vld [vmem:[%s3 + $0x88] sm:$0xf]
      %v1361 = vld [vmem:[%s3 + $0x8c] sm:$0xf]
      %v1362 = vld [vmem:[%s3 + $0x90] sm:$0xf]
      %v1363 = vld [vmem:[%s3 + $0x94] sm:$0xf]
      %v1364 = vld [vmem:[%s3 + $0x98] sm:$0xf]
      %v1365 = vld [vmem:[%s3 + $0x9c] sm:$0xf]
      %v1366 = vld [vmem:[%s3 + $0xa0] sm:$0xf]
      %v1367 = vld [vmem:[%s3 + $0xa4] sm:$0xf]
      %v1368 = vld [vmem:[%s3 + $0xa8] sm:$0xf]
      %v1369 = vld [vmem:[%s3 + $0xac] sm:$0xf]
      %v1370 = vld [vmem:[%s3 + $0xb0] sm:$0xf]
      %v1371 = vld [vmem:[%s3 + $0xb4] sm:$0xf]
      %v1372 = vld [vmem:[%s3 + $0xb8] sm:$0xf]
      %v1373 = vld [vmem:[%s3 + $0xbc] sm:$0xf]
      %v1392 = vunpack.c.l.b16 %v1348
      %v1393 = vunpack.c.h.b16 %v1348
      %v1394 = vunpack.c.l.b16 %v1308
      %v1395 = vunpack.c.h.b16 %v1308
      %v1396 = vunpack.c.l.b16 %v1309
      %v1397 = vunpack.c.h.b16 %v1309
      %v1398 = vunpack.c.l.b16 %v1310
      %v1399 = vunpack.c.h.b16 %v1310
      %v1400 = vunpack.c.l.b16 %v1311
      %v1401 = vunpack.c.h.b16 %v1311
      %v1402 = vunpack.c.l.b16 %v1312
      %v1403 = vunpack.c.h.b16 %v1312
      %v1404 = vunpack.c.l.b16 %v1313
      %v1405 = vunpack.c.h.b16 %v1313
      %v1406 = vunpack.c.l.b16 %v1314
      %v1407 = vunpack.c.h.b16 %v1314
      %v1408 = vunpack.c.l.b16 %v1315
      %v1409 = vunpack.c.h.b16 %v1315
      %v1410 = vunpack.c.l.b16 %v1316
      %v1411 = vunpack.c.h.b16 %v1316
      %v1412 = vunpack.c.l.b16 %v1317
      %v1413 = vunpack.c.h.b16 %v1317
      %v1414 = vunpack.c.l.b16 %v1318
      %v1415 = vunpack.c.h.b16 %v1318
      %v1416 = vunpack.c.l.b16 %v1319
      %v1417 = vunpack.c.h.b16 %v1319
      %v1418 = vunpack.c.l.b16 %v1320
      %v1419 = vunpack.c.h.b16 %v1320
      %v1420 = vunpack.c.l.b16 %v1321
      %v1421 = vunpack.c.h.b16 %v1321
      %v1422 = vunpack.c.l.b16 %v1322
      %v1423 = vunpack.c.h.b16 %v1322
      %v1424 = vunpack.c.l.b16 %v1323
      %v1425 = vunpack.c.h.b16 %v1323
      %v1426 = vunpack.c.l.b16 %v1349
      %v1427 = vunpack.c.h.b16 %v1349
      %v1428 = vpack.c.b16 %v1394, %v1392
      %v1429 = vpack.c.b16 %v1395, %v1393
      %v1430 = vpack.c.b16 %v1398, %v1396
      %v1431 = vpack.c.b16 %v1399, %v1397
      %v1432 = vpack.c.b16 %v1402, %v1400
      %v1433 = vpack.c.b16 %v1403, %v1401
      %v1434 = vpack.c.b16 %v1406, %v1404
      %v1435 = vpack.c.b16 %v1407, %v1405
      %v1436 = vpack.c.b16 %v1410, %v1408
      %v1437 = vpack.c.b16 %v1411, %v1409
      %v1438 = vpack.c.b16 %v1414, %v1412
      %v1439 = vpack.c.b16 %v1415, %v1413
      %v1440 = vpack.c.b16 %v1418, %v1416
      %v1441 = vpack.c.b16 %v1419, %v1417
      %v1442 = vpack.c.b16 %v1422, %v1420
      %v1443 = vpack.c.b16 %v1423, %v1421
      %v1444 = vpack.c.b16 %v1426, %v1424
      %v1445 = vpack.c.b16 %v1427, %v1425
      %vm1446 = vcmask 1044480
      %v1447 = vrot.slane %v1428, 3
      %v1448 = vrot.slane %v1430, 3
      %v1449 = vsel %vm1446, %v1447, %v1448
      %v1450 = vrot.slane %v1429, 3
      %v1451 = vrot.slane %v1431, 3
      %v1452 = vsel %vm1446, %v1450, %v1451
      %v1453 = vrot.slane %v1432, 3
      %v1454 = vsel %vm1446, %v1448, %v1453
      %v1455 = vrot.slane %v1433, 3
      %v1456 = vsel %vm1446, %v1451, %v1455
      %v1457 = vrot.slane %v1434, 3
      %v1458 = vsel %vm1446, %v1453, %v1457
      %v1459 = vrot.slane %v1435, 3
      %v1460 = vsel %vm1446, %v1455, %v1459
      %v1461 = vrot.slane %v1436, 3
      %v1462 = vsel %vm1446, %v1457, %v1461
      %v1463 = vrot.slane %v1437, 3
      %v1464 = vsel %vm1446, %v1459, %v1463
      %v1465 = vrot.slane %v1438, 3
      %v1466 = vsel %vm1446, %v1461, %v1465
      %v1467 = vrot.slane %v1439, 3
      %v1468 = vsel %vm1446, %v1463, %v1467
      %v1469 = vrot.slane %v1440, 3
      %v1470 = vsel %vm1446, %v1465, %v1469
      %v1471 = vrot.slane %v1441, 3
      %v1472 = vsel %vm1446, %v1467, %v1471
      %v1473 = vrot.slane %v1442, 3
      %v1474 = vsel %vm1446, %v1469, %v1473
      %v1475 = vrot.slane %v1443, 3
      %v1476 = vsel %vm1446, %v1471, %v1475
      %v1477 = vrot.slane %v1444, 3
      %v1478 = vsel %vm1446, %v1473, %v1477
      %v1479 = vrot.slane %v1445, 3
      %v1480 = vsel %vm1446, %v1475, %v1479
      %v1514 = vunpack.c.l.b16 %v1350
      %v1515 = vunpack.c.l.b16 %v1351
      %v1516 = vunpack.c.l.b16 %v1352
      %v1517 = vunpack.c.l.b16 %v1353
      %v1518 = vunpack.c.l.b16 %v1354
      %v1519 = vunpack.c.l.b16 %v1355
      %v1520 = vunpack.c.l.b16 %v1356
      %v1521 = vunpack.c.l.b16 %v1357
      %v1522 = vunpack.c.l.b16 %v1358
      %v1523 = vunpack.c.l.b16 %v1359
      %v1524 = vunpack.c.l.b16 %v1360
      %v1525 = vunpack.c.l.b16 %v1361
      %v1526 = vunpack.c.l.b16 %v1362
      %v1527 = vunpack.c.l.b16 %v1363
      %v1528 = vunpack.c.l.b16 %v1364
      %v1529 = vunpack.c.l.b16 %v1365
      %v1530 = vunpack.c.l.b16 %v1366
      %v1531 = vunpack.c.l.b16 %v1367
      %v1532 = vunpack.c.l.b16 %v1368
      %v1533 = vunpack.c.l.b16 %v1369
      %v1534 = vunpack.c.l.b16 %v1370
      %v1535 = vunpack.c.l.b16 %v1371
      %v1536 = vunpack.c.l.b16 %v1372
      %v1537 = vunpack.c.l.b16 %v1373
      %v1538 = vpack.c.b16 %v1515, %v1514
      %v1539 = vpack.c.b16 %v1517, %v1516
      %v1540 = vpack.c.b16 %v1519, %v1518
      %v1541 = vpack.c.b16 %v1521, %v1520
      %v1542 = vpack.c.b16 %v1523, %v1522
      %v1543 = vpack.c.b16 %v1525, %v1524
      %v1544 = vpack.c.b16 %v1527, %v1526
      %v1545 = vpack.c.b16 %v1529, %v1528
      %v1546 = vpack.c.b16 %v1531, %v1530
      %v1547 = vpack.c.b16 %v1533, %v1532
      %v1548 = vpack.c.b16 %v1535, %v1534
      %v1549 = vpack.c.b16 %v1537, %v1536
      %v1563 = vsel %vm592, %v1452, 0
      %v1566 = vsel %vm592, %v1456, 0
      %v1569 = vsel %vm592, %v1460, 0
      %v1572 = vsel %vm592, %v1464, 0
      %v1575 = vsel %vm592, %v1468, 0
      %v1578 = vsel %vm592, %v1472, 0
      %v1581 = vsel %vm592, %v1476, 0
      %v1584 = vsel %vm592, %v1480, 0
      %v1587 = vsel %vm592, %v1479, 0
      %1589 = vmatpush.bf16.msra.mxu0 %v1545
      %1590 = vmatpush.bf16.msra.mxu0 %v1544
      %1591 = vmatpush.bf16.msra.mxu0 %v1543
      %1592 = vmatpush.bf16.msra.mxu0 %v1542
      %1593 = vmatpush.bf16.msra.mxu0 %v1541
      %1594 = vmatpush.bf16.msra.mxu0 %v1540
      %1595 = vmatpush.bf16.msra.mxu0 %v1539
      %1596 = vmatpush.bf16.msra.mxu0 %v1538
      %1597 = vmatmul.bf16.gmra.mxu0 %v1449
      %v1598 = vpop.f32.mrf.mxu0
      %v1599 = vadd.f32 0.0, %v1598
      %v1600 = vpop.f32.mrf.mxu0
      %v1601 = vadd.f32 0.0, %v1600
      %1602 = vmatmul.bf16.gmra.mxu0 %v1454
      %v1603 = vpop.f32.mrf.mxu0
      %v1604 = vadd.f32 0.0, %v1603
      %v1605 = vpop.f32.mrf.mxu0
      %v1606 = vadd.f32 0.0, %v1605
      %1607 = vmatmul.bf16.gmra.mxu0 %v1458
      %v1608 = vpop.f32.mrf.mxu0
      %v1609 = vadd.f32 0.0, %v1608
      %v1610 = vpop.f32.mrf.mxu0
      %v1611 = vadd.f32 0.0, %v1610
      %1612 = vmatmul.bf16.gmra.mxu0 %v1462
      %v1613 = vpop.f32.mrf.mxu0
      %v1614 = vadd.f32 0.0, %v1613
      %v1615 = vpop.f32.mrf.mxu0
      %v1616 = vadd.f32 0.0, %v1615
      %1617 = vmatmul.bf16.gmra.mxu0 %v1466
      %v1618 = vpop.f32.mrf.mxu0
      %v1619 = vadd.f32 0.0, %v1618
      %v1620 = vpop.f32.mrf.mxu0
      %v1621 = vadd.f32 0.0, %v1620
      %1622 = vmatmul.bf16.gmra.mxu0 %v1470
      %v1623 = vpop.f32.mrf.mxu0
      %v1624 = vadd.f32 0.0, %v1623
      %v1625 = vpop.f32.mrf.mxu0
      %v1626 = vadd.f32 0.0, %v1625
      %1627 = vmatmul.bf16.gmra.mxu0 %v1474
      %v1628 = vpop.f32.mrf.mxu0
      %v1629 = vadd.f32 0.0, %v1628
      %v1630 = vpop.f32.mrf.mxu0
      %v1631 = vadd.f32 0.0, %v1630
      %1632 = vmatmul.bf16.gmra.mxu0 %v1478
      %v1633 = vpop.f32.mrf.mxu0
      %v1634 = vadd.f32 0.0, %v1633
      %v1635 = vpop.f32.mrf.mxu0
      %v1636 = vadd.f32 0.0, %v1635
      %1637 = vmatmul.bf16.gmra.mxu0 %v1477
      %v1638 = vpop.f32.mrf.mxu0
      %v1639 = vadd.f32 0.0, %v1638
      %v1640 = vpop.f32.mrf.mxu0
      %1641 = vdwg.mxu0
      %1642 = vmatpush.bf16.msra.mxu0 0
      %1643 = vmatpush.bf16.msra.mxu0 0
      %1644 = vmatpush.bf16.msra.mxu0 0
      %1645 = vmatpush.bf16.msra.mxu0 0
      %1646 = vmatpush.bf16.msra.mxu0 %v1549
      %1647 = vmatpush.bf16.msra.mxu0 %v1548
      %1648 = vmatpush.bf16.msra.mxu0 %v1547
      %1649 = vmatpush.bf16.msra.mxu0 %v1546
      %1650 = vmatmul.bf16.gmra.mxu0 %v1563
      %v1651 = vpop.f32.mrf.mxu0
      %v1652 = vadd.f32 %v1599, %v1651
      %v1653 = vpop.f32.mrf.mxu0
      %v1654 = vadd.f32 %v1601, %v1653
      %1655 = vmatmul.bf16.gmra.mxu0 %v1566
      %v1656 = vpop.f32.mrf.mxu0
      %v1657 = vadd.f32 %v1604, %v1656
      %v1658 = vpop.f32.mrf.mxu0
      %v1659 = vadd.f32 %v1606, %v1658
      %1660 = vmatmul.bf16.gmra.mxu0 %v1569
      %v1661 = vpop.f32.mrf.mxu0
      %v1662 = vadd.f32 %v1609, %v1661
      %v1663 = vpop.f32.mrf.mxu0
      %v1664 = vadd.f32 %v1611, %v1663
      %1665 = vmatmul.bf16.gmra.mxu0 %v1572
      %v1666 = vpop.f32.mrf.mxu0
      %v1667 = vadd.f32 %v1614, %v1666
      %v1668 = vpop.f32.mrf.mxu0
      %v1669 = vadd.f32 %v1616, %v1668
      %1670 = vmatmul.bf16.gmra.mxu0 %v1575
      %v1671 = vpop.f32.mrf.mxu0
      %v1672 = vadd.f32 %v1619, %v1671
      %v1673 = vpop.f32.mrf.mxu0
      %v1674 = vadd.f32 %v1621, %v1673
      %1675 = vmatmul.bf16.gmra.mxu0 %v1578
      %v1676 = vpop.f32.mrf.mxu0
      %v1677 = vadd.f32 %v1624, %v1676
      %v1678 = vpop.f32.mrf.mxu0
      %v1679 = vadd.f32 %v1626, %v1678
      %1680 = vmatmul.bf16.gmra.mxu0 %v1581
      %v1681 = vpop.f32.mrf.mxu0
      %v1682 = vadd.f32 %v1629, %v1681
      %v1683 = vpop.f32.mrf.mxu0
      %v1684 = vadd.f32 %v1631, %v1683
      %1685 = vmatmul.bf16.gmra.mxu0 %v1584
      %v1686 = vpop.f32.mrf.mxu0
      %v1687 = vadd.f32 %v1634, %v1686
      %v1688 = vpop.f32.mrf.mxu0
      %v1689 = vadd.f32 %v1636, %v1688
      %1690 = vmatmul.bf16.gmra.mxu0 %v1587
      %v1691 = vpop.f32.mrf.mxu0
      %v1692 = vadd.f32 %v1639, %v1691
      %v1693 = vpop.f32.mrf.mxu0
      %1694 = vdwg.mxu0
      %v1696 = vunpack.c.l.b16 %v1307
      %v1697 = vunpack.c.h.b16 %v1307
      %v1698 = vpack.c.b16 %v1394, %v1696
      %v1699 = vpack.c.b16 %v1395, %v1697
      %v1700 = vpack.c.b16 %v1424, %v1424
      %v1701 = vpack.c.b16 %v1425, %v1425
      %v1735 = vunpack.c.l.b16 %v1324
      %v1736 = vunpack.c.l.b16 %v1325
      %v1737 = vunpack.c.l.b16 %v1326
      %v1738 = vunpack.c.l.b16 %v1327
      %v1739 = vunpack.c.l.b16 %v1328
      %v1740 = vunpack.c.l.b16 %v1329
      %v1741 = vunpack.c.l.b16 %v1330
      %v1742 = vunpack.c.l.b16 %v1331
      %v1743 = vunpack.c.l.b16 %v1332
      %v1744 = vunpack.c.l.b16 %v1333
      %v1745 = vunpack.c.l.b16 %v1334
      %v1746 = vunpack.c.l.b16 %v1335
      %v1747 = vunpack.c.l.b16 %v1336
      %v1748 = vunpack.c.l.b16 %v1337
      %v1749 = vunpack.c.l.b16 %v1338
      %v1750 = vunpack.c.l.b16 %v1339
      %v1751 = vunpack.c.l.b16 %v1340
      %v1752 = vunpack.c.l.b16 %v1341
      %v1753 = vunpack.c.l.b16 %v1342
      %v1754 = vunpack.c.l.b16 %v1343
      %v1755 = vunpack.c.l.b16 %v1344
      %v1756 = vunpack.c.l.b16 %v1345
      %v1757 = vunpack.c.l.b16 %v1346
      %v1758 = vunpack.c.l.b16 %v1347
      %v1759 = vpack.c.b16 %v1736, %v1735
      %v1760 = vpack.c.b16 %v1738, %v1737
      %v1761 = vpack.c.b16 %v1740, %v1739
      %v1762 = vpack.c.b16 %v1742, %v1741
      %v1763 = vpack.c.b16 %v1744, %v1743
      %v1764 = vpack.c.b16 %v1746, %v1745
      %v1765 = vpack.c.b16 %v1748, %v1747
      %v1766 = vpack.c.b16 %v1750, %v1749
      %v1767 = vpack.c.b16 %v1752, %v1751
      %v1768 = vpack.c.b16 %v1754, %v1753
      %v1769 = vpack.c.b16 %v1756, %v1755
      %v1770 = vpack.c.b16 %v1758, %v1757
      %v1784 = vsel %vm592, %v1699, 0
      %v1787 = vsel %vm592, %v1431, 0
      %v1790 = vsel %vm592, %v1433, 0
      %v1793 = vsel %vm592, %v1435, 0
      %v1796 = vsel %vm592, %v1437, 0
      %v1799 = vsel %vm592, %v1439, 0
      %v1802 = vsel %vm592, %v1441, 0
      %v1805 = vsel %vm592, %v1443, 0
      %v1808 = vsel %vm592, %v1701, 0
      %1810 = vmatpush.bf16.msra.mxu0 %v1766
      %1811 = vmatpush.bf16.msra.mxu0 %v1765
      %1812 = vmatpush.bf16.msra.mxu0 %v1764
      %1813 = vmatpush.bf16.msra.mxu0 %v1763
      %1814 = vmatpush.bf16.msra.mxu0 %v1762
      %1815 = vmatpush.bf16.msra.mxu0 %v1761
      %1816 = vmatpush.bf16.msra.mxu0 %v1760
      %1817 = vmatpush.bf16.msra.mxu0 %v1759
      %1818 = vmatmul.bf16.gmra.mxu0 %v1698
      %v1819 = vpop.f32.mrf.mxu0
      %v1820 = vadd.f32 %v1652, %v1819
      %v1821 = vpop.f32.mrf.mxu0
      %v1822 = vadd.f32 %v1654, %v1821
      %1823 = vmatmul.bf16.gmra.mxu0 %v1430
      %v1824 = vpop.f32.mrf.mxu0
      %v1825 = vadd.f32 %v1657, %v1824
      %v1826 = vpop.f32.mrf.mxu0
      %v1827 = vadd.f32 %v1659, %v1826
      %1828 = vmatmul.bf16.gmra.mxu0 %v1432
      %v1829 = vpop.f32.mrf.mxu0
      %v1830 = vadd.f32 %v1662, %v1829
      %v1831 = vpop.f32.mrf.mxu0
      %v1832 = vadd.f32 %v1664, %v1831
      %1833 = vmatmul.bf16.gmra.mxu0 %v1434
      %v1834 = vpop.f32.mrf.mxu0
      %v1835 = vadd.f32 %v1667, %v1834
      %v1836 = vpop.f32.mrf.mxu0
      %v1837 = vadd.f32 %v1669, %v1836
      %1838 = vmatmul.bf16.gmra.mxu0 %v1436
      %v1839 = vpop.f32.mrf.mxu0
      %v1840 = vadd.f32 %v1672, %v1839
      %v1841 = vpop.f32.mrf.mxu0
      %v1842 = vadd.f32 %v1674, %v1841
      %1843 = vmatmul.bf16.gmra.mxu0 %v1438
      %v1844 = vpop.f32.mrf.mxu0
      %v1845 = vadd.f32 %v1677, %v1844
      %v1846 = vpop.f32.mrf.mxu0
      %v1847 = vadd.f32 %v1679, %v1846
      %1848 = vmatmul.bf16.gmra.mxu0 %v1440
      %v1849 = vpop.f32.mrf.mxu0
      %v1850 = vadd.f32 %v1682, %v1849
      %v1851 = vpop.f32.mrf.mxu0
      %v1852 = vadd.f32 %v1684, %v1851
      %1853 = vmatmul.bf16.gmra.mxu0 %v1442
      %v1854 = vpop.f32.mrf.mxu0
      %v1855 = vadd.f32 %v1687, %v1854
      %v1856 = vpop.f32.mrf.mxu0
      %v1857 = vadd.f32 %v1689, %v1856
      %1858 = vmatmul.bf16.gmra.mxu0 %v1700
      %v1859 = vpop.f32.mrf.mxu0
      %v1860 = vadd.f32 %v1692, %v1859
      %v1861 = vpop.f32.mrf.mxu0
      %1862 = vdwg.mxu0
      %1863 = vmatpush.bf16.msra.mxu0 0
      %1864 = vmatpush.bf16.msra.mxu0 0
      %1865 = vmatpush.bf16.msra.mxu0 0
      %1866 = vmatpush.bf16.msra.mxu0 0
      %1867 = vmatpush.bf16.msra.mxu0 %v1770
      %1868 = vmatpush.bf16.msra.mxu0 %v1769
      %1869 = vmatpush.bf16.msra.mxu0 %v1768
      %1870 = vmatpush.bf16.msra.mxu0 %v1767
      %1871 = vmatmul.bf16.gmra.mxu0 %v1784
      %v1872 = vpop.f32.mrf.mxu0
      %v1873 = vadd.f32 %v1820, %v1872
      %v1874 = vpop.f32.mrf.mxu0
      %v1875 = vadd.f32 %v1822, %v1874
      %1876 = vmatmul.bf16.gmra.mxu0 %v1787
      %v1877 = vpop.f32.mrf.mxu0
      %v1878 = vadd.f32 %v1825, %v1877
      %v1879 = vpop.f32.mrf.mxu0
      %v1880 = vadd.f32 %v1827, %v1879
      %1881 = vmatmul.bf16.gmra.mxu0 %v1790
      %v1882 = vpop.f32.mrf.mxu0
      %v1883 = vadd.f32 %v1830, %v1882
      %v1884 = vpop.f32.mrf.mxu0
      %v1885 = vadd.f32 %v1832, %v1884
      %1886 = vmatmul.bf16.gmra.mxu0 %v1793
      %v1887 = vpop.f32.mrf.mxu0
      %v1888 = vadd.f32 %v1835, %v1887
      %v1889 = vpop.f32.mrf.mxu0
      %v1890 = vadd.f32 %v1837, %v1889
      %1891 = vmatmul.bf16.gmra.mxu0 %v1796
      %v1892 = vpop.f32.mrf.mxu0
      %v1893 = vadd.f32 %v1840, %v1892
      %v1894 = vpop.f32.mrf.mxu0
      %v1895 = vadd.f32 %v1842, %v1894
      %1896 = vmatmul.bf16.gmra.mxu0 %v1799
      %v1897 = vpop.f32.mrf.mxu0
      %v1898 = vadd.f32 %v1845, %v1897
      %v1899 = vpop.f32.mrf.mxu0
      %v1900 = vadd.f32 %v1847, %v1899
      %1901 = vmatmul.bf16.gmra.mxu0 %v1802
      %v1902 = vpop.f32.mrf.mxu0
      %v1903 = vadd.f32 %v1850, %v1902
      %v1904 = vpop.f32.mrf.mxu0
      %v1905 = vadd.f32 %v1852, %v1904
      %1906 = vmatmul.bf16.gmra.mxu0 %v1805
      %v1907 = vpop.f32.mrf.mxu0
      %v1908 = vadd.f32 %v1855, %v1907
      %v1909 = vpop.f32.mrf.mxu0
      %v1910 = vadd.f32 %v1857, %v1909
      %1911 = vmatmul.bf16.gmra.mxu0 %v1808
      %v1912 = vpop.f32.mrf.mxu0
      %v1913 = vadd.f32 %v1860, %v1912
      %v1914 = vpop.f32.mrf.mxu0
      %1915 = vdwg.mxu0
      %v1916 = vld [vmem:[#allocation3 + $0x8] sm:$0xcc]
      %v1917 = vld [vmem:[#allocation3 + $0x10] sm:$0xff]
      %v1918 = vld [vmem:[#allocation3 + $0x18] sm:$0xff]
      %v1919 = vld [vmem:[#allocation3 + $0x20] sm:$0xff]
      %v1920 = vld [vmem:[#allocation3 + $0x28] sm:$0xff]
      %v1921 = vld [vmem:[#allocation3 + $0x30] sm:$0xff]
      %v1922 = vld [vmem:[#allocation3 + $0x38] sm:$0xff]
      %v1923 = vld [vmem:[#allocation3 + $0x40] sm:$0xff]
      %v1924 = vld [vmem:[#allocation3 + $0x48] sm:$0xff]
      %v1925 = vld [vmem:[#allocation3 + $0x50] sm:$0xff]
      %v1926 = vld [vmem:[#allocation3 + $0x58] sm:$0xff]
      %v1927 = vld [vmem:[#allocation3 + $0x60] sm:$0xff]
      %v1928 = vld [vmem:[#allocation3 + $0x68] sm:$0xff]
      %v1929 = vld [vmem:[#allocation3 + $0x70] sm:$0xff]
      %v1930 = vld [vmem:[#allocation3 + $0x78] sm:$0xff]
      %v1931 = vld [vmem:[#allocation3 + $0x80] sm:$0xff]
      %v1932 = vld [vmem:[#allocation3 + $0x88] sm:$0xff]
      %v1933 = vld [vmem:[#allocation3 + $0x90] sm:$0x33]
      %v1934 = vld [vmem:[%s3 + $0xc0] sm:$0xf]
      %v1935 = vld [vmem:[%s3 + $0xc4] sm:$0xf]
      %v1936 = vld [vmem:[%s3 + $0xc8] sm:$0xf]
      %v1937 = vld [vmem:[%s3 + $0xcc] sm:$0xf]
      %v1938 = vld [vmem:[%s3 + $0xd0] sm:$0xf]
      %v1939 = vld [vmem:[%s3 + $0xd4] sm:$0xf]
      %v1940 = vld [vmem:[%s3 + $0xd8] sm:$0xf]
      %v1941 = vld [vmem:[%s3 + $0xdc] sm:$0xf]
      %v1942 = vld [vmem:[%s3 + $0xe0] sm:$0xf]
      %v1943 = vld [vmem:[%s3 + $0xe4] sm:$0xf]
      %v1944 = vld [vmem:[%s3 + $0xe8] sm:$0xf]
      %v1945 = vld [vmem:[%s3 + $0xec] sm:$0xf]
      %v1946 = vld [vmem:[%s3 + $0xf0] sm:$0xf]
      %v1947 = vld [vmem:[%s3 + $0xf4] sm:$0xf]
      %v1948 = vld [vmem:[%s3 + $0xf8] sm:$0xf]
      %v1949 = vld [vmem:[%s3 + $0xfc] sm:$0xf]
      %v1950 = vld [vmem:[%s3 + $0x100] sm:$0xf]
      %v1951 = vld [vmem:[%s3 + $0x104] sm:$0xf]
      %v1952 = vld [vmem:[%s3 + $0x108] sm:$0xf]
      %v1953 = vld [vmem:[%s3 + $0x10c] sm:$0xf]
      %v1954 = vld [vmem:[%s3 + $0x110] sm:$0xf]
      %v1955 = vld [vmem:[%s3 + $0x114] sm:$0xf]
      %v1956 = vld [vmem:[%s3 + $0x118] sm:$0xf]
      %v1957 = vld [vmem:[%s3 + $0x11c] sm:$0xf]
      %v1976 = vunpack.c.l.b16 %v1916
      %v1977 = vunpack.c.h.b16 %v1916
      %v1978 = vunpack.c.l.b16 %v1917
      %v1979 = vunpack.c.h.b16 %v1917
      %v1980 = vunpack.c.l.b16 %v1918
      %v1981 = vunpack.c.h.b16 %v1918
      %v1982 = vunpack.c.l.b16 %v1919
      %v1983 = vunpack.c.h.b16 %v1919
      %v1984 = vunpack.c.l.b16 %v1920
      %v1985 = vunpack.c.h.b16 %v1920
      %v1986 = vunpack.c.l.b16 %v1921
      %v1987 = vunpack.c.h.b16 %v1921
      %v1988 = vunpack.c.l.b16 %v1922
      %v1989 = vunpack.c.h.b16 %v1922
      %v1990 = vunpack.c.l.b16 %v1923
      %v1991 = vunpack.c.h.b16 %v1923
      %v1992 = vunpack.c.l.b16 %v1924
      %v1993 = vunpack.c.h.b16 %v1924
      %v1994 = vunpack.c.l.b16 %v1925
      %v1995 = vunpack.c.h.b16 %v1925
      %v1996 = vunpack.c.l.b16 %v1926
      %v1997 = vunpack.c.h.b16 %v1926
      %v1998 = vunpack.c.l.b16 %v1927
      %v1999 = vunpack.c.h.b16 %v1927
      %v2000 = vunpack.c.l.b16 %v1928
      %v2001 = vunpack.c.h.b16 %v1928
      %v2002 = vunpack.c.l.b16 %v1929
      %v2003 = vunpack.c.h.b16 %v1929
      %v2004 = vunpack.c.l.b16 %v1930
      %v2005 = vunpack.c.h.b16 %v1930
      %v2006 = vunpack.c.l.b16 %v1931
      %v2007 = vunpack.c.h.b16 %v1931
      %v2008 = vunpack.c.l.b16 %v1932
      %v2009 = vunpack.c.h.b16 %v1932
      %v2010 = vunpack.c.l.b16 %v1933
      %v2011 = vunpack.c.h.b16 %v1933
      %v2012 = vpack.c.b16 %v1978, %v1976
      %v2013 = vpack.c.b16 %v1979, %v1977
      %v2014 = vpack.c.b16 %v1982, %v1980
      %v2015 = vpack.c.b16 %v1983, %v1981
      %v2016 = vpack.c.b16 %v1986, %v1984
      %v2017 = vpack.c.b16 %v1987, %v1985
      %v2018 = vpack.c.b16 %v1990, %v1988
      %v2019 = vpack.c.b16 %v1991, %v1989
      %v2020 = vpack.c.b16 %v1994, %v1992
      %v2021 = vpack.c.b16 %v1995, %v1993
      %v2022 = vpack.c.b16 %v1998, %v1996
      %v2023 = vpack.c.b16 %v1999, %v1997
      %v2024 = vpack.c.b16 %v2002, %v2000
      %v2025 = vpack.c.b16 %v2003, %v2001
      %v2026 = vpack.c.b16 %v2006, %v2004
      %v2027 = vpack.c.b16 %v2007, %v2005
      %v2028 = vpack.c.b16 %v2010, %v2008
      %v2029 = vpack.c.b16 %v2011, %v2009
      %vm2030 = vcmask 1045504
      %v2031 = vrot.slane %v2012, 2
      %v2032 = vrot.slane %v2014, 2
      %v2033 = vsel %vm2030, %v2031, %v2032
      %v2034 = vrot.slane %v2013, 2
      %v2035 = vrot.slane %v2015, 2
      %v2036 = vsel %vm2030, %v2034, %v2035
      %v2037 = vrot.slane %v2016, 2
      %v2038 = vsel %vm2030, %v2032, %v2037
      %v2039 = vrot.slane %v2017, 2
      %v2040 = vsel %vm2030, %v2035, %v2039
      %v2041 = vrot.slane %v2018, 2
      %v2042 = vsel %vm2030, %v2037, %v2041
      %v2043 = vrot.slane %v2019, 2
      %v2044 = vsel %vm2030, %v2039, %v2043
      %v2045 = vrot.slane %v2020, 2
      %v2046 = vsel %vm2030, %v2041, %v2045
      %v2047 = vrot.slane %v2021, 2
      %v2048 = vsel %vm2030, %v2043, %v2047
      %v2049 = vrot.slane %v2022, 2
      %v2050 = vsel %vm2030, %v2045, %v2049
      %v2051 = vrot.slane %v2023, 2
      %v2052 = vsel %vm2030, %v2047, %v2051
      %v2053 = vrot.slane %v2024, 2
      %v2054 = vsel %vm2030, %v2049, %v2053
      %v2055 = vrot.slane %v2025, 2
      %v2056 = vsel %vm2030, %v2051, %v2055
      %v2057 = vrot.slane %v2026, 2
      %v2058 = vsel %vm2030, %v2053, %v2057
      %v2059 = vrot.slane %v2027, 2
      %v2060 = vsel %vm2030, %v2055, %v2059
      %v2061 = vrot.slane %v2028, 2
      %v2062 = vsel %vm2030, %v2057, %v2061
      %v2063 = vrot.slane %v2029, 2
      %v2064 = vsel %vm2030, %v2059, %v2063
      %v2098 = vunpack.c.l.b16 %v1934
      %v2099 = vunpack.c.l.b16 %v1935
      %v2100 = vunpack.c.l.b16 %v1936
      %v2101 = vunpack.c.l.b16 %v1937
      %v2102 = vunpack.c.l.b16 %v1938
      %v2103 = vunpack.c.l.b16 %v1939
      %v2104 = vunpack.c.l.b16 %v1940
      %v2105 = vunpack.c.l.b16 %v1941
      %v2106 = vunpack.c.l.b16 %v1942
      %v2107 = vunpack.c.l.b16 %v1943
      %v2108 = vunpack.c.l.b16 %v1944
      %v2109 = vunpack.c.l.b16 %v1945
      %v2110 = vunpack.c.l.b16 %v1946
      %v2111 = vunpack.c.l.b16 %v1947
      %v2112 = vunpack.c.l.b16 %v1948
      %v2113 = vunpack.c.l.b16 %v1949
      %v2114 = vunpack.c.l.b16 %v1950
      %v2115 = vunpack.c.l.b16 %v1951
      %v2116 = vunpack.c.l.b16 %v1952
      %v2117 = vunpack.c.l.b16 %v1953
      %v2118 = vunpack.c.l.b16 %v1954
      %v2119 = vunpack.c.l.b16 %v1955
      %v2120 = vunpack.c.l.b16 %v1956
      %v2121 = vunpack.c.l.b16 %v1957
      %v2122 = vpack.c.b16 %v2099, %v2098
      %v2123 = vpack.c.b16 %v2101, %v2100
      %v2124 = vpack.c.b16 %v2103, %v2102
      %v2125 = vpack.c.b16 %v2105, %v2104
      %v2126 = vpack.c.b16 %v2107, %v2106
      %v2127 = vpack.c.b16 %v2109, %v2108
      %v2128 = vpack.c.b16 %v2111, %v2110
      %v2129 = vpack.c.b16 %v2113, %v2112
      %v2130 = vpack.c.b16 %v2115, %v2114
      %v2131 = vpack.c.b16 %v2117, %v2116
      %v2132 = vpack.c.b16 %v2119, %v2118
      %v2133 = vpack.c.b16 %v2121, %v2120
      %v2147 = vsel %vm592, %v2036, 0
      %v2150 = vsel %vm592, %v2040, 0
      %v2153 = vsel %vm592, %v2044, 0
      %v2156 = vsel %vm592, %v2048, 0
      %v2159 = vsel %vm592, %v2052, 0
      %v2162 = vsel %vm592, %v2056, 0
      %v2165 = vsel %vm592, %v2060, 0
      %v2168 = vsel %vm592, %v2064, 0
      %v2171 = vsel %vm592, %v2063, 0
      %2173 = vmatpush.bf16.msra.mxu0 %v2129
      %2174 = vmatpush.bf16.msra.mxu0 %v2128
      %2175 = vmatpush.bf16.msra.mxu0 %v2127
      %2176 = vmatpush.bf16.msra.mxu0 %v2126
      %2177 = vmatpush.bf16.msra.mxu0 %v2125
      %2178 = vmatpush.bf16.msra.mxu0 %v2124
      %2179 = vmatpush.bf16.msra.mxu0 %v2123
      %2180 = vmatpush.bf16.msra.mxu0 %v2122
      %2181 = vmatmul.bf16.gmra.mxu0 %v2033
      %v2182 = vpop.f32.mrf.mxu0
      %v2183 = vadd.f32 0.0, %v2182
      %v2184 = vpop.f32.mrf.mxu0
      %v2185 = vadd.f32 0.0, %v2184
      %2186 = vmatmul.bf16.gmra.mxu0 %v2038
      %v2187 = vpop.f32.mrf.mxu0
      %v2188 = vadd.f32 0.0, %v2187
      %v2189 = vpop.f32.mrf.mxu0
      %v2190 = vadd.f32 0.0, %v2189
      %2191 = vmatmul.bf16.gmra.mxu0 %v2042
      %v2192 = vpop.f32.mrf.mxu0
      %v2193 = vadd.f32 0.0, %v2192
      %v2194 = vpop.f32.mrf.mxu0
      %v2195 = vadd.f32 0.0, %v2194
      %2196 = vmatmul.bf16.gmra.mxu0 %v2046
      %v2197 = vpop.f32.mrf.mxu0
      %v2198 = vadd.f32 0.0, %v2197
      %v2199 = vpop.f32.mrf.mxu0
      %v2200 = vadd.f32 0.0, %v2199
      %2201 = vmatmul.bf16.gmra.mxu0 %v2050
      %v2202 = vpop.f32.mrf.mxu0
      %v2203 = vadd.f32 0.0, %v2202
      %v2204 = vpop.f32.mrf.mxu0
      %v2205 = vadd.f32 0.0, %v2204
      %2206 = vmatmul.bf16.gmra.mxu0 %v2054
      %v2207 = vpop.f32.mrf.mxu0
      %v2208 = vadd.f32 0.0, %v2207
      %v2209 = vpop.f32.mrf.mxu0
      %v2210 = vadd.f32 0.0, %v2209
      %2211 = vmatmul.bf16.gmra.mxu0 %v2058
      %v2212 = vpop.f32.mrf.mxu0
      %v2213 = vadd.f32 0.0, %v2212
      %v2214 = vpop.f32.mrf.mxu0
      %v2215 = vadd.f32 0.0, %v2214
      %2216 = vmatmul.bf16.gmra.mxu0 %v2062
      %v2217 = vpop.f32.mrf.mxu0
      %v2218 = vadd.f32 0.0, %v2217
      %v2219 = vpop.f32.mrf.mxu0
      %v2220 = vadd.f32 0.0, %v2219
      %2221 = vmatmul.bf16.gmra.mxu0 %v2061
      %v2222 = vpop.f32.mrf.mxu0
      %v2223 = vadd.f32 0.0, %v2222
      %v2224 = vpop.f32.mrf.mxu0
      %2225 = vdwg.mxu0
      %2226 = vmatpush.bf16.msra.mxu0 0
      %2227 = vmatpush.bf16.msra.mxu0 0
      %2228 = vmatpush.bf16.msra.mxu0 0
      %2229 = vmatpush.bf16.msra.mxu0 0
      %2230 = vmatpush.bf16.msra.mxu0 %v2133
      %2231 = vmatpush.bf16.msra.mxu0 %v2132
      %2232 = vmatpush.bf16.msra.mxu0 %v2131
      %2233 = vmatpush.bf16.msra.mxu0 %v2130
      %2234 = vmatmul.bf16.gmra.mxu0 %v2147
      %v2235 = vpop.f32.mrf.mxu0
      %v2236 = vadd.f32 %v2183, %v2235
      %v2237 = vpop.f32.mrf.mxu0
      %v2238 = vadd.f32 %v2185, %v2237
      %2239 = vmatmul.bf16.gmra.mxu0 %v2150
      %v2240 = vpop.f32.mrf.mxu0
      %v2241 = vadd.f32 %v2188, %v2240
      %v2242 = vpop.f32.mrf.mxu0
      %v2243 = vadd.f32 %v2190, %v2242
      %2244 = vmatmul.bf16.gmra.mxu0 %v2153
      %v2245 = vpop.f32.mrf.mxu0
      %v2246 = vadd.f32 %v2193, %v2245
      %v2247 = vpop.f32.mrf.mxu0
      %v2248 = vadd.f32 %v2195, %v2247
      %2249 = vmatmul.bf16.gmra.mxu0 %v2156
      %v2250 = vpop.f32.mrf.mxu0
      %v2251 = vadd.f32 %v2198, %v2250
      %v2252 = vpop.f32.mrf.mxu0
      %v2253 = vadd.f32 %v2200, %v2252
      %2254 = vmatmul.bf16.gmra.mxu0 %v2159
      %v2255 = vpop.f32.mrf.mxu0
      %v2256 = vadd.f32 %v2203, %v2255
      %v2257 = vpop.f32.mrf.mxu0
      %v2258 = vadd.f32 %v2205, %v2257
      %2259 = vmatmul.bf16.gmra.mxu0 %v2162
      %v2260 = vpop.f32.mrf.mxu0
      %v2261 = vadd.f32 %v2208, %v2260
      %v2262 = vpop.f32.mrf.mxu0
      %v2263 = vadd.f32 %v2210, %v2262
      %2264 = vmatmul.bf16.gmra.mxu0 %v2165
      %v2265 = vpop.f32.mrf.mxu0
      %v2266 = vadd.f32 %v2213, %v2265
      %v2267 = vpop.f32.mrf.mxu0
      %v2268 = vadd.f32 %v2215, %v2267
      %2269 = vmatmul.bf16.gmra.mxu0 %v2168
      %v2270 = vpop.f32.mrf.mxu0
      %v2271 = vadd.f32 %v2218, %v2270
      %v2272 = vpop.f32.mrf.mxu0
      %v2273 = vadd.f32 %v2220, %v2272
      %2274 = vmatmul.bf16.gmra.mxu0 %v2171
      %v2275 = vpop.f32.mrf.mxu0
      %v2276 = vadd.f32 %v2223, %v2275
      %v2277 = vpop.f32.mrf.mxu0
      %2278 = vdwg.mxu0
      %v2279 = vadd.f32 %v1873, %v2236
      %v2280 = vadd.f32 %v1875, %v2238
      %v2281 = vadd.f32 %v1878, %v2241
      %v2282 = vadd.f32 %v1880, %v2243
      %v2283 = vadd.f32 %v1883, %v2246
      %v2284 = vadd.f32 %v1885, %v2248
      %v2285 = vadd.f32 %v1888, %v2251
      %v2286 = vadd.f32 %v1890, %v2253
      %v2287 = vadd.f32 %v1893, %v2256
      %v2288 = vadd.f32 %v1895, %v2258
      %v2289 = vadd.f32 %v1898, %v2261
      %v2290 = vadd.f32 %v1900, %v2263
      %v2291 = vadd.f32 %v1903, %v2266
      %v2292 = vadd.f32 %v1905, %v2268
      %v2293 = vadd.f32 %v1908, %v2271
      %v2294 = vadd.f32 %v1910, %v2273
      %v2295 = vadd.f32 %v1913, %v2276
      %v2296 = vld [vmem:[#allocation3 + $0x20] sm:$0xcc]
      %v2297 = vld [vmem:[#allocation3 + $0x28] sm:$0xff]
      %v2298 = vld [vmem:[#allocation3 + $0x30] sm:$0xff]
      %v2299 = vld [vmem:[#allocation3 + $0x38] sm:$0xff]
      %v2300 = vld [vmem:[#allocation3 + $0x40] sm:$0xff]
      %v2301 = vld [vmem:[#allocation3 + $0x48] sm:$0xff]
      %v2302 = vld [vmem:[#allocation3 + $0x50] sm:$0xff]
      %v2303 = vld [vmem:[#allocation3 + $0x58] sm:$0xff]
      %v2304 = vld [vmem:[#allocation3 + $0x60] sm:$0xff]
      %v2305 = vld [vmem:[#allocation3 + $0x68] sm:$0xff]
      %v2306 = vld [vmem:[#allocation3 + $0x70] sm:$0xff]
      %v2307 = vld [vmem:[#allocation3 + $0x78] sm:$0xff]
      %v2308 = vld [vmem:[#allocation3 + $0x80] sm:$0xff]
      %v2309 = vld [vmem:[#allocation3 + $0x88] sm:$0xff]
      %v2310 = vld [vmem:[#allocation3 + $0x90] sm:$0xff]
      %v2311 = vld [vmem:[#allocation3 + $0x98] sm:$0xff]
      %v2312 = vld [vmem:[#allocation3 + $0xa0] sm:$0xff]
      %v2313 = vld [vmem:[#allocation3 + $0xa8] sm:$0x33]
      %v2314 = vld [vmem:[%s3 + $0x120] sm:$0xf]
      %v2315 = vld [vmem:[%s3 + $0x124] sm:$0xf]
      %v2316 = vld [vmem:[%s3 + $0x128] sm:$0xf]
      %v2317 = vld [vmem:[%s3 + $0x12c] sm:$0xf]
      %v2318 = vld [vmem:[%s3 + $0x130] sm:$0xf]
      %v2319 = vld [vmem:[%s3 + $0x134] sm:$0xf]
      %v2320 = vld [vmem:[%s3 + $0x138] sm:$0xf]
      %v2321 = vld [vmem:[%s3 + $0x13c] sm:$0xf]
      %v2322 = vld [vmem:[%s3 + $0x140] sm:$0xf]
      %v2323 = vld [vmem:[%s3 + $0x144] sm:$0xf]
      %v2324 = vld [vmem:[%s3 + $0x148] sm:$0xf]
      %v2325 = vld [vmem:[%s3 + $0x14c] sm:$0xf]
      %v2326 = vld [vmem:[%s3 + $0x150] sm:$0xf]
      %v2327 = vld [vmem:[%s3 + $0x154] sm:$0xf]
      %v2328 = vld [vmem:[%s3 + $0x158] sm:$0xf]
      %v2329 = vld [vmem:[%s3 + $0x15c] sm:$0xf]
      %v2330 = vld [vmem:[%s3 + $0x160] sm:$0xf]
      %v2331 = vld [vmem:[%s3 + $0x164] sm:$0xf]
      %v2332 = vld [vmem:[%s3 + $0x168] sm:$0xf]
      %v2333 = vld [vmem:[%s3 + $0x16c] sm:$0xf]
      %v2334 = vld [vmem:[%s3 + $0x170] sm:$0xf]
      %v2335 = vld [vmem:[%s3 + $0x174] sm:$0xf]
      %v2336 = vld [vmem:[%s3 + $0x178] sm:$0xf]
      %v2337 = vld [vmem:[%s3 + $0x17c] sm:$0xf]
      %v2356 = vunpack.c.l.b16 %v2296
      %v2357 = vunpack.c.h.b16 %v2296
      %v2358 = vunpack.c.l.b16 %v2297
      %v2359 = vunpack.c.h.b16 %v2297
      %v2360 = vunpack.c.l.b16 %v2298
      %v2361 = vunpack.c.h.b16 %v2298
      %v2362 = vunpack.c.l.b16 %v2299
      %v2363 = vunpack.c.h.b16 %v2299
      %v2364 = vunpack.c.l.b16 %v2300
      %v2365 = vunpack.c.h.b16 %v2300
      %v2366 = vunpack.c.l.b16 %v2301
      %v2367 = vunpack.c.h.b16 %v2301
      %v2368 = vunpack.c.l.b16 %v2302
      %v2369 = vunpack.c.h.b16 %v2302
      %v2370 = vunpack.c.l.b16 %v2303
      %v2371 = vunpack.c.h.b16 %v2303
      %v2372 = vunpack.c.l.b16 %v2304
      %v2373 = vunpack.c.h.b16 %v2304
      %v2374 = vunpack.c.l.b16 %v2305
      %v2375 = vunpack.c.h.b16 %v2305
      %v2376 = vunpack.c.l.b16 %v2306
      %v2377 = vunpack.c.h.b16 %v2306
      %v2378 = vunpack.c.l.b16 %v2307
      %v2379 = vunpack.c.h.b16 %v2307
      %v2380 = vunpack.c.l.b16 %v2308
      %v2381 = vunpack.c.h.b16 %v2308
      %v2382 = vunpack.c.l.b16 %v2309
      %v2383 = vunpack.c.h.b16 %v2309
      %v2384 = vunpack.c.l.b16 %v2310
      %v2385 = vunpack.c.h.b16 %v2310
      %v2386 = vunpack.c.l.b16 %v2311
      %v2387 = vunpack.c.h.b16 %v2311
      %v2388 = vunpack.c.l.b16 %v2312
      %v2389 = vunpack.c.h.b16 %v2312
      %v2390 = vunpack.c.l.b16 %v2313
      %v2391 = vunpack.c.h.b16 %v2313
      %v2392 = vpack.c.b16 %v2358, %v2356
      %v2393 = vpack.c.b16 %v2359, %v2357
      %v2394 = vpack.c.b16 %v2362, %v2360
      %v2395 = vpack.c.b16 %v2363, %v2361
      %v2396 = vpack.c.b16 %v2366, %v2364
      %v2397 = vpack.c.b16 %v2367, %v2365
      %v2398 = vpack.c.b16 %v2370, %v2368
      %v2399 = vpack.c.b16 %v2371, %v2369
      %v2400 = vpack.c.b16 %v2374, %v2372
      %v2401 = vpack.c.b16 %v2375, %v2373
      %v2402 = vpack.c.b16 %v2378, %v2376
      %v2403 = vpack.c.b16 %v2379, %v2377
      %v2404 = vpack.c.b16 %v2382, %v2380
      %v2405 = vpack.c.b16 %v2383, %v2381
      %v2406 = vpack.c.b16 %v2386, %v2384
      %v2407 = vpack.c.b16 %v2387, %v2385
      %v2408 = vpack.c.b16 %v2390, %v2388
      %v2409 = vpack.c.b16 %v2391, %v2389
      %v2410 = vrot.slane %v2392, 2
      %v2411 = vrot.slane %v2394, 2
      %v2412 = vsel %vm2030, %v2410, %v2411
      %v2413 = vrot.slane %v2393, 2
      %v2414 = vrot.slane %v2395, 2
      %v2415 = vsel %vm2030, %v2413, %v2414
      %v2416 = vrot.slane %v2396, 2
      %v2417 = vsel %vm2030, %v2411, %v2416
      %v2418 = vrot.slane %v2397, 2
      %v2419 = vsel %vm2030, %v2414, %v2418
      %v2420 = vrot.slane %v2398, 2
      %v2421 = vsel %vm2030, %v2416, %v2420
      %v2422 = vrot.slane %v2399, 2
      %v2423 = vsel %vm2030, %v2418, %v2422
      %v2424 = vrot.slane %v2400, 2
      %v2425 = vsel %vm2030, %v2420, %v2424
      %v2426 = vrot.slane %v2401, 2
      %v2427 = vsel %vm2030, %v2422, %v2426
      %v2428 = vrot.slane %v2402, 2
      %v2429 = vsel %vm2030, %v2424, %v2428
      %v2430 = vrot.slane %v2403, 2
      %v2431 = vsel %vm2030, %v2426, %v2430
      %v2432 = vrot.slane %v2404, 2
      %v2433 = vsel %vm2030, %v2428, %v2432
      %v2434 = vrot.slane %v2405, 2
      %v2435 = vsel %vm2030, %v2430, %v2434
      %v2436 = vrot.slane %v2406, 2
      %v2437 = vsel %vm2030, %v2432, %v2436
      %v2438 = vrot.slane %v2407, 2
      %v2439 = vsel %vm2030, %v2434, %v2438
      %v2440 = vrot.slane %v2408, 2
      %v2441 = vsel %vm2030, %v2436, %v2440
      %v2442 = vrot.slane %v2409, 2
      %v2443 = vsel %vm2030, %v2438, %v2442
      %v2477 = vunpack.c.l.b16 %v2314
      %v2478 = vunpack.c.l.b16 %v2315
      %v2479 = vunpack.c.l.b16 %v2316
      %v2480 = vunpack.c.l.b16 %v2317
      %v2481 = vunpack.c.l.b16 %v2318
      %v2482 = vunpack.c.l.b16 %v2319
      %v2483 = vunpack.c.l.b16 %v2320
      %v2484 = vunpack.c.l.b16 %v2321
      %v2485 = vunpack.c.l.b16 %v2322
      %v2486 = vunpack.c.l.b16 %v2323
      %v2487 = vunpack.c.l.b16 %v2324
      %v2488 = vunpack.c.l.b16 %v2325
      %v2489 = vunpack.c.l.b16 %v2326
      %v2490 = vunpack.c.l.b16 %v2327
      %v2491 = vunpack.c.l.b16 %v2328
      %v2492 = vunpack.c.l.b16 %v2329
      %v2493 = vunpack.c.l.b16 %v2330
      %v2494 = vunpack.c.l.b16 %v2331
      %v2495 = vunpack.c.l.b16 %v2332
      %v2496 = vunpack.c.l.b16 %v2333
      %v2497 = vunpack.c.l.b16 %v2334
      %v2498 = vunpack.c.l.b16 %v2335
      %v2499 = vunpack.c.l.b16 %v2336
      %v2500 = vunpack.c.l.b16 %v2337
      %v2501 = vpack.c.b16 %v2478, %v2477
      %v2502 = vpack.c.b16 %v2480, %v2479
      %v2503 = vpack.c.b16 %v2482, %v2481
      %v2504 = vpack.c.b16 %v2484, %v2483
      %v2505 = vpack.c.b16 %v2486, %v2485
      %v2506 = vpack.c.b16 %v2488, %v2487
      %v2507 = vpack.c.b16 %v2490, %v2489
      %v2508 = vpack.c.b16 %v2492, %v2491
      %v2509 = vpack.c.b16 %v2494, %v2493
      %v2510 = vpack.c.b16 %v2496, %v2495
      %v2511 = vpack.c.b16 %v2498, %v2497
      %v2512 = vpack.c.b16 %v2500, %v2499
      %v2526 = vsel %vm592, %v2415, 0
      %v2529 = vsel %vm592, %v2419, 0
      %v2532 = vsel %vm592, %v2423, 0
      %v2535 = vsel %vm592, %v2427, 0
      %v2538 = vsel %vm592, %v2431, 0
      %v2541 = vsel %vm592, %v2435, 0
      %v2544 = vsel %vm592, %v2439, 0
      %v2547 = vsel %vm592, %v2443, 0
      %v2550 = vsel %vm592, %v2442, 0
      %2552 = vmatpush.bf16.msra.mxu0 %v2508
      %2553 = vmatpush.bf16.msra.mxu0 %v2507
      %2554 = vmatpush.bf16.msra.mxu0 %v2506
      %2555 = vmatpush.bf16.msra.mxu0 %v2505
      %2556 = vmatpush.bf16.msra.mxu0 %v2504
      %2557 = vmatpush.bf16.msra.mxu0 %v2503
      %2558 = vmatpush.bf16.msra.mxu0 %v2502
      %2559 = vmatpush.bf16.msra.mxu0 %v2501
      %2560 = vmatmul.bf16.gmra.mxu0 %v2412
      %v2561 = vpop.f32.mrf.mxu0
      %v2562 = vadd.f32 0.0, %v2561
      %v2563 = vpop.f32.mrf.mxu0
      %v2564 = vadd.f32 0.0, %v2563
      %2565 = vmatmul.bf16.gmra.mxu0 %v2417
      %v2566 = vpop.f32.mrf.mxu0
      %v2567 = vadd.f32 0.0, %v2566
      %v2568 = vpop.f32.mrf.mxu0
      %v2569 = vadd.f32 0.0, %v2568
      %2570 = vmatmul.bf16.gmra.mxu0 %v2421
      %v2571 = vpop.f32.mrf.mxu0
      %v2572 = vadd.f32 0.0, %v2571
      %v2573 = vpop.f32.mrf.mxu0
      %v2574 = vadd.f32 0.0, %v2573
      %2575 = vmatmul.bf16.gmra.mxu0 %v2425
      %v2576 = vpop.f32.mrf.mxu0
      %v2577 = vadd.f32 0.0, %v2576
      %v2578 = vpop.f32.mrf.mxu0
      %v2579 = vadd.f32 0.0, %v2578
      %2580 = vmatmul.bf16.gmra.mxu0 %v2429
      %v2581 = vpop.f32.mrf.mxu0
      %v2582 = vadd.f32 0.0, %v2581
      %v2583 = vpop.f32.mrf.mxu0
      %v2584 = vadd.f32 0.0, %v2583
      %2585 = vmatmul.bf16.gmra.mxu0 %v2433
      %v2586 = vpop.f32.mrf.mxu0
      %v2587 = vadd.f32 0.0, %v2586
      %v2588 = vpop.f32.mrf.mxu0
      %v2589 = vadd.f32 0.0, %v2588
      %2590 = vmatmul.bf16.gmra.mxu0 %v2437
      %v2591 = vpop.f32.mrf.mxu0
      %v2592 = vadd.f32 0.0, %v2591
      %v2593 = vpop.f32.mrf.mxu0
      %v2594 = vadd.f32 0.0, %v2593
      %2595 = vmatmul.bf16.gmra.mxu0 %v2441
      %v2596 = vpop.f32.mrf.mxu0
      %v2597 = vadd.f32 0.0, %v2596
      %v2598 = vpop.f32.mrf.mxu0
      %v2599 = vadd.f32 0.0, %v2598
      %2600 = vmatmul.bf16.gmra.mxu0 %v2440
      %v2601 = vpop.f32.mrf.mxu0
      %v2602 = vadd.f32 0.0, %v2601
      %v2603 = vpop.f32.mrf.mxu0
      %2604 = vdwg.mxu0
      %2605 = vmatpush.bf16.msra.mxu0 0
      %2606 = vmatpush.bf16.msra.mxu0 0
      %2607 = vmatpush.bf16.msra.mxu0 0
      %2608 = vmatpush.bf16.msra.mxu0 0
      %2609 = vmatpush.bf16.msra.mxu0 %v2512
      %2610 = vmatpush.bf16.msra.mxu0 %v2511
      %2611 = vmatpush.bf16.msra.mxu0 %v2510
      %2612 = vmatpush.bf16.msra.mxu0 %v2509
      %2613 = vmatmul.bf16.gmra.mxu0 %v2526
      %v2614 = vpop.f32.mrf.mxu0
      %v2615 = vadd.f32 %v2562, %v2614
      %v2616 = vpop.f32.mrf.mxu0
      %v2617 = vadd.f32 %v2564, %v2616
      %2618 = vmatmul.bf16.gmra.mxu0 %v2529
      %v2619 = vpop.f32.mrf.mxu0
      %v2620 = vadd.f32 %v2567, %v2619
      %v2621 = vpop.f32.mrf.mxu0
      %v2622 = vadd.f32 %v2569, %v2621
      %2623 = vmatmul.bf16.gmra.mxu0 %v2532
      %v2624 = vpop.f32.mrf.mxu0
      %v2625 = vadd.f32 %v2572, %v2624
      %v2626 = vpop.f32.mrf.mxu0
      %v2627 = vadd.f32 %v2574, %v2626
      %2628 = vmatmul.bf16.gmra.mxu0 %v2535
      %v2629 = vpop.f32.mrf.mxu0
      %v2630 = vadd.f32 %v2577, %v2629
      %v2631 = vpop.f32.mrf.mxu0
      %v2632 = vadd.f32 %v2579, %v2631
      %2633 = vmatmul.bf16.gmra.mxu0 %v2538
      %v2634 = vpop.f32.mrf.mxu0
      %v2635 = vadd.f32 %v2582, %v2634
      %v2636 = vpop.f32.mrf.mxu0
      %v2637 = vadd.f32 %v2584, %v2636
      %2638 = vmatmul.bf16.gmra.mxu0 %v2541
      %v2639 = vpop.f32.mrf.mxu0
      %v2640 = vadd.f32 %v2587, %v2639
      %v2641 = vpop.f32.mrf.mxu0
      %v2642 = vadd.f32 %v2589, %v2641
      %2643 = vmatmul.bf16.gmra.mxu0 %v2544
      %v2644 = vpop.f32.mrf.mxu0
      %v2645 = vadd.f32 %v2592, %v2644
      %v2646 = vpop.f32.mrf.mxu0
      %v2647 = vadd.f32 %v2594, %v2646
      %2648 = vmatmul.bf16.gmra.mxu0 %v2547
      %v2649 = vpop.f32.mrf.mxu0
      %v2650 = vadd.f32 %v2597, %v2649
      %v2651 = vpop.f32.mrf.mxu0
      %v2652 = vadd.f32 %v2599, %v2651
      %2653 = vmatmul.bf16.gmra.mxu0 %v2550
      %v2654 = vpop.f32.mrf.mxu0
      %v2655 = vadd.f32 %v2602, %v2654
      %v2656 = vpop.f32.mrf.mxu0
      %2657 = vdwg.mxu0
      %v2658 = vadd.f32 %v2279, %v2615
      %v2659 = vadd.f32 %v2280, %v2617
      %v2660 = vadd.f32 %v2281, %v2620
      %v2661 = vadd.f32 %v2282, %v2622
      %v2662 = vadd.f32 %v2283, %v2625
      %v2663 = vadd.f32 %v2284, %v2627
      %v2664 = vadd.f32 %v2285, %v2630
      %v2665 = vadd.f32 %v2286, %v2632
      %v2666 = vadd.f32 %v2287, %v2635
      %v2667 = vadd.f32 %v2288, %v2637
      %v2668 = vadd.f32 %v2289, %v2640
      %v2669 = vadd.f32 %v2290, %v2642
      %v2670 = vadd.f32 %v2291, %v2645
      %v2671 = vadd.f32 %v2292, %v2647
      %v2672 = vadd.f32 %v2293, %v2650
      %v2673 = vadd.f32 %v2294, %v2652
      %v2674 = vadd.f32 %v2295, %v2655
      %v2675 = vld [vmem:[#allocation3 + $0x28] sm:$0xee]
      %v2676 = vld [vmem:[#allocation3 + $0x30] sm:$0xff]
      %v2677 = vld [vmem:[#allocation3 + $0x38] sm:$0xff]
      %v2678 = vld [vmem:[#allocation3 + $0x40] sm:$0xff]
      %v2679 = vld [vmem:[#allocation3 + $0x48] sm:$0xff]
      %v2680 = vld [vmem:[#allocation3 + $0x50] sm:$0xff]
      %v2681 = vld [vmem:[#allocation3 + $0x58] sm:$0xff]
      %v2682 = vld [vmem:[#allocation3 + $0x60] sm:$0xff]
      %v2683 = vld [vmem:[#allocation3 + $0x68] sm:$0xff]
      %v2684 = vld [vmem:[#allocation3 + $0x70] sm:$0xff]
      %v2685 = vld [vmem:[#allocation3 + $0x78] sm:$0xff]
      %v2686 = vld [vmem:[#allocation3 + $0x80] sm:$0xff]
      %v2687 = vld [vmem:[#allocation3 + $0x88] sm:$0xff]
      %v2688 = vld [vmem:[#allocation3 + $0x90] sm:$0xff]
      %v2689 = vld [vmem:[#allocation3 + $0x98] sm:$0xff]
      %v2690 = vld [vmem:[#allocation3 + $0xa0] sm:$0xff]
      %v2691 = vld [vmem:[#allocation3 + $0xa8] sm:$0xff]
      %v2692 = vld [vmem:[#allocation3 + $0xb0] sm:$0x11]
      %v2693 = vld [vmem:[%s3 + $0x180] sm:$0xf]
      %v2694 = vld [vmem:[%s3 + $0x184] sm:$0xf]
      %v2695 = vld [vmem:[%s3 + $0x188] sm:$0xf]
      %v2696 = vld [vmem:[%s3 + $0x18c] sm:$0xf]
      %v2697 = vld [vmem:[%s3 + $0x190] sm:$0xf]
      %v2698 = vld [vmem:[%s3 + $0x194] sm:$0xf]
      %v2699 = vld [vmem:[%s3 + $0x198] sm:$0xf]
      %v2700 = vld [vmem:[%s3 + $0x19c] sm:$0xf]
      %v2701 = vld [vmem:[%s3 + $0x1a0] sm:$0xf]
      %v2702 = vld [vmem:[%s3 + $0x1a4] sm:$0xf]
      %v2703 = vld [vmem:[%s3 + $0x1a8] sm:$0xf]
      %v2704 = vld [vmem:[%s3 + $0x1ac] sm:$0xf]
      %v2705 = vld [vmem:[%s3 + $0x1b0] sm:$0xf]
      %v2706 = vld [vmem:[%s3 + $0x1b4] sm:$0xf]
      %v2707 = vld [vmem:[%s3 + $0x1b8] sm:$0xf]
      %v2708 = vld [vmem:[%s3 + $0x1bc] sm:$0xf]
      %v2709 = vld [vmem:[%s3 + $0x1c0] sm:$0xf]
      %v2710 = vld [vmem:[%s3 + $0x1c4] sm:$0xf]
      %v2711 = vld [vmem:[%s3 + $0x1c8] sm:$0xf]
      %v2712 = vld [vmem:[%s3 + $0x1cc] sm:$0xf]
      %v2713 = vld [vmem:[%s3 + $0x1d0] sm:$0xf]
      %v2714 = vld [vmem:[%s3 + $0x1d4] sm:$0xf]
      %v2715 = vld [vmem:[%s3 + $0x1d8] sm:$0xf]
      %v2716 = vld [vmem:[%s3 + $0x1dc] sm:$0xf]
      %v2735 = vunpack.c.l.b16 %v2675
      %v2736 = vunpack.c.h.b16 %v2675
      %v2737 = vunpack.c.l.b16 %v2676
      %v2738 = vunpack.c.h.b16 %v2676
      %v2739 = vunpack.c.l.b16 %v2677
      %v2740 = vunpack.c.h.b16 %v2677
      %v2741 = vunpack.c.l.b16 %v2678
      %v2742 = vunpack.c.h.b16 %v2678
      %v2743 = vunpack.c.l.b16 %v2679
      %v2744 = vunpack.c.h.b16 %v2679
      %v2745 = vunpack.c.l.b16 %v2680
      %v2746 = vunpack.c.h.b16 %v2680
      %v2747 = vunpack.c.l.b16 %v2681
      %v2748 = vunpack.c.h.b16 %v2681
      %v2749 = vunpack.c.l.b16 %v2682
      %v2750 = vunpack.c.h.b16 %v2682
      %v2751 = vunpack.c.l.b16 %v2683
      %v2752 = vunpack.c.h.b16 %v2683
      %v2753 = vunpack.c.l.b16 %v2684
      %v2754 = vunpack.c.h.b16 %v2684
      %v2755 = vunpack.c.l.b16 %v2685
      %v2756 = vunpack.c.h.b16 %v2685
      %v2757 = vunpack.c.l.b16 %v2686
      %v2758 = vunpack.c.h.b16 %v2686
      %v2759 = vunpack.c.l.b16 %v2687
      %v2760 = vunpack.c.h.b16 %v2687
      %v2761 = vunpack.c.l.b16 %v2688
      %v2762 = vunpack.c.h.b16 %v2688
      %v2763 = vunpack.c.l.b16 %v2689
      %v2764 = vunpack.c.h.b16 %v2689
      %v2765 = vunpack.c.l.b16 %v2690
      %v2766 = vunpack.c.h.b16 %v2690
      %v2767 = vunpack.c.l.b16 %v2691
      %v2768 = vunpack.c.h.b16 %v2691
      %v2769 = vunpack.c.l.b16 %v2692
      %v2770 = vunpack.c.h.b16 %v2692
      %v2771 = vpack.c.b16 %v2737, %v2735
      %v2772 = vpack.c.b16 %v2738, %v2736
      %v2773 = vpack.c.b16 %v2741, %v2739
      %v2774 = vpack.c.b16 %v2742, %v2740
      %v2775 = vpack.c.b16 %v2745, %v2743
      %v2776 = vpack.c.b16 %v2746, %v2744
      %v2777 = vpack.c.b16 %v2749, %v2747
      %v2778 = vpack.c.b16 %v2750, %v2748
      %v2779 = vpack.c.b16 %v2753, %v2751
      %v2780 = vpack.c.b16 %v2754, %v2752
      %v2781 = vpack.c.b16 %v2757, %v2755
      %v2782 = vpack.c.b16 %v2758, %v2756
      %v2783 = vpack.c.b16 %v2761, %v2759
      %v2784 = vpack.c.b16 %v2762, %v2760
      %v2785 = vpack.c.b16 %v2765, %v2763
      %v2786 = vpack.c.b16 %v2766, %v2764
      %v2787 = vpack.c.b16 %v2769, %v2767
      %v2788 = vpack.c.b16 %v2770, %v2768
      %vm2789 = vcmask 1046528
      %v2790 = vrot.slane %v2771, 1
      %v2791 = vrot.slane %v2773, 1
      %v2792 = vsel %vm2789, %v2790, %v2791
      %v2793 = vrot.slane %v2772, 1
      %v2794 = vrot.slane %v2774, 1
      %v2795 = vsel %vm2789, %v2793, %v2794
      %v2796 = vrot.slane %v2775, 1
      %v2797 = vsel %vm2789, %v2791, %v2796
      %v2798 = vrot.slane %v2776, 1
      %v2799 = vsel %vm2789, %v2794, %v2798
      %v2800 = vrot.slane %v2777, 1
      %v2801 = vsel %vm2789, %v2796, %v2800
      %v2802 = vrot.slane %v2778, 1
      %v2803 = vsel %vm2789, %v2798, %v2802
      %v2804 = vrot.slane %v2779, 1
      %v2805 = vsel %vm2789, %v2800, %v2804
      %v2806 = vrot.slane %v2780, 1
      %v2807 = vsel %vm2789, %v2802, %v2806
      %v2808 = vrot.slane %v2781, 1
      %v2809 = vsel %vm2789, %v2804, %v2808
      %v2810 = vrot.slane %v2782, 1
      %v2811 = vsel %vm2789, %v2806, %v2810
      %v2812 = vrot.slane %v2783, 1
      %v2813 = vsel %vm2789, %v2808, %v2812
      %v2814 = vrot.slane %v2784, 1
      %v2815 = vsel %vm2789, %v2810, %v2814
      %v2816 = vrot.slane %v2785, 1
      %v2817 = vsel %vm2789, %v2812, %v2816
      %v2818 = vrot.slane %v2786, 1
      %v2819 = vsel %vm2789, %v2814, %v2818
      %v2820 = vrot.slane %v2787, 1
      %v2821 = vsel %vm2789, %v2816, %v2820
      %v2822 = vrot.slane %v2788, 1
      %v2823 = vsel %vm2789, %v2818, %v2822
      %v2857 = vunpack.c.l.b16 %v2693
      %v2858 = vunpack.c.l.b16 %v2694
      %v2859 = vunpack.c.l.b16 %v2695
      %v2860 = vunpack.c.l.b16 %v2696
      %v2861 = vunpack.c.l.b16 %v2697
      %v2862 = vunpack.c.l.b16 %v2698
      %v2863 = vunpack.c.l.b16 %v2699
      %v2864 = vunpack.c.l.b16 %v2700
      %v2865 = vunpack.c.l.b16 %v2701
      %v2866 = vunpack.c.l.b16 %v2702
      %v2867 = vunpack.c.l.b16 %v2703
      %v2868 = vunpack.c.l.b16 %v2704
      %v2869 = vunpack.c.l.b16 %v2705
      %v2870 = vunpack.c.l.b16 %v2706
      %v2871 = vunpack.c.l.b16 %v2707
      %v2872 = vunpack.c.l.b16 %v2708
      %v2873 = vunpack.c.l.b16 %v2709
      %v2874 = vunpack.c.l.b16 %v2710
      %v2875 = vunpack.c.l.b16 %v2711
      %v2876 = vunpack.c.l.b16 %v2712
      %v2877 = vunpack.c.l.b16 %v2713
      %v2878 = vunpack.c.l.b16 %v2714
      %v2879 = vunpack.c.l.b16 %v2715
      %v2880 = vunpack.c.l.b16 %v2716
      %v2881 = vpack.c.b16 %v2858, %v2857
      %v2882 = vpack.c.b16 %v2860, %v2859
      %v2883 = vpack.c.b16 %v2862, %v2861
      %v2884 = vpack.c.b16 %v2864, %v2863
      %v2885 = vpack.c.b16 %v2866, %v2865
      %v2886 = vpack.c.b16 %v2868, %v2867
      %v2887 = vpack.c.b16 %v2870, %v2869
      %v2888 = vpack.c.b16 %v2872, %v2871
      %v2889 = vpack.c.b16 %v2874, %v2873
      %v2890 = vpack.c.b16 %v2876, %v2875
      %v2891 = vpack.c.b16 %v2878, %v2877
      %v2892 = vpack.c.b16 %v2880, %v2879
      %v2906 = vsel %vm592, %v2795, 0
      %v2909 = vsel %vm592, %v2799, 0
      %v2912 = vsel %vm592, %v2803, 0
      %v2915 = vsel %vm592, %v2807, 0
      %v2918 = vsel %vm592, %v2811, 0
      %v2921 = vsel %vm592, %v2815, 0
      %v2924 = vsel %vm592, %v2819, 0
      %v2927 = vsel %vm592, %v2823, 0
      %v2930 = vsel %vm592, %v2822, 0
      %2932 = vmatpush.bf16.msra.mxu0 %v2888
      %2933 = vmatpush.bf16.msra.mxu0 %v2887
      %2934 = vmatpush.bf16.msra.mxu0 %v2886
      %2935 = vmatpush.bf16.msra.mxu0 %v2885
      %2936 = vmatpush.bf16.msra.mxu0 %v2884
      %2937 = vmatpush.bf16.msra.mxu0 %v2883
      %2938 = vmatpush.bf16.msra.mxu0 %v2882
      %2939 = vmatpush.bf16.msra.mxu0 %v2881
      %2940 = vmatmul.bf16.gmra.mxu0 %v2792
      %v2941 = vpop.f32.mrf.mxu0
      %v2942 = vadd.f32 0.0, %v2941
      %v2943 = vpop.f32.mrf.mxu0
      %v2944 = vadd.f32 0.0, %v2943
      %2945 = vmatmul.bf16.gmra.mxu0 %v2797
      %v2946 = vpop.f32.mrf.mxu0
      %v2947 = vadd.f32 0.0, %v2946
      %v2948 = vpop.f32.mrf.mxu0
      %v2949 = vadd.f32 0.0, %v2948
      %2950 = vmatmul.bf16.gmra.mxu0 %v2801
      %v2951 = vpop.f32.mrf.mxu0
      %v2952 = vadd.f32 0.0, %v2951
      %v2953 = vpop.f32.mrf.mxu0
      %v2954 = vadd.f32 0.0, %v2953
      %2955 = vmatmul.bf16.gmra.mxu0 %v2805
      %v2956 = vpop.f32.mrf.mxu0
      %v2957 = vadd.f32 0.0, %v2956
      %v2958 = vpop.f32.mrf.mxu0
      %v2959 = vadd.f32 0.0, %v2958
      %2960 = vmatmul.bf16.gmra.mxu0 %v2809
      %v2961 = vpop.f32.mrf.mxu0
      %v2962 = vadd.f32 0.0, %v2961
      %v2963 = vpop.f32.mrf.mxu0
      %v2964 = vadd.f32 0.0, %v2963
      %2965 = vmatmul.bf16.gmra.mxu0 %v2813
      %v2966 = vpop.f32.mrf.mxu0
      %v2967 = vadd.f32 0.0, %v2966
      %v2968 = vpop.f32.mrf.mxu0
      %v2969 = vadd.f32 0.0, %v2968
      %2970 = vmatmul.bf16.gmra.mxu0 %v2817
      %v2971 = vpop.f32.mrf.mxu0
      %v2972 = vadd.f32 0.0, %v2971
      %v2973 = vpop.f32.mrf.mxu0
      %v2974 = vadd.f32 0.0, %v2973
      %2975 = vmatmul.bf16.gmra.mxu0 %v2821
      %v2976 = vpop.f32.mrf.mxu0
      %v2977 = vadd.f32 0.0, %v2976
      %v2978 = vpop.f32.mrf.mxu0
      %v2979 = vadd.f32 0.0, %v2978
      %2980 = vmatmul.bf16.gmra.mxu0 %v2820
      %v2981 = vpop.f32.mrf.mxu0
      %v2982 = vadd.f32 0.0, %v2981
      %v2983 = vpop.f32.mrf.mxu0
      %2984 = vdwg.mxu0
      %2985 = vmatpush.bf16.msra.mxu0 0
      %2986 = vmatpush.bf16.msra.mxu0 0
      %2987 = vmatpush.bf16.msra.mxu0 0
      %2988 = vmatpush.bf16.msra.mxu0 0
      %2989 = vmatpush.bf16.msra.mxu0 %v2892
      %2990 = vmatpush.bf16.msra.mxu0 %v2891
      %2991 = vmatpush.bf16.msra.mxu0 %v2890
      %2992 = vmatpush.bf16.msra.mxu0 %v2889
      %2993 = vmatmul.bf16.gmra.mxu0 %v2906
      %v2994 = vpop.f32.mrf.mxu0
      %v2995 = vadd.f32 %v2942, %v2994
      %v2996 = vpop.f32.mrf.mxu0
      %v2997 = vadd.f32 %v2944, %v2996
      %2998 = vmatmul.bf16.gmra.mxu0 %v2909
      %v2999 = vpop.f32.mrf.mxu0
      %v3000 = vadd.f32 %v2947, %v2999
      %v3001 = vpop.f32.mrf.mxu0
      %v3002 = vadd.f32 %v2949, %v3001
      %3003 = vmatmul.bf16.gmra.mxu0 %v2912
      %v3004 = vpop.f32.mrf.mxu0
      %v3005 = vadd.f32 %v2952, %v3004
      %v3006 = vpop.f32.mrf.mxu0
      %v3007 = vadd.f32 %v2954, %v3006
      %3008 = vmatmul.bf16.gmra.mxu0 %v2915
      %v3009 = vpop.f32.mrf.mxu0
      %v3010 = vadd.f32 %v2957, %v3009
      %v3011 = vpop.f32.mrf.mxu0
      %v3012 = vadd.f32 %v2959, %v3011
      %3013 = vmatmul.bf16.gmra.mxu0 %v2918
      %v3014 = vpop.f32.mrf.mxu0
      %v3015 = vadd.f32 %v2962, %v3014
      %v3016 = vpop.f32.mrf.mxu0
      %v3017 = vadd.f32 %v2964, %v3016
      %3018 = vmatmul.bf16.gmra.mxu0 %v2921
      %v3019 = vpop.f32.mrf.mxu0
      %v3020 = vadd.f32 %v2967, %v3019
      %v3021 = vpop.f32.mrf.mxu0
      %v3022 = vadd.f32 %v2969, %v3021
      %3023 = vmatmul.bf16.gmra.mxu0 %v2924
      %v3024 = vpop.f32.mrf.mxu0
      %v3025 = vadd.f32 %v2972, %v3024
      %v3026 = vpop.f32.mrf.mxu0
      %v3027 = vadd.f32 %v2974, %v3026
      %3028 = vmatmul.bf16.gmra.mxu0 %v2927
      %v3029 = vpop.f32.mrf.mxu0
      %v3030 = vadd.f32 %v2977, %v3029
      %v3031 = vpop.f32.mrf.mxu0
      %v3032 = vadd.f32 %v2979, %v3031
      %3033 = vmatmul.bf16.gmra.mxu0 %v2930
      %v3034 = vpop.f32.mrf.mxu0
      %v3035 = vadd.f32 %v2982, %v3034
      %v3036 = vpop.f32.mrf.mxu0
      %3037 = vdwg.mxu0
      %v3038 = vadd.f32 %v2658, %v2995
      %v3039 = vadd.f32 %v2659, %v2997
      %v3040 = vadd.f32 %v2660, %v3000
      %v3041 = vadd.f32 %v2661, %v3002
      %v3042 = vadd.f32 %v2662, %v3005
      %v3043 = vadd.f32 %v2663, %v3007
      %v3044 = vadd.f32 %v2664, %v3010
      %v3045 = vadd.f32 %v2665, %v3012
      %v3046 = vadd.f32 %v2666, %v3015
      %v3047 = vadd.f32 %v2667, %v3017
      %v3048 = vadd.f32 %v2668, %v3020
      %v3049 = vadd.f32 %v2669, %v3022
      %v3050 = vadd.f32 %v2670, %v3025
      %v3051 = vadd.f32 %v2671, %v3027
      %v3052 = vadd.f32 %v2672, %v3030
      %v3053 = vadd.f32 %v2673, %v3032
      %v3054 = vadd.f32 %v2674, %v3035
      %v3055 = vld [vmem:[#allocation3 + $0xb0] sm:$0xff]
      %v3056 = vld [vmem:[%s3 + $0x1e0] sm:$0xf]
      %v3057 = vld [vmem:[%s3 + $0x1e4] sm:$0xf]
      %v3058 = vld [vmem:[%s3 + $0x1e8] sm:$0xf]
      %v3059 = vld [vmem:[%s3 + $0x1ec] sm:$0xf]
      %v3060 = vld [vmem:[%s3 + $0x1f0] sm:$0xf]
      %v3061 = vld [vmem:[%s3 + $0x1f4] sm:$0xf]
      %v3062 = vld [vmem:[%s3 + $0x1f8] sm:$0xf]
      %v3063 = vld [vmem:[%s3 + $0x1fc] sm:$0xf]
      %v3064 = vld [vmem:[%s3 + $0x200] sm:$0xf]
      %v3065 = vld [vmem:[%s3 + $0x204] sm:$0xf]
      %v3066 = vld [vmem:[%s3 + $0x208] sm:$0xf]
      %v3067 = vld [vmem:[%s3 + $0x20c] sm:$0xf]
      %v3068 = vld [vmem:[%s3 + $0x210] sm:$0xf]
      %v3069 = vld [vmem:[%s3 + $0x214] sm:$0xf]
      %v3070 = vld [vmem:[%s3 + $0x218] sm:$0xf]
      %v3071 = vld [vmem:[%s3 + $0x21c] sm:$0xf]
      %v3072 = vld [vmem:[%s3 + $0x220] sm:$0xf]
      %v3073 = vld [vmem:[%s3 + $0x224] sm:$0xf]
      %v3074 = vld [vmem:[%s3 + $0x228] sm:$0xf]
      %v3075 = vld [vmem:[%s3 + $0x22c] sm:$0xf]
      %v3076 = vld [vmem:[%s3 + $0x230] sm:$0xf]
      %v3077 = vld [vmem:[%s3 + $0x234] sm:$0xf]
      %v3078 = vld [vmem:[%s3 + $0x238] sm:$0xf]
      %v3079 = vld [vmem:[%s3 + $0x23c] sm:$0xf]
      %v3081 = vunpack.c.l.b16 %v3055
      %v3082 = vunpack.c.h.b16 %v3055
      %v3083 = vpack.c.b16 %v2739, %v2737
      %v3084 = vpack.c.b16 %v2740, %v2738
      %v3085 = vpack.c.b16 %v2743, %v2741
      %v3086 = vpack.c.b16 %v2744, %v2742
      %v3087 = vpack.c.b16 %v2747, %v2745
      %v3088 = vpack.c.b16 %v2748, %v2746
      %v3089 = vpack.c.b16 %v2751, %v2749
      %v3090 = vpack.c.b16 %v2752, %v2750
      %v3091 = vpack.c.b16 %v2755, %v2753
      %v3092 = vpack.c.b16 %v2756, %v2754
      %v3093 = vpack.c.b16 %v2759, %v2757
      %v3094 = vpack.c.b16 %v2760, %v2758
      %v3095 = vpack.c.b16 %v2763, %v2761
      %v3096 = vpack.c.b16 %v2764, %v2762
      %v3097 = vpack.c.b16 %v2767, %v2765
      %v3098 = vpack.c.b16 %v2768, %v2766
      %v3099 = vpack.c.b16 %v3081, %v3081
      %v3100 = vpack.c.b16 %v3082, %v3082
      %v3134 = vunpack.c.l.b16 %v3056
      %v3135 = vunpack.c.l.b16 %v3057
      %v3136 = vunpack.c.l.b16 %v3058
      %v3137 = vunpack.c.l.b16 %v3059
      %v3138 = vunpack.c.l.b16 %v3060
      %v3139 = vunpack.c.l.b16 %v3061
      %v3140 = vunpack.c.l.b16 %v3062
      %v3141 = vunpack.c.l.b16 %v3063
      %v3142 = vunpack.c.l.b16 %v3064
      %v3143 = vunpack.c.l.b16 %v3065
      %v3144 = vunpack.c.l.b16 %v3066
      %v3145 = vunpack.c.l.b16 %v3067
      %v3146 = vunpack.c.l.b16 %v3068
      %v3147 = vunpack.c.l.b16 %v3069
      %v3148 = vunpack.c.l.b16 %v3070
      %v3149 = vunpack.c.l.b16 %v3071
      %v3150 = vunpack.c.l.b16 %v3072
      %v3151 = vunpack.c.l.b16 %v3073
      %v3152 = vunpack.c.l.b16 %v3074
      %v3153 = vunpack.c.l.b16 %v3075
      %v3154 = vunpack.c.l.b16 %v3076
      %v3155 = vunpack.c.l.b16 %v3077
      %v3156 = vunpack.c.l.b16 %v3078
      %v3157 = vunpack.c.l.b16 %v3079
      %v3158 = vpack.c.b16 %v3135, %v3134
      %v3159 = vpack.c.b16 %v3137, %v3136
      %v3160 = vpack.c.b16 %v3139, %v3138
      %v3161 = vpack.c.b16 %v3141, %v3140
      %v3162 = vpack.c.b16 %v3143, %v3142
      %v3163 = vpack.c.b16 %v3145, %v3144
      %v3164 = vpack.c.b16 %v3147, %v3146
      %v3165 = vpack.c.b16 %v3149, %v3148
      %v3166 = vpack.c.b16 %v3151, %v3150
      %v3167 = vpack.c.b16 %v3153, %v3152
      %v3168 = vpack.c.b16 %v3155, %v3154
      %v3169 = vpack.c.b16 %v3157, %v3156
      %v3183 = vsel %vm592, %v3084, 0
      %v3186 = vsel %vm592, %v3086, 0
      %v3189 = vsel %vm592, %v3088, 0
      %v3192 = vsel %vm592, %v3090, 0
      %v3195 = vsel %vm592, %v3092, 0
      %v3198 = vsel %vm592, %v3094, 0
      %v3201 = vsel %vm592, %v3096, 0
      %v3204 = vsel %vm592, %v3098, 0
      %v3207 = vsel %vm592, %v3100, 0
      %3209 = vmatpush.bf16.msra.mxu0 %v3165
      %3210 = vmatpush.bf16.msra.mxu0 %v3164
      %3211 = vmatpush.bf16.msra.mxu0 %v3163
      %3212 = vmatpush.bf16.msra.mxu0 %v3162
      %3213 = vmatpush.bf16.msra.mxu0 %v3161
      %3214 = vmatpush.bf16.msra.mxu0 %v3160
      %3215 = vmatpush.bf16.msra.mxu0 %v3159
      %3216 = vmatpush.bf16.msra.mxu0 %v3158
      %3217 = vmatmul.bf16.gmra.mxu0 %v3083
      %v3218 = vpop.f32.mrf.mxu0
      %v3219 = vadd.f32 0.0, %v3218
      %v3220 = vpop.f32.mrf.mxu0
      %v3221 = vadd.f32 0.0, %v3220
      %3222 = vmatmul.bf16.gmra.mxu0 %v3085
      %v3223 = vpop.f32.mrf.mxu0
      %v3224 = vadd.f32 0.0, %v3223
      %v3225 = vpop.f32.mrf.mxu0
      %v3226 = vadd.f32 0.0, %v3225
      %3227 = vmatmul.bf16.gmra.mxu0 %v3087
      %v3228 = vpop.f32.mrf.mxu0
      %v3229 = vadd.f32 0.0, %v3228
      %v3230 = vpop.f32.mrf.mxu0
      %v3231 = vadd.f32 0.0, %v3230
      %3232 = vmatmul.bf16.gmra.mxu0 %v3089
      %v3233 = vpop.f32.mrf.mxu0
      %v3234 = vadd.f32 0.0, %v3233
      %v3235 = vpop.f32.mrf.mxu0
      %v3236 = vadd.f32 0.0, %v3235
      %3237 = vmatmul.bf16.gmra.mxu0 %v3091
      %v3238 = vpop.f32.mrf.mxu0
      %v3239 = vadd.f32 0.0, %v3238
      %v3240 = vpop.f32.mrf.mxu0
      %v3241 = vadd.f32 0.0, %v3240
      %3242 = vmatmul.bf16.gmra.mxu0 %v3093
      %v3243 = vpop.f32.mrf.mxu0
      %v3244 = vadd.f32 0.0, %v3243
      %v3245 = vpop.f32.mrf.mxu0
      %v3246 = vadd.f32 0.0, %v3245
      %3247 = vmatmul.bf16.gmra.mxu0 %v3095
      %v3248 = vpop.f32.mrf.mxu0
      %v3249 = vadd.f32 0.0, %v3248
      %v3250 = vpop.f32.mrf.mxu0
      %v3251 = vadd.f32 0.0, %v3250
      %3252 = vmatmul.bf16.gmra.mxu0 %v3097
      %v3253 = vpop.f32.mrf.mxu0
      %v3254 = vadd.f32 0.0, %v3253
      %v3255 = vpop.f32.mrf.mxu0
      %v3256 = vadd.f32 0.0, %v3255
      %3257 = vmatmul.bf16.gmra.mxu0 %v3099
      %v3258 = vpop.f32.mrf.mxu0
      %v3259 = vadd.f32 0.0, %v3258
      %v3260 = vpop.f32.mrf.mxu0
      %3261 = vdwg.mxu0
      %3262 = vmatpush.bf16.msra.mxu0 0
      %3263 = vmatpush.bf16.msra.mxu0 0
      %3264 = vmatpush.bf16.msra.mxu0 0
      %3265 = vmatpush.bf16.msra.mxu0 0
      %3266 = vmatpush.bf16.msra.mxu0 %v3169
      %3267 = vmatpush.bf16.msra.mxu0 %v3168
      %3268 = vmatpush.bf16.msra.mxu0 %v3167
      %3269 = vmatpush.bf16.msra.mxu0 %v3166
      %3270 = vmatmul.bf16.gmra.mxu0 %v3183
      %v3271 = vpop.f32.mrf.mxu0
      %v3272 = vadd.f32 %v3219, %v3271
      %v3273 = vpop.f32.mrf.mxu0
      %v3274 = vadd.f32 %v3221, %v3273
      %3275 = vmatmul.bf16.gmra.mxu0 %v3186
      %v3276 = vpop.f32.mrf.mxu0
      %v3277 = vadd.f32 %v3224, %v3276
      %v3278 = vpop.f32.mrf.mxu0
      %v3279 = vadd.f32 %v3226, %v3278
      %3280 = vmatmul.bf16.gmra.mxu0 %v3189
      %v3281 = vpop.f32.mrf.mxu0
      %v3282 = vadd.f32 %v3229, %v3281
      %v3283 = vpop.f32.mrf.mxu0
      %v3284 = vadd.f32 %v3231, %v3283
      %3285 = vmatmul.bf16.gmra.mxu0 %v3192
      %v3286 = vpop.f32.mrf.mxu0
      %v3287 = vadd.f32 %v3234, %v3286
      %v3288 = vpop.f32.mrf.mxu0
      %v3289 = vadd.f32 %v3236, %v3288
      %3290 = vmatmul.bf16.gmra.mxu0 %v3195
      %v3291 = vpop.f32.mrf.mxu0
      %v3292 = vadd.f32 %v3239, %v3291
      %v3293 = vpop.f32.mrf.mxu0
      %v3294 = vadd.f32 %v3241, %v3293
      %3295 = vmatmul.bf16.gmra.mxu0 %v3198
      %v3296 = vpop.f32.mrf.mxu0
      %v3297 = vadd.f32 %v3244, %v3296
      %v3298 = vpop.f32.mrf.mxu0
      %v3299 = vadd.f32 %v3246, %v3298
      %3300 = vmatmul.bf16.gmra.mxu0 %v3201
      %v3301 = vpop.f32.mrf.mxu0
      %v3302 = vadd.f32 %v3249, %v3301
      %v3303 = vpop.f32.mrf.mxu0
      %v3304 = vadd.f32 %v3251, %v3303
      %3305 = vmatmul.bf16.gmra.mxu0 %v3204
      %v3306 = vpop.f32.mrf.mxu0
      %v3307 = vadd.f32 %v3254, %v3306
      %v3308 = vpop.f32.mrf.mxu0
      %v3309 = vadd.f32 %v3256, %v3308
      %3310 = vmatmul.bf16.gmra.mxu0 %v3207
      %v3311 = vpop.f32.mrf.mxu0
      %v3312 = vadd.f32 %v3259, %v3311
      %v3313 = vpop.f32.mrf.mxu0
      %3314 = vdwg.mxu0
      %v3315 = vadd.f32 %v3038, %v3272
      %v3316 = vadd.f32 %v3039, %v3274
      %v3317 = vadd.f32 %v3040, %v3277
      %v3318 = vadd.f32 %v3041, %v3279
      %v3319 = vadd.f32 %v3042, %v3282
      %v3320 = vadd.f32 %v3043, %v3284
      %v3321 = vadd.f32 %v3044, %v3287
      %v3322 = vadd.f32 %v3045, %v3289
      %v3323 = vadd.f32 %v3046, %v3292
      %v3324 = vadd.f32 %v3047, %v3294
      %v3325 = vadd.f32 %v3048, %v3297
      %v3326 = vadd.f32 %v3049, %v3299
      %v3327 = vadd.f32 %v3050, %v3302
      %v3328 = vadd.f32 %v3051, %v3304
      %v3329 = vadd.f32 %v3052, %v3307
      %v3330 = vadd.f32 %v3053, %v3309
      %v3331 = vadd.f32 %v3054, %v3312
      %v3332 = vld [vmem:[#allocation3 + $0x48] sm:$0xff]
      %v3333 = vld [vmem:[#allocation3 + $0x50] sm:$0xff]
      %v3334 = vld [vmem:[#allocation3 + $0x58] sm:$0xff]
      %v3335 = vld [vmem:[#allocation3 + $0x60] sm:$0xff]
      %v3336 = vld [vmem:[#allocation3 + $0x68] sm:$0xff]
      %v3337 = vld [vmem:[#allocation3 + $0x70] sm:$0xff]
      %v3338 = vld [vmem:[#allocation3 + $0x78] sm:$0xff]
      %v3339 = vld [vmem:[#allocation3 + $0x80] sm:$0xff]
      %v3340 = vld [vmem:[#allocation3 + $0x88] sm:$0xff]
      %v3341 = vld [vmem:[#allocation3 + $0x90] sm:$0xff]
      %v3342 = vld [vmem:[#allocation3 + $0x98] sm:$0xff]
      %v3343 = vld [vmem:[#allocation3 + $0xa0] sm:$0xff]
      %v3344 = vld [vmem:[#allocation3 + $0xa8] sm:$0xff]
      %v3345 = vld [vmem:[#allocation3 + $0xb0] sm:$0xff]
      %v3346 = vld [vmem:[#allocation3 + $0xb8] sm:$0xff]
      %v3347 = vld [vmem:[#allocation3 + $0xc0] sm:$0xff]
      %v3348 = vld [vmem:[#allocation3 + $0xc8] sm:$0xff]
      %v3349 = vld [vmem:[%s3 + $0x240] sm:$0xf]
      %v3350 = vld [vmem:[%s3 + $0x244] sm:$0xf]
      %v3351 = vld [vmem:[%s3 + $0x248] sm:$0xf]
      %v3352 = vld [vmem:[%s3 + $0x24c] sm:$0xf]
      %v3353 = vld [vmem:[%s3 + $0x250] sm:$0xf]
      %v3354 = vld [vmem:[%s3 + $0x254] sm:$0xf]
      %v3355 = vld [vmem:[%s3 + $0x258] sm:$0xf]
      %v3356 = vld [vmem:[%s3 + $0x25c] sm:$0xf]
      %v3357 = vld [vmem:[%s3 + $0x260] sm:$0xf]
      %v3358 = vld [vmem:[%s3 + $0x264] sm:$0xf]
      %v3359 = vld [vmem:[%s3 + $0x268] sm:$0xf]
      %v3360 = vld [vmem:[%s3 + $0x26c] sm:$0xf]
      %v3361 = vld [vmem:[%s3 + $0x270] sm:$0xf]
      %v3362 = vld [vmem:[%s3 + $0x274] sm:$0xf]
      %v3363 = vld [vmem:[%s3 + $0x278] sm:$0xf]
      %v3364 = vld [vmem:[%s3 + $0x27c] sm:$0xf]
      %v3365 = vld [vmem:[%s3 + $0x280] sm:$0xf]
      %v3366 = vld [vmem:[%s3 + $0x284] sm:$0xf]
      %v3367 = vld [vmem:[%s3 + $0x288] sm:$0xf]
      %v3368 = vld [vmem:[%s3 + $0x28c] sm:$0xf]
      %v3369 = vld [vmem:[%s3 + $0x290] sm:$0xf]
      %v3370 = vld [vmem:[%s3 + $0x294] sm:$0xf]
      %v3371 = vld [vmem:[%s3 + $0x298] sm:$0xf]
      %v3372 = vld [vmem:[%s3 + $0x29c] sm:$0xf]
      %v3390 = vunpack.c.l.b16 %v3332
      %v3391 = vunpack.c.h.b16 %v3332
      %v3392 = vunpack.c.l.b16 %v3333
      %v3393 = vunpack.c.h.b16 %v3333
      %v3394 = vunpack.c.l.b16 %v3334
      %v3395 = vunpack.c.h.b16 %v3334
      %v3396 = vunpack.c.l.b16 %v3335
      %v3397 = vunpack.c.h.b16 %v3335
      %v3398 = vunpack.c.l.b16 %v3336
      %v3399 = vunpack.c.h.b16 %v3336
      %v3400 = vunpack.c.l.b16 %v3337
      %v3401 = vunpack.c.h.b16 %v3337
      %v3402 = vunpack.c.l.b16 %v3338
      %v3403 = vunpack.c.h.b16 %v3338
      %v3404 = vunpack.c.l.b16 %v3339
      %v3405 = vunpack.c.h.b16 %v3339
      %v3406 = vunpack.c.l.b16 %v3340
      %v3407 = vunpack.c.h.b16 %v3340
      %v3408 = vunpack.c.l.b16 %v3341
      %v3409 = vunpack.c.h.b16 %v3341
      %v3410 = vunpack.c.l.b16 %v3342
      %v3411 = vunpack.c.h.b16 %v3342
      %v3412 = vunpack.c.l.b16 %v3343
      %v3413 = vunpack.c.h.b16 %v3343
      %v3414 = vunpack.c.l.b16 %v3344
      %v3415 = vunpack.c.h.b16 %v3344
      %v3416 = vunpack.c.l.b16 %v3345
      %v3417 = vunpack.c.h.b16 %v3345
      %v3418 = vunpack.c.l.b16 %v3346
      %v3419 = vunpack.c.h.b16 %v3346
      %v3420 = vunpack.c.l.b16 %v3347
      %v3421 = vunpack.c.h.b16 %v3347
      %v3422 = vunpack.c.l.b16 %v3348
      %v3423 = vunpack.c.h.b16 %v3348
      %v3424 = vpack.c.b16 %v3392, %v3390
      %v3425 = vpack.c.b16 %v3393, %v3391
      %v3426 = vpack.c.b16 %v3396, %v3394
      %v3427 = vpack.c.b16 %v3397, %v3395
      %v3428 = vpack.c.b16 %v3400, %v3398
      %v3429 = vpack.c.b16 %v3401, %v3399
      %v3430 = vpack.c.b16 %v3404, %v3402
      %v3431 = vpack.c.b16 %v3405, %v3403
      %v3432 = vpack.c.b16 %v3408, %v3406
      %v3433 = vpack.c.b16 %v3409, %v3407
      %v3434 = vpack.c.b16 %v3412, %v3410
      %v3435 = vpack.c.b16 %v3413, %v3411
      %v3436 = vpack.c.b16 %v3416, %v3414
      %v3437 = vpack.c.b16 %v3417, %v3415
      %v3438 = vpack.c.b16 %v3420, %v3418
      %v3439 = vpack.c.b16 %v3421, %v3419
      %v3440 = vpack.c.b16 %v3422, %v3422
      %v3441 = vpack.c.b16 %v3423, %v3423
      %v3475 = vunpack.c.l.b16 %v3349
      %v3476 = vunpack.c.l.b16 %v3350
      %v3477 = vunpack.c.l.b16 %v3351
      %v3478 = vunpack.c.l.b16 %v3352
      %v3479 = vunpack.c.l.b16 %v3353
      %v3480 = vunpack.c.l.b16 %v3354
      %v3481 = vunpack.c.l.b16 %v3355
      %v3482 = vunpack.c.l.b16 %v3356
      %v3483 = vunpack.c.l.b16 %v3357
      %v3484 = vunpack.c.l.b16 %v3358
      %v3485 = vunpack.c.l.b16 %v3359
      %v3486 = vunpack.c.l.b16 %v3360
      %v3487 = vunpack.c.l.b16 %v3361
      %v3488 = vunpack.c.l.b16 %v3362
      %v3489 = vunpack.c.l.b16 %v3363
      %v3490 = vunpack.c.l.b16 %v3364
      %v3491 = vunpack.c.l.b16 %v3365
      %v3492 = vunpack.c.l.b16 %v3366
      %v3493 = vunpack.c.l.b16 %v3367
      %v3494 = vunpack.c.l.b16 %v3368
      %v3495 = vunpack.c.l.b16 %v3369
      %v3496 = vunpack.c.l.b16 %v3370
      %v3497 = vunpack.c.l.b16 %v3371
      %v3498 = vunpack.c.l.b16 %v3372
      %v3499 = vpack.c.b16 %v3476, %v3475
      %v3500 = vpack.c.b16 %v3478, %v3477
      %v3501 = vpack.c.b16 %v3480, %v3479
      %v3502 = vpack.c.b16 %v3482, %v3481
      %v3503 = vpack.c.b16 %v3484, %v3483
      %v3504 = vpack.c.b16 %v3486, %v3485
      %v3505 = vpack.c.b16 %v3488, %v3487
      %v3506 = vpack.c.b16 %v3490, %v3489
      %v3507 = vpack.c.b16 %v3492, %v3491
      %v3508 = vpack.c.b16 %v3494, %v3493
      %v3509 = vpack.c.b16 %v3496, %v3495
      %v3510 = vpack.c.b16 %v3498, %v3497
      %v3524 = vsel %vm592, %v3425, 0
      %v3527 = vsel %vm592, %v3427, 0
      %v3530 = vsel %vm592, %v3429, 0
      %v3533 = vsel %vm592, %v3431, 0
      %v3536 = vsel %vm592, %v3433, 0
      %v3539 = vsel %vm592, %v3435, 0
      %v3542 = vsel %vm592, %v3437, 0
      %v3545 = vsel %vm592, %v3439, 0
      %v3548 = vsel %vm592, %v3441, 0
      %3550 = vmatpush.bf16.msra.mxu0 %v3506
      %3551 = vmatpush.bf16.msra.mxu0 %v3505
      %3552 = vmatpush.bf16.msra.mxu0 %v3504
      %3553 = vmatpush.bf16.msra.mxu0 %v3503
      %3554 = vmatpush.bf16.msra.mxu0 %v3502
      %3555 = vmatpush.bf16.msra.mxu0 %v3501
      %3556 = vmatpush.bf16.msra.mxu0 %v3500
      %3557 = vmatpush.bf16.msra.mxu0 %v3499
      %3558 = vmatmul.bf16.gmra.mxu0 %v3424
      %v3559 = vpop.f32.mrf.mxu0
      %v3560 = vadd.f32 0.0, %v3559
      %v3561 = vpop.f32.mrf.mxu0
      %v3562 = vadd.f32 0.0, %v3561
      %3563 = vmatmul.bf16.gmra.mxu0 %v3426
      %v3564 = vpop.f32.mrf.mxu0
      %v3565 = vadd.f32 0.0, %v3564
      %v3566 = vpop.f32.mrf.mxu0
      %v3567 = vadd.f32 0.0, %v3566
      %3568 = vmatmul.bf16.gmra.mxu0 %v3428
      %v3569 = vpop.f32.mrf.mxu0
      %v3570 = vadd.f32 0.0, %v3569
      %v3571 = vpop.f32.mrf.mxu0
      %v3572 = vadd.f32 0.0, %v3571
      %3573 = vmatmul.bf16.gmra.mxu0 %v3430
      %v3574 = vpop.f32.mrf.mxu0
      %v3575 = vadd.f32 0.0, %v3574
      %v3576 = vpop.f32.mrf.mxu0
      %v3577 = vadd.f32 0.0, %v3576
      %3578 = vmatmul.bf16.gmra.mxu0 %v3432
      %v3579 = vpop.f32.mrf.mxu0
      %v3580 = vadd.f32 0.0, %v3579
      %v3581 = vpop.f32.mrf.mxu0
      %v3582 = vadd.f32 0.0, %v3581
      %3583 = vmatmul.bf16.gmra.mxu0 %v3434
      %v3584 = vpop.f32.mrf.mxu0
      %v3585 = vadd.f32 0.0, %v3584
      %v3586 = vpop.f32.mrf.mxu0
      %v3587 = vadd.f32 0.0, %v3586
      %3588 = vmatmul.bf16.gmra.mxu0 %v3436
      %v3589 = vpop.f32.mrf.mxu0
      %v3590 = vadd.f32 0.0, %v3589
      %v3591 = vpop.f32.mrf.mxu0
      %v3592 = vadd.f32 0.0, %v3591
      %3593 = vmatmul.bf16.gmra.mxu0 %v3438
      %v3594 = vpop.f32.mrf.mxu0
      %v3595 = vadd.f32 0.0, %v3594
      %v3596 = vpop.f32.mrf.mxu0
      %v3597 = vadd.f32 0.0, %v3596
      %3598 = vmatmul.bf16.gmra.mxu0 %v3440
      %v3599 = vpop.f32.mrf.mxu0
      %v3600 = vadd.f32 0.0, %v3599
      %v3601 = vpop.f32.mrf.mxu0
      %3602 = vdwg.mxu0
      %3603 = vmatpush.bf16.msra.mxu0 0
      %3604 = vmatpush.bf16.msra.mxu0 0
      %3605 = vmatpush.bf16.msra.mxu0 0
      %3606 = vmatpush.bf16.msra.mxu0 0
      %3607 = vmatpush.bf16.msra.mxu0 %v3510
      %3608 = vmatpush.bf16.msra.mxu0 %v3509
      %3609 = vmatpush.bf16.msra.mxu0 %v3508
      %3610 = vmatpush.bf16.msra.mxu0 %v3507
      %3611 = vmatmul.bf16.gmra.mxu0 %v3524
      %v3612 = vpop.f32.mrf.mxu0
      %v3613 = vadd.f32 %v3560, %v3612
      %v3614 = vpop.f32.mrf.mxu0
      %v3615 = vadd.f32 %v3562, %v3614
      %3616 = vmatmul.bf16.gmra.mxu0 %v3527
      %v3617 = vpop.f32.mrf.mxu0
      %v3618 = vadd.f32 %v3565, %v3617
      %v3619 = vpop.f32.mrf.mxu0
      %v3620 = vadd.f32 %v3567, %v3619
      %3621 = vmatmul.bf16.gmra.mxu0 %v3530
      %v3622 = vpop.f32.mrf.mxu0
      %v3623 = vadd.f32 %v3570, %v3622
      %v3624 = vpop.f32.mrf.mxu0
      %v3625 = vadd.f32 %v3572, %v3624
      %3626 = vmatmul.bf16.gmra.mxu0 %v3533
      %v3627 = vpop.f32.mrf.mxu0
      %v3628 = vadd.f32 %v3575, %v3627
      %v3629 = vpop.f32.mrf.mxu0
      %v3630 = vadd.f32 %v3577, %v3629
      %3631 = vmatmul.bf16.gmra.mxu0 %v3536
      %v3632 = vpop.f32.mrf.mxu0
      %v3633 = vadd.f32 %v3580, %v3632
      %v3634 = vpop.f32.mrf.mxu0
      %v3635 = vadd.f32 %v3582, %v3634
      %3636 = vmatmul.bf16.gmra.mxu0 %v3539
      %v3637 = vpop.f32.mrf.mxu0
      %v3638 = vadd.f32 %v3585, %v3637
      %v3639 = vpop.f32.mrf.mxu0
      %v3640 = vadd.f32 %v3587, %v3639
      %3641 = vmatmul.bf16.gmra.mxu0 %v3542
      %v3642 = vpop.f32.mrf.mxu0
      %v3643 = vadd.f32 %v3590, %v3642
      %v3644 = vpop.f32.mrf.mxu0
      %v3645 = vadd.f32 %v3592, %v3644
      %3646 = vmatmul.bf16.gmra.mxu0 %v3545
      %v3647 = vpop.f32.mrf.mxu0
      %v3648 = vadd.f32 %v3595, %v3647
      %v3649 = vpop.f32.mrf.mxu0
      %v3650 = vadd.f32 %v3597, %v3649
      %3651 = vmatmul.bf16.gmra.mxu0 %v3548
      %v3652 = vpop.f32.mrf.mxu0
      %v3653 = vadd.f32 %v3600, %v3652
      %v3654 = vpop.f32.mrf.mxu0
      %3655 = vdwg.mxu0
      %v3656 = vadd.f32 %v3315, %v3613
      %v3657 = vadd.f32 %v3316, %v3615
      %v3658 = vadd.f32 %v3317, %v3618
      %v3659 = vadd.f32 %v3318, %v3620
      %v3660 = vadd.f32 %v3319, %v3623
      %v3661 = vadd.f32 %v3320, %v3625
      %v3662 = vadd.f32 %v3321, %v3628
      %v3663 = vadd.f32 %v3322, %v3630
      %v3664 = vadd.f32 %v3323, %v3633
      %v3665 = vadd.f32 %v3324, %v3635
      %v3666 = vadd.f32 %v3325, %v3638
      %v3667 = vadd.f32 %v3326, %v3640
      %v3668 = vadd.f32 %v3327, %v3643
      %v3669 = vadd.f32 %v3328, %v3645
      %v3670 = vadd.f32 %v3329, %v3648
      %v3671 = vadd.f32 %v3330, %v3650
      %v3672 = vadd.f32 %v3331, %v3653
      %v3673 = vld [vmem:[#allocation3 + $0x48] sm:$0x88]
      %v3674 = vld [vmem:[#allocation3 + $0x50] sm:$0xff]
      %v3675 = vld [vmem:[#allocation3 + $0x58] sm:$0xff]
      %v3676 = vld [vmem:[#allocation3 + $0x60] sm:$0xff]
      %v3677 = vld [vmem:[#allocation3 + $0x68] sm:$0xff]
      %v3678 = vld [vmem:[#allocation3 + $0x70] sm:$0xff]
      %v3679 = vld [vmem:[#allocation3 + $0x78] sm:$0xff]
      %v3680 = vld [vmem:[#allocation3 + $0x80] sm:$0xff]
      %v3681 = vld [vmem:[#allocation3 + $0x88] sm:$0xff]
      %v3682 = vld [vmem:[#allocation3 + $0x90] sm:$0xff]
      %v3683 = vld [vmem:[#allocation3 + $0x98] sm:$0xff]
      %v3684 = vld [vmem:[#allocation3 + $0xa0] sm:$0xff]
      %v3685 = vld [vmem:[#allocation3 + $0xa8] sm:$0xff]
      %v3686 = vld [vmem:[#allocation3 + $0xb0] sm:$0xff]
      %v3687 = vld [vmem:[#allocation3 + $0xb8] sm:$0xff]
      %v3688 = vld [vmem:[#allocation3 + $0xc0] sm:$0xff]
      %v3689 = vld [vmem:[#allocation3 + $0xc8] sm:$0xff]
      %v3690 = vld [vmem:[#allocation3 + $0xd0] sm:$0x77]
      %v3691 = vld [vmem:[%s3 + $0x2a0] sm:$0xf]
      %v3692 = vld [vmem:[%s3 + $0x2a4] sm:$0xf]
      %v3693 = vld [vmem:[%s3 + $0x2a8] sm:$0xf]
      %v3694 = vld [vmem:[%s3 + $0x2ac] sm:$0xf]
      %v3695 = vld [vmem:[%s3 + $0x2b0] sm:$0xf]
      %v3696 = vld [vmem:[%s3 + $0x2b4] sm:$0xf]
      %v3697 = vld [vmem:[%s3 + $0x2b8] sm:$0xf]
      %v3698 = vld [vmem:[%s3 + $0x2bc] sm:$0xf]
      %v3699 = vld [vmem:[%s3 + $0x2c0] sm:$0xf]
      %v3700 = vld [vmem:[%s3 + $0x2c4] sm:$0xf]
      %v3701 = vld [vmem:[%s3 + $0x2c8] sm:$0xf]
      %v3702 = vld [vmem:[%s3 + $0x2cc] sm:$0xf]
      %v3703 = vld [vmem:[%s3 + $0x2d0] sm:$0xf]
      %v3704 = vld [vmem:[%s3 + $0x2d4] sm:$0xf]
      %v3705 = vld [vmem:[%s3 + $0x2d8] sm:$0xf]
      %v3706 = vld [vmem:[%s3 + $0x2dc] sm:$0xf]
      %v3707 = vld [vmem:[%s3 + $0x2e0] sm:$0xf]
      %v3708 = vld [vmem:[%s3 + $0x2e4] sm:$0xf]
      %v3709 = vld [vmem:[%s3 + $0x2e8] sm:$0xf]
      %v3710 = vld [vmem:[%s3 + $0x2ec] sm:$0xf]
      %v3711 = vld [vmem:[%s3 + $0x2f0] sm:$0xf]
      %v3712 = vld [vmem:[%s3 + $0x2f4] sm:$0xf]
      %v3713 = vld [vmem:[%s3 + $0x2f8] sm:$0xf]
      %v3714 = vld [vmem:[%s3 + $0x2fc] sm:$0xf]
      %v3733 = vunpack.c.l.b16 %v3673
      %v3734 = vunpack.c.h.b16 %v3673
      %v3735 = vunpack.c.l.b16 %v3674
      %v3736 = vunpack.c.h.b16 %v3674
      %v3737 = vunpack.c.l.b16 %v3675
      %v3738 = vunpack.c.h.b16 %v3675
      %v3739 = vunpack.c.l.b16 %v3676
      %v3740 = vunpack.c.h.b16 %v3676
      %v3741 = vunpack.c.l.b16 %v3677
      %v3742 = vunpack.c.h.b16 %v3677
      %v3743 = vunpack.c.l.b16 %v3678
      %v3744 = vunpack.c.h.b16 %v3678
      %v3745 = vunpack.c.l.b16 %v3679
      %v3746 = vunpack.c.h.b16 %v3679
      %v3747 = vunpack.c.l.b16 %v3680
      %v3748 = vunpack.c.h.b16 %v3680
      %v3749 = vunpack.c.l.b16 %v3681
      %v3750 = vunpack.c.h.b16 %v3681
      %v3751 = vunpack.c.l.b16 %v3682
      %v3752 = vunpack.c.h.b16 %v3682
      %v3753 = vunpack.c.l.b16 %v3683
      %v3754 = vunpack.c.h.b16 %v3683
      %v3755 = vunpack.c.l.b16 %v3684
      %v3756 = vunpack.c.h.b16 %v3684
      %v3757 = vunpack.c.l.b16 %v3685
      %v3758 = vunpack.c.h.b16 %v3685
      %v3759 = vunpack.c.l.b16 %v3686
      %v3760 = vunpack.c.h.b16 %v3686
      %v3761 = vunpack.c.l.b16 %v3687
      %v3762 = vunpack.c.h.b16 %v3687
      %v3763 = vunpack.c.l.b16 %v3688
      %v3764 = vunpack.c.h.b16 %v3688
      %v3765 = vunpack.c.l.b16 %v3689
      %v3766 = vunpack.c.h.b16 %v3689
      %v3767 = vunpack.c.l.b16 %v3690
      %v3768 = vunpack.c.h.b16 %v3690
      %v3769 = vpack.c.b16 %v3735, %v3733
      %v3770 = vpack.c.b16 %v3736, %v3734
      %v3771 = vpack.c.b16 %v3739, %v3737
      %v3772 = vpack.c.b16 %v3740, %v3738
      %v3773 = vpack.c.b16 %v3743, %v3741
      %v3774 = vpack.c.b16 %v3744, %v3742
      %v3775 = vpack.c.b16 %v3747, %v3745
      %v3776 = vpack.c.b16 %v3748, %v3746
      %v3777 = vpack.c.b16 %v3751, %v3749
      %v3778 = vpack.c.b16 %v3752, %v3750
      %v3779 = vpack.c.b16 %v3755, %v3753
      %v3780 = vpack.c.b16 %v3756, %v3754
      %v3781 = vpack.c.b16 %v3759, %v3757
      %v3782 = vpack.c.b16 %v3760, %v3758
      %v3783 = vpack.c.b16 %v3763, %v3761
      %v3784 = vpack.c.b16 %v3764, %v3762
      %v3785 = vpack.c.b16 %v3767, %v3765
      %v3786 = vpack.c.b16 %v3768, %v3766
      %v3787 = vrot.slane %v3769, 3
      %v3788 = vrot.slane %v3771, 3
      %v3789 = vsel %vm1446, %v3787, %v3788
      %v3790 = vrot.slane %v3770, 3
      %v3791 = vrot.slane %v3772, 3
      %v3792 = vsel %vm1446, %v3790, %v3791
      %v3793 = vrot.slane %v3773, 3
      %v3794 = vsel %vm1446, %v3788, %v3793
      %v3795 = vrot.slane %v3774, 3
      %v3796 = vsel %vm1446, %v3791, %v3795
      %v3797 = vrot.slane %v3775, 3
      %v3798 = vsel %vm1446, %v3793, %v3797
      %v3799 = vrot.slane %v3776, 3
      %v3800 = vsel %vm1446, %v3795, %v3799
      %v3801 = vrot.slane %v3777, 3
      %v3802 = vsel %vm1446, %v3797, %v3801
      %v3803 = vrot.slane %v3778, 3
      %v3804 = vsel %vm1446, %v3799, %v3803
      %v3805 = vrot.slane %v3779, 3
      %v3806 = vsel %vm1446, %v3801, %v3805
      %v3807 = vrot.slane %v3780, 3
      %v3808 = vsel %vm1446, %v3803, %v3807
      %v3809 = vrot.slane %v3781, 3
      %v3810 = vsel %vm1446, %v3805, %v3809
      %v3811 = vrot.slane %v3782, 3
      %v3812 = vsel %vm1446, %v3807, %v3811
      %v3813 = vrot.slane %v3783, 3
      %v3814 = vsel %vm1446, %v3809, %v3813
      %v3815 = vrot.slane %v3784, 3
      %v3816 = vsel %vm1446, %v3811, %v3815
      %v3817 = vrot.slane %v3785, 3
      %v3818 = vsel %vm1446, %v3813, %v3817
      %v3819 = vrot.slane %v3786, 3
      %v3820 = vsel %vm1446, %v3815, %v3819
      %v3854 = vunpack.c.l.b16 %v3691
      %v3855 = vunpack.c.l.b16 %v3692
      %v3856 = vunpack.c.l.b16 %v3693
      %v3857 = vunpack.c.l.b16 %v3694
      %v3858 = vunpack.c.l.b16 %v3695
      %v3859 = vunpack.c.l.b16 %v3696
      %v3860 = vunpack.c.l.b16 %v3697
      %v3861 = vunpack.c.l.b16 %v3698
      %v3862 = vunpack.c.l.b16 %v3699
      %v3863 = vunpack.c.l.b16 %v3700
      %v3864 = vunpack.c.l.b16 %v3701
      %v3865 = vunpack.c.l.b16 %v3702
      %v3866 = vunpack.c.l.b16 %v3703
      %v3867 = vunpack.c.l.b16 %v3704
      %v3868 = vunpack.c.l.b16 %v3705
      %v3869 = vunpack.c.l.b16 %v3706
      %v3870 = vunpack.c.l.b16 %v3707
      %v3871 = vunpack.c.l.b16 %v3708
      %v3872 = vunpack.c.l.b16 %v3709
      %v3873 = vunpack.c.l.b16 %v3710
      %v3874 = vunpack.c.l.b16 %v3711
      %v3875 = vunpack.c.l.b16 %v3712
      %v3876 = vunpack.c.l.b16 %v3713
      %v3877 = vunpack.c.l.b16 %v3714
      %v3878 = vpack.c.b16 %v3855, %v3854
      %v3879 = vpack.c.b16 %v3857, %v3856
      %v3880 = vpack.c.b16 %v3859, %v3858
      %v3881 = vpack.c.b16 %v3861, %v3860
      %v3882 = vpack.c.b16 %v3863, %v3862
      %v3883 = vpack.c.b16 %v3865, %v3864
      %v3884 = vpack.c.b16 %v3867, %v3866
      %v3885 = vpack.c.b16 %v3869, %v3868
      %v3886 = vpack.c.b16 %v3871, %v3870
      %v3887 = vpack.c.b16 %v3873, %v3872
      %v3888 = vpack.c.b16 %v3875, %v3874
      %v3889 = vpack.c.b16 %v3877, %v3876
      %v3903 = vsel %vm592, %v3792, 0
      %v3906 = vsel %vm592, %v3796, 0
      %v3909 = vsel %vm592, %v3800, 0
      %v3912 = vsel %vm592, %v3804, 0
      %v3915 = vsel %vm592, %v3808, 0
      %v3918 = vsel %vm592, %v3812, 0
      %v3921 = vsel %vm592, %v3816, 0
      %v3924 = vsel %vm592, %v3820, 0
      %v3927 = vsel %vm592, %v3819, 0
      %3929 = vmatpush.bf16.msra.mxu0 %v3885
      %3930 = vmatpush.bf16.msra.mxu0 %v3884
      %3931 = vmatpush.bf16.msra.mxu0 %v3883
      %3932 = vmatpush.bf16.msra.mxu0 %v3882
      %3933 = vmatpush.bf16.msra.mxu0 %v3881
      %3934 = vmatpush.bf16.msra.mxu0 %v3880
      %3935 = vmatpush.bf16.msra.mxu0 %v3879
      %3936 = vmatpush.bf16.msra.mxu0 %v3878
      %3937 = vmatmul.bf16.gmra.mxu0 %v3789
      %v3938 = vpop.f32.mrf.mxu0
      %v3939 = vadd.f32 0.0, %v3938
      %v3940 = vpop.f32.mrf.mxu0
      %v3941 = vadd.f32 0.0, %v3940
      %3942 = vmatmul.bf16.gmra.mxu0 %v3794
      %v3943 = vpop.f32.mrf.mxu0
      %v3944 = vadd.f32 0.0, %v3943
      %v3945 = vpop.f32.mrf.mxu0
      %v3946 = vadd.f32 0.0, %v3945
      %3947 = vmatmul.bf16.gmra.mxu0 %v3798
      %v3948 = vpop.f32.mrf.mxu0
      %v3949 = vadd.f32 0.0, %v3948
      %v3950 = vpop.f32.mrf.mxu0
      %v3951 = vadd.f32 0.0, %v3950
      %3952 = vmatmul.bf16.gmra.mxu0 %v3802
      %v3953 = vpop.f32.mrf.mxu0
      %v3954 = vadd.f32 0.0, %v3953
      %v3955 = vpop.f32.mrf.mxu0
      %v3956 = vadd.f32 0.0, %v3955
      %3957 = vmatmul.bf16.gmra.mxu0 %v3806
      %v3958 = vpop.f32.mrf.mxu0
      %v3959 = vadd.f32 0.0, %v3958
      %v3960 = vpop.f32.mrf.mxu0
      %v3961 = vadd.f32 0.0, %v3960
      %3962 = vmatmul.bf16.gmra.mxu0 %v3810
      %v3963 = vpop.f32.mrf.mxu0
      %v3964 = vadd.f32 0.0, %v3963
      %v3965 = vpop.f32.mrf.mxu0
      %v3966 = vadd.f32 0.0, %v3965
      %3967 = vmatmul.bf16.gmra.mxu0 %v3814
      %v3968 = vpop.f32.mrf.mxu0
      %v3969 = vadd.f32 0.0, %v3968
      %v3970 = vpop.f32.mrf.mxu0
      %v3971 = vadd.f32 0.0, %v3970
      %3972 = vmatmul.bf16.gmra.mxu0 %v3818
      %v3973 = vpop.f32.mrf.mxu0
      %v3974 = vadd.f32 0.0, %v3973
      %v3975 = vpop.f32.mrf.mxu0
      %v3976 = vadd.f32 0.0, %v3975
      %3977 = vmatmul.bf16.gmra.mxu0 %v3817
      %v3978 = vpop.f32.mrf.mxu0
      %v3979 = vadd.f32 0.0, %v3978
      %v3980 = vpop.f32.mrf.mxu0
      %3981 = vdwg.mxu0
      %3982 = vmatpush.bf16.msra.mxu0 0
      %3983 = vmatpush.bf16.msra.mxu0 0
      %3984 = vmatpush.bf16.msra.mxu0 0
      %3985 = vmatpush.bf16.msra.mxu0 0
      %3986 = vmatpush.bf16.msra.mxu0 %v3889
      %3987 = vmatpush.bf16.msra.mxu0 %v3888
      %3988 = vmatpush.bf16.msra.mxu0 %v3887
      %3989 = vmatpush.bf16.msra.mxu0 %v3886
      %3990 = vmatmul.bf16.gmra.mxu0 %v3903
      %v3991 = vpop.f32.mrf.mxu0
      %v3992 = vadd.f32 %v3939, %v3991
      %v3993 = vpop.f32.mrf.mxu0
      %v3994 = vadd.f32 %v3941, %v3993
      %3995 = vmatmul.bf16.gmra.mxu0 %v3906
      %v3996 = vpop.f32.mrf.mxu0
      %v3997 = vadd.f32 %v3944, %v3996
      %v3998 = vpop.f32.mrf.mxu0
      %v3999 = vadd.f32 %v3946, %v3998
      %4000 = vmatmul.bf16.gmra.mxu0 %v3909
      %v4001 = vpop.f32.mrf.mxu0
      %v4002 = vadd.f32 %v3949, %v4001
      %v4003 = vpop.f32.mrf.mxu0
      %v4004 = vadd.f32 %v3951, %v4003
      %4005 = vmatmul.bf16.gmra.mxu0 %v3912
      %v4006 = vpop.f32.mrf.mxu0
      %v4007 = vadd.f32 %v3954, %v4006
      %v4008 = vpop.f32.mrf.mxu0
      %v4009 = vadd.f32 %v3956, %v4008
      %4010 = vmatmul.bf16.gmra.mxu0 %v3915
      %v4011 = vpop.f32.mrf.mxu0
      %v4012 = vadd.f32 %v3959, %v4011
      %v4013 = vpop.f32.mrf.mxu0
      %v4014 = vadd.f32 %v3961, %v4013
      %4015 = vmatmul.bf16.gmra.mxu0 %v3918
      %v4016 = vpop.f32.mrf.mxu0
      %v4017 = vadd.f32 %v3964, %v4016
      %v4018 = vpop.f32.mrf.mxu0
      %v4019 = vadd.f32 %v3966, %v4018
      %4020 = vmatmul.bf16.gmra.mxu0 %v3921
      %v4021 = vpop.f32.mrf.mxu0
      %v4022 = vadd.f32 %v3969, %v4021
      %v4023 = vpop.f32.mrf.mxu0
      %v4024 = vadd.f32 %v3971, %v4023
      %4025 = vmatmul.bf16.gmra.mxu0 %v3924
      %v4026 = vpop.f32.mrf.mxu0
      %v4027 = vadd.f32 %v3974, %v4026
      %v4028 = vpop.f32.mrf.mxu0
      %v4029 = vadd.f32 %v3976, %v4028
      %4030 = vmatmul.bf16.gmra.mxu0 %v3927
      %v4031 = vpop.f32.mrf.mxu0
      %v4032 = vadd.f32 %v3979, %v4031
      %v4033 = vpop.f32.mrf.mxu0
      %4034 = vdwg.mxu0
      %v4035 = vadd.f32 %v3656, %v3992
      %v4036 = vadd.f32 %v3657, %v3994
      %v4037 = vadd.f32 %v3658, %v3997
      %v4038 = vadd.f32 %v3659, %v3999
      %v4039 = vadd.f32 %v3660, %v4002
      %v4040 = vadd.f32 %v3661, %v4004
      %v4041 = vadd.f32 %v3662, %v4007
      %v4042 = vadd.f32 %v3663, %v4009
      %v4043 = vadd.f32 %v3664, %v4012
      %v4044 = vadd.f32 %v3665, %v4014
      %v4045 = vadd.f32 %v3666, %v4017
      %v4046 = vadd.f32 %v3667, %v4019
      %v4047 = vadd.f32 %v3668, %v4022
      %v4048 = vadd.f32 %v3669, %v4024
      %v4049 = vadd.f32 %v3670, %v4027
      %v4050 = vadd.f32 %v3671, %v4029
      %v4051 = vadd.f32 %v3672, %v4032
      %v4052 = vld [vmem:[#allocation3 + $0x50] sm:$0xcc]
      %v4053 = vld [vmem:[#allocation3 + $0x58] sm:$0xff]
      %v4054 = vld [vmem:[#allocation3 + $0x60] sm:$0xff]
      %v4055 = vld [vmem:[#allocation3 + $0x68] sm:$0xff]
      %v4056 = vld [vmem:[#allocation3 + $0x70] sm:$0xff]
      %v4057 = vld [vmem:[#allocation3 + $0x78] sm:$0xff]
      %v4058 = vld [vmem:[#allocation3 + $0x80] sm:$0xff]
      %v4059 = vld [vmem:[#allocation3 + $0x88] sm:$0xff]
      %v4060 = vld [vmem:[#allocation3 + $0x90] sm:$0xff]
      %v4061 = vld [vmem:[#allocation3 + $0x98] sm:$0xff]
      %v4062 = vld [vmem:[#allocation3 + $0xa0] sm:$0xff]
      %v4063 = vld [vmem:[#allocation3 + $0xa8] sm:$0xff]
      %v4064 = vld [vmem:[#allocation3 + $0xb0] sm:$0xff]
      %v4065 = vld [vmem:[#allocation3 + $0xb8] sm:$0xff]
      %v4066 = vld [vmem:[#allocation3 + $0xc0] sm:$0xff]
      %v4067 = vld [vmem:[#allocation3 + $0xc8] sm:$0xff]
      %v4068 = vld [vmem:[#allocation3 + $0xd0] sm:$0xff]
      %v4069 = vld [vmem:[#allocation3 + $0xd8] sm:$0x33]
      %v4070 = vld [vmem:[%s3 + $0x300] sm:$0xf]
      %v4071 = vld [vmem:[%s3 + $0x304] sm:$0xf]
      %v4072 = vld [vmem:[%s3 + $0x308] sm:$0xf]
      %v4073 = vld [vmem:[%s3 + $0x30c] sm:$0xf]
      %v4074 = vld [vmem:[%s3 + $0x310] sm:$0xf]
      %v4075 = vld [vmem:[%s3 + $0x314] sm:$0xf]
      %v4076 = vld [vmem:[%s3 + $0x318] sm:$0xf]
      %v4077 = vld [vmem:[%s3 + $0x31c] sm:$0xf]
      %v4078 = vld [vmem:[%s3 + $0x320] sm:$0xf]
      %v4079 = vld [vmem:[%s3 + $0x324] sm:$0xf]
      %v4080 = vld [vmem:[%s3 + $0x328] sm:$0xf]
      %v4081 = vld [vmem:[%s3 + $0x32c] sm:$0xf]
      %v4082 = vld [vmem:[%s3 + $0x330] sm:$0xf]
      %v4083 = vld [vmem:[%s3 + $0x334] sm:$0xf]
      %v4084 = vld [vmem:[%s3 + $0x338] sm:$0xf]
      %v4085 = vld [vmem:[%s3 + $0x33c] sm:$0xf]
      %v4086 = vld [vmem:[%s3 + $0x340] sm:$0xf]
      %v4087 = vld [vmem:[%s3 + $0x344] sm:$0xf]
      %v4088 = vld [vmem:[%s3 + $0x348] sm:$0xf]
      %v4089 = vld [vmem:[%s3 + $0x34c] sm:$0xf]
      %v4090 = vld [vmem:[%s3 + $0x350] sm:$0xf]
      %v4091 = vld [vmem:[%s3 + $0x354] sm:$0xf]
      %v4092 = vld [vmem:[%s3 + $0x358] sm:$0xf]
      %v4093 = vld [vmem:[%s3 + $0x35c] sm:$0xf]
      %v4112 = vunpack.c.l.b16 %v4052
      %v4113 = vunpack.c.h.b16 %v4052
      %v4114 = vunpack.c.l.b16 %v4053
      %v4115 = vunpack.c.h.b16 %v4053
      %v4116 = vunpack.c.l.b16 %v4054
      %v4117 = vunpack.c.h.b16 %v4054
      %v4118 = vunpack.c.l.b16 %v4055
      %v4119 = vunpack.c.h.b16 %v4055
      %v4120 = vunpack.c.l.b16 %v4056
      %v4121 = vunpack.c.h.b16 %v4056
      %v4122 = vunpack.c.l.b16 %v4057
      %v4123 = vunpack.c.h.b16 %v4057
      %v4124 = vunpack.c.l.b16 %v4058
      %v4125 = vunpack.c.h.b16 %v4058
      %v4126 = vunpack.c.l.b16 %v4059
      %v4127 = vunpack.c.h.b16 %v4059
      %v4128 = vunpack.c.l.b16 %v4060
      %v4129 = vunpack.c.h.b16 %v4060
      %v4130 = vunpack.c.l.b16 %v4061
      %v4131 = vunpack.c.h.b16 %v4061
      %v4132 = vunpack.c.l.b16 %v4062
      %v4133 = vunpack.c.h.b16 %v4062
      %v4134 = vunpack.c.l.b16 %v4063
      %v4135 = vunpack.c.h.b16 %v4063
      %v4136 = vunpack.c.l.b16 %v4064
      %v4137 = vunpack.c.h.b16 %v4064
      %v4138 = vunpack.c.l.b16 %v4065
      %v4139 = vunpack.c.h.b16 %v4065
      %v4140 = vunpack.c.l.b16 %v4066
      %v4141 = vunpack.c.h.b16 %v4066
      %v4142 = vunpack.c.l.b16 %v4067
      %v4143 = vunpack.c.h.b16 %v4067
      %v4144 = vunpack.c.l.b16 %v4068
      %v4145 = vunpack.c.h.b16 %v4068
      %v4146 = vunpack.c.l.b16 %v4069
      %v4147 = vunpack.c.h.b16 %v4069
      %v4148 = vpack.c.b16 %v4114, %v4112
      %v4149 = vpack.c.b16 %v4115, %v4113
      %v4150 = vpack.c.b16 %v4118, %v4116
      %v4151 = vpack.c.b16 %v4119, %v4117
      %v4152 = vpack.c.b16 %v4122, %v4120
      %v4153 = vpack.c.b16 %v4123, %v4121
      %v4154 = vpack.c.b16 %v4126, %v4124
      %v4155 = vpack.c.b16 %v4127, %v4125
      %v4156 = vpack.c.b16 %v4130, %v4128
      %v4157 = vpack.c.b16 %v4131, %v4129
      %v4158 = vpack.c.b16 %v4134, %v4132
      %v4159 = vpack.c.b16 %v4135, %v4133
      %v4160 = vpack.c.b16 %v4138, %v4136
      %v4161 = vpack.c.b16 %v4139, %v4137
      %v4162 = vpack.c.b16 %v4142, %v4140
      %v4163 = vpack.c.b16 %v4143, %v4141
      %v4164 = vpack.c.b16 %v4146, %v4144
      %v4165 = vpack.c.b16 %v4147, %v4145
      %v4166 = vrot.slane %v4148, 2
      %v4167 = vrot.slane %v4150, 2
      %v4168 = vsel %vm2030, %v4166, %v4167
      %v4169 = vrot.slane %v4149, 2
      %v4170 = vrot.slane %v4151, 2
      %v4171 = vsel %vm2030, %v4169, %v4170
      %v4172 = vrot.slane %v4152, 2
      %v4173 = vsel %vm2030, %v4167, %v4172
      %v4174 = vrot.slane %v4153, 2
      %v4175 = vsel %vm2030, %v4170, %v4174
      %v4176 = vrot.slane %v4154, 2
      %v4177 = vsel %vm2030, %v4172, %v4176
      %v4178 = vrot.slane %v4155, 2
      %v4179 = vsel %vm2030, %v4174, %v4178
      %v4180 = vrot.slane %v4156, 2
      %v4181 = vsel %vm2030, %v4176, %v4180
      %v4182 = vrot.slane %v4157, 2
      %v4183 = vsel %vm2030, %v4178, %v4182
      %v4184 = vrot.slane %v4158, 2
      %v4185 = vsel %vm2030, %v4180, %v4184
      %v4186 = vrot.slane %v4159, 2
      %v4187 = vsel %vm2030, %v4182, %v4186
      %v4188 = vrot.slane %v4160, 2
      %v4189 = vsel %vm2030, %v4184, %v4188
      %v4190 = vrot.slane %v4161, 2
      %v4191 = vsel %vm2030, %v4186, %v4190
      %v4192 = vrot.slane %v4162, 2
      %v4193 = vsel %vm2030, %v4188, %v4192
      %v4194 = vrot.slane %v4163, 2
      %v4195 = vsel %vm2030, %v4190, %v4194
      %v4196 = vrot.slane %v4164, 2
      %v4197 = vsel %vm2030, %v4192, %v4196
      %v4198 = vrot.slane %v4165, 2
      %v4199 = vsel %vm2030, %v4194, %v4198
      %v4233 = vunpack.c.l.b16 %v4070
      %v4234 = vunpack.c.l.b16 %v4071
      %v4235 = vunpack.c.l.b16 %v4072
      %v4236 = vunpack.c.l.b16 %v4073
      %v4237 = vunpack.c.l.b16 %v4074
      %v4238 = vunpack.c.l.b16 %v4075
      %v4239 = vunpack.c.l.b16 %v4076
      %v4240 = vunpack.c.l.b16 %v4077
      %v4241 = vunpack.c.l.b16 %v4078
      %v4242 = vunpack.c.l.b16 %v4079
      %v4243 = vunpack.c.l.b16 %v4080
      %v4244 = vunpack.c.l.b16 %v4081
      %v4245 = vunpack.c.l.b16 %v4082
      %v4246 = vunpack.c.l.b16 %v4083
      %v4247 = vunpack.c.l.b16 %v4084
      %v4248 = vunpack.c.l.b16 %v4085
      %v4249 = vunpack.c.l.b16 %v4086
      %v4250 = vunpack.c.l.b16 %v4087
      %v4251 = vunpack.c.l.b16 %v4088
      %v4252 = vunpack.c.l.b16 %v4089
      %v4253 = vunpack.c.l.b16 %v4090
      %v4254 = vunpack.c.l.b16 %v4091
      %v4255 = vunpack.c.l.b16 %v4092
      %v4256 = vunpack.c.l.b16 %v4093
      %v4257 = vpack.c.b16 %v4234, %v4233
      %v4258 = vpack.c.b16 %v4236, %v4235
      %v4259 = vpack.c.b16 %v4238, %v4237
      %v4260 = vpack.c.b16 %v4240, %v4239
      %v4261 = vpack.c.b16 %v4242, %v4241
      %v4262 = vpack.c.b16 %v4244, %v4243
      %v4263 = vpack.c.b16 %v4246, %v4245
      %v4264 = vpack.c.b16 %v4248, %v4247
      %v4265 = vpack.c.b16 %v4250, %v4249
      %v4266 = vpack.c.b16 %v4252, %v4251
      %v4267 = vpack.c.b16 %v4254, %v4253
      %v4268 = vpack.c.b16 %v4256, %v4255
      %v4282 = vsel %vm592, %v4171, 0
      %v4285 = vsel %vm592, %v4175, 0
      %v4288 = vsel %vm592, %v4179, 0
      %v4291 = vsel %vm592, %v4183, 0
      %v4294 = vsel %vm592, %v4187, 0
      %v4297 = vsel %vm592, %v4191, 0
      %v4300 = vsel %vm592, %v4195, 0
      %v4303 = vsel %vm592, %v4199, 0
      %v4306 = vsel %vm592, %v4198, 0
      %4308 = vmatpush.bf16.msra.mxu0 %v4264
      %4309 = vmatpush.bf16.msra.mxu0 %v4263
      %4310 = vmatpush.bf16.msra.mxu0 %v4262
      %4311 = vmatpush.bf16.msra.mxu0 %v4261
      %4312 = vmatpush.bf16.msra.mxu0 %v4260
      %4313 = vmatpush.bf16.msra.mxu0 %v4259
      %4314 = vmatpush.bf16.msra.mxu0 %v4258
      %4315 = vmatpush.bf16.msra.mxu0 %v4257
      %4316 = vmatmul.bf16.gmra.mxu0 %v4168
      %v4317 = vpop.f32.mrf.mxu0
      %v4318 = vadd.f32 0.0, %v4317
      %v4319 = vpop.f32.mrf.mxu0
      %v4320 = vadd.f32 0.0, %v4319
      %4321 = vmatmul.bf16.gmra.mxu0 %v4173
      %v4322 = vpop.f32.mrf.mxu0
      %v4323 = vadd.f32 0.0, %v4322
      %v4324 = vpop.f32.mrf.mxu0
      %v4325 = vadd.f32 0.0, %v4324
      %4326 = vmatmul.bf16.gmra.mxu0 %v4177
      %v4327 = vpop.f32.mrf.mxu0
      %v4328 = vadd.f32 0.0, %v4327
      %v4329 = vpop.f32.mrf.mxu0
      %v4330 = vadd.f32 0.0, %v4329
      %4331 = vmatmul.bf16.gmra.mxu0 %v4181
      %v4332 = vpop.f32.mrf.mxu0
      %v4333 = vadd.f32 0.0, %v4332
      %v4334 = vpop.f32.mrf.mxu0
      %v4335 = vadd.f32 0.0, %v4334
      %4336 = vmatmul.bf16.gmra.mxu0 %v4185
      %v4337 = vpop.f32.mrf.mxu0
      %v4338 = vadd.f32 0.0, %v4337
      %v4339 = vpop.f32.mrf.mxu0
      %v4340 = vadd.f32 0.0, %v4339
      %4341 = vmatmul.bf16.gmra.mxu0 %v4189
      %v4342 = vpop.f32.mrf.mxu0
      %v4343 = vadd.f32 0.0, %v4342
      %v4344 = vpop.f32.mrf.mxu0
      %v4345 = vadd.f32 0.0, %v4344
      %4346 = vmatmul.bf16.gmra.mxu0 %v4193
      %v4347 = vpop.f32.mrf.mxu0
      %v4348 = vadd.f32 0.0, %v4347
      %v4349 = vpop.f32.mrf.mxu0
      %v4350 = vadd.f32 0.0, %v4349
      %4351 = vmatmul.bf16.gmra.mxu0 %v4197
      %v4352 = vpop.f32.mrf.mxu0
      %v4353 = vadd.f32 0.0, %v4352
      %v4354 = vpop.f32.mrf.mxu0
      %v4355 = vadd.f32 0.0, %v4354
      %4356 = vmatmul.bf16.gmra.mxu0 %v4196
      %v4357 = vpop.f32.mrf.mxu0
      %v4358 = vadd.f32 0.0, %v4357
      %v4359 = vpop.f32.mrf.mxu0
      %4360 = vdwg.mxu0
      %4361 = vmatpush.bf16.msra.mxu0 0
      %4362 = vmatpush.bf16.msra.mxu0 0
      %4363 = vmatpush.bf16.msra.mxu0 0
      %4364 = vmatpush.bf16.msra.mxu0 0
      %4365 = vmatpush.bf16.msra.mxu0 %v4268
      %4366 = vmatpush.bf16.msra.mxu0 %v4267
      %4367 = vmatpush.bf16.msra.mxu0 %v4266
      %4368 = vmatpush.bf16.msra.mxu0 %v4265
      %4369 = vmatmul.bf16.gmra.mxu0 %v4282
      %v4370 = vpop.f32.mrf.mxu0
      %v4371 = vadd.f32 %v4318, %v4370
      %v4372 = vpop.f32.mrf.mxu0
      %v4373 = vadd.f32 %v4320, %v4372
      %4374 = vmatmul.bf16.gmra.mxu0 %v4285
      %v4375 = vpop.f32.mrf.mxu0
      %v4376 = vadd.f32 %v4323, %v4375
      %v4377 = vpop.f32.mrf.mxu0
      %v4378 = vadd.f32 %v4325, %v4377
      %4379 = vmatmul.bf16.gmra.mxu0 %v4288
      %v4380 = vpop.f32.mrf.mxu0
      %v4381 = vadd.f32 %v4328, %v4380
      %v4382 = vpop.f32.mrf.mxu0
      %v4383 = vadd.f32 %v4330, %v4382
      %4384 = vmatmul.bf16.gmra.mxu0 %v4291
      %v4385 = vpop.f32.mrf.mxu0
      %v4386 = vadd.f32 %v4333, %v4385
      %v4387 = vpop.f32.mrf.mxu0
      %v4388 = vadd.f32 %v4335, %v4387
      %4389 = vmatmul.bf16.gmra.mxu0 %v4294
      %v4390 = vpop.f32.mrf.mxu0
      %v4391 = vadd.f32 %v4338, %v4390
      %v4392 = vpop.f32.mrf.mxu0
      %v4393 = vadd.f32 %v4340, %v4392
      %4394 = vmatmul.bf16.gmra.mxu0 %v4297
      %v4395 = vpop.f32.mrf.mxu0
      %v4396 = vadd.f32 %v4343, %v4395
      %v4397 = vpop.f32.mrf.mxu0
      %v4398 = vadd.f32 %v4345, %v4397
      %4399 = vmatmul.bf16.gmra.mxu0 %v4300
      %v4400 = vpop.f32.mrf.mxu0
      %v4401 = vadd.f32 %v4348, %v4400
      %v4402 = vpop.f32.mrf.mxu0
      %v4403 = vadd.f32 %v4350, %v4402
      %4404 = vmatmul.bf16.gmra.mxu0 %v4303
      %v4405 = vpop.f32.mrf.mxu0
      %v4406 = vadd.f32 %v4353, %v4405
      %v4407 = vpop.f32.mrf.mxu0
      %v4408 = vadd.f32 %v4355, %v4407
      %4409 = vmatmul.bf16.gmra.mxu0 %v4306
      %v4410 = vpop.f32.mrf.mxu0
      %v4411 = vadd.f32 %v4358, %v4410
      %v4412 = vpop.f32.mrf.mxu0
      %4413 = vdwg.mxu0
      %v4414 = vadd.f32 %v4035, %v4371
      %v4415 = vadd.f32 %v4036, %v4373
      %v4416 = vadd.f32 %v4037, %v4376
      %v4417 = vadd.f32 %v4038, %v4378
      %v4418 = vadd.f32 %v4039, %v4381
      %v4419 = vadd.f32 %v4040, %v4383
      %v4420 = vadd.f32 %v4041, %v4386
      %v4421 = vadd.f32 %v4042, %v4388
      %v4422 = vadd.f32 %v4043, %v4391
      %v4423 = vadd.f32 %v4044, %v4393
      %v4424 = vadd.f32 %v4045, %v4396
      %v4425 = vadd.f32 %v4046, %v4398
      %v4426 = vadd.f32 %v4047, %v4401
      %v4427 = vadd.f32 %v4048, %v4403
      %v4428 = vadd.f32 %v4049, %v4406
      %v4429 = vadd.f32 %v4050, %v4408
      %v4430 = vadd.f32 %v4051, %v4411
      %v4431 = vld [vmem:[%s4] sm:$0x1]
      %v4433 = vperm.slane %v4431, 0
      %v4435 = vadd.f32 %v4414, %v4433
      %v4436 = vadd.f32 %v4415, %v4433
      %v4437 = vadd.f32 %v4416, %v4433
      %v4438 = vadd.f32 %v4417, %v4433
      %v4439 = vadd.f32 %v4418, %v4433
      %v4440 = vadd.f32 %v4419, %v4433
      %v4441 = vadd.f32 %v4420, %v4433
      %v4442 = vadd.f32 %v4421, %v4433
      %v4443 = vadd.f32 %v4422, %v4433
      %v4444 = vadd.f32 %v4423, %v4433
      %v4445 = vadd.f32 %v4424, %v4433
      %v4446 = vadd.f32 %v4425, %v4433
      %v4447 = vadd.f32 %v4426, %v4433
      %v4448 = vadd.f32 %v4427, %v4433
      %v4449 = vadd.f32 %v4428, %v4433
      %v4450 = vadd.f32 %v4429, %v4433
      %v4451 = vadd.f32 %v4430, %v4433
      %v4452 = vmax.f32 %v4435, 0.0
      %v4453 = vmax.f32 %v4436, 0.0
      %v4454 = vmax.f32 %v4437, 0.0
      %v4455 = vmax.f32 %v4438, 0.0
      %v4456 = vmax.f32 %v4439, 0.0
      %v4457 = vmax.f32 %v4440, 0.0
      %v4458 = vmax.f32 %v4441, 0.0
      %v4459 = vmax.f32 %v4442, 0.0
      %v4460 = vmax.f32 %v4443, 0.0
      %v4461 = vmax.f32 %v4444, 0.0
      %v4462 = vmax.f32 %v4445, 0.0
      %v4463 = vmax.f32 %v4446, 0.0
      %v4464 = vmax.f32 %v4447, 0.0
      %v4465 = vmax.f32 %v4448, 0.0
      %v4466 = vmax.f32 %v4449, 0.0
      %v4467 = vmax.f32 %v4450, 0.0
      %v4468 = vmax.f32 %v4451, 0.0
      %4469 = vst [vmem:[#allocation4] sm:$0xff] %v4452
      %4470 = vst [vmem:[#allocation4 + $0x8] sm:$0xff] %v4453
      %4471 = vst [vmem:[#allocation4 + $0x10] sm:$0xff] %v4454
      %4472 = vst [vmem:[#allocation4 + $0x18] sm:$0xff] %v4455
      %4473 = vst [vmem:[#allocation4 + $0x20] sm:$0xff] %v4456
      %4474 = vst [vmem:[#allocation4 + $0x28] sm:$0xff] %v4457
      %4475 = vst [vmem:[#allocation4 + $0x30] sm:$0xff] %v4458
      %4476 = vst [vmem:[#allocation4 + $0x38] sm:$0xff] %v4459
      %4477 = vst [vmem:[#allocation4 + $0x40] sm:$0xff] %v4460
      %4478 = vst [vmem:[#allocation4 + $0x48] sm:$0xff] %v4461
      %4479 = vst [vmem:[#allocation4 + $0x50] sm:$0xff] %v4462
      %4480 = vst [vmem:[#allocation4 + $0x58] sm:$0xff] %v4463
      %4481 = vst [vmem:[#allocation4 + $0x60] sm:$0xff] %v4464
      %4482 = vst [vmem:[#allocation4 + $0x68] sm:$0xff] %v4465
      %4483 = vst [vmem:[#allocation4 + $0x70] sm:$0xff] %v4466
      %4484 = vst [vmem:[#allocation4 + $0x78] sm:$0xff] %v4467
      %4485 = vst [vmem:[#allocation4 + $0x80] sm:$0xff] %v4468
      %v4486 = vld [vmem:[#allocation4] sm:$0xff]
      %v4487 = vld [vmem:[#allocation4 + $0x8] sm:$0xff]
      %v4488 = vld [vmem:[#allocation4 + $0x10] sm:$0xff]
      %v4489 = vld [vmem:[#allocation4 + $0x18] sm:$0xff]
      %v4490 = vld [vmem:[#allocation4 + $0x20] sm:$0xff]
      %v4491 = vld [vmem:[#allocation4 + $0x28] sm:$0xff]
      %v4492 = vld [vmem:[#allocation4 + $0x30] sm:$0xff]
      %v4493 = vld [vmem:[#allocation4 + $0x38] sm:$0xff]
      %v4494 = vld [vmem:[#allocation4 + $0x40] sm:$0xff]
      %v4495 = vld [vmem:[#allocation4 + $0x48] sm:$0xff]
      %v4496 = vld [vmem:[#allocation4 + $0x50] sm:$0xff]
      %v4497 = vld [vmem:[#allocation4 + $0x1] sm:$0xff]
      %v4498 = vld [vmem:[#allocation4 + $0x9] sm:$0xff]
      %v4499 = vld [vmem:[#allocation4 + $0x11] sm:$0xff]
      %v4500 = vld [vmem:[#allocation4 + $0x19] sm:$0xff]
      %v4501 = vld [vmem:[#allocation4 + $0x21] sm:$0xff]
      %v4502 = vld [vmem:[#allocation4 + $0x29] sm:$0xff]
      %v4503 = vld [vmem:[#allocation4 + $0x31] sm:$0xff]
      %v4504 = vld [vmem:[#allocation4 + $0x39] sm:$0xff]
      %v4505 = vld [vmem:[#allocation4 + $0x41] sm:$0xff]
      %v4506 = vld [vmem:[#allocation4 + $0x49] sm:$0xff]
      %v4507 = vld [vmem:[#allocation4 + $0x51] sm:$0xff]
      %v4508 = vmax.f32 %v4486, %v4497
      %v4509 = vmax.f32 %v4487, %v4498
      %v4510 = vmax.f32 %v4488, %v4499
      %v4511 = vmax.f32 %v4489, %v4500
      %v4512 = vmax.f32 %v4490, %v4501
      %v4513 = vmax.f32 %v4491, %v4502
      %v4514 = vmax.f32 %v4492, %v4503
      %v4515 = vmax.f32 %v4493, %v4504
      %v4516 = vmax.f32 %v4494, %v4505
      %v4517 = vmax.f32 %v4495, %v4506
      %v4518 = vmax.f32 %v4496, %v4507
      %v4519 = vld [vmem:[#allocation4 + $0x6] sm:$0xff]
      %v4520 = vld [vmem:[#allocation4 + $0xe] sm:$0xff]
      %v4521 = vld [vmem:[#allocation4 + $0x16] sm:$0xff]
      %v4522 = vld [vmem:[#allocation4 + $0x1e] sm:$0xff]
      %v4523 = vld [vmem:[#allocation4 + $0x26] sm:$0xff]
      %v4524 = vld [vmem:[#allocation4 + $0x2e] sm:$0xff]
      %v4525 = vld [vmem:[#allocation4 + $0x36] sm:$0xff]
      %v4526 = vld [vmem:[#allocation4 + $0x3e] sm:$0xff]
      %v4527 = vld [vmem:[#allocation4 + $0x46] sm:$0xff]
      %v4528 = vld [vmem:[#allocation4 + $0x4e] sm:$0xff]
      %v4529 = vld [vmem:[#allocation4 + $0x56] sm:$0xff]
      %v4530 = vmax.f32 %v4508, %v4519
      %v4531 = vmax.f32 %v4509, %v4520
      %v4532 = vmax.f32 %v4510, %v4521
      %v4533 = vmax.f32 %v4511, %v4522
      %v4534 = vmax.f32 %v4512, %v4523
      %v4535 = vmax.f32 %v4513, %v4524
      %v4536 = vmax.f32 %v4514, %v4525
      %v4537 = vmax.f32 %v4515, %v4526
      %v4538 = vmax.f32 %v4516, %v4527
      %v4539 = vmax.f32 %v4517, %v4528
      %v4540 = vmax.f32 %v4518, %v4529
      %v4541 = vld [vmem:[#allocation4 + $0x7] sm:$0xff]
      %v4542 = vld [vmem:[#allocation4 + $0xf] sm:$0xff]
      %v4543 = vld [vmem:[#allocation4 + $0x17] sm:$0xff]
      %v4544 = vld [vmem:[#allocation4 + $0x1f] sm:$0xff]
      %v4545 = vld [vmem:[#allocation4 + $0x27] sm:$0xff]
      %v4546 = vld [vmem:[#allocation4 + $0x2f] sm:$0xff]
      %v4547 = vld [vmem:[#allocation4 + $0x37] sm:$0xff]
      %v4548 = vld [vmem:[#allocation4 + $0x3f] sm:$0xff]
      %v4549 = vld [vmem:[#allocation4 + $0x47] sm:$0xff]
      %v4550 = vld [vmem:[#allocation4 + $0x4f] sm:$0xff]
      %v4551 = vld [vmem:[#allocation4 + $0x57] sm:$0xff]
      %v4552 = vmax.f32 %v4530, %v4541
      %v4553 = vmax.f32 %v4531, %v4542
      %v4554 = vmax.f32 %v4532, %v4543
      %v4555 = vmax.f32 %v4533, %v4544
      %v4556 = vmax.f32 %v4534, %v4545
      %v4557 = vmax.f32 %v4535, %v4546
      %v4558 = vmax.f32 %v4536, %v4547
      %v4559 = vmax.f32 %v4537, %v4548
      %v4560 = vmax.f32 %v4538, %v4549
      %v4561 = vmax.f32 %v4539, %v4550
      %v4562 = vmax.f32 %v4540, %v4551
      %v4563 = vld [vmem:[#allocation4 + $0x24] sm:$0xff]
      %v4564 = vld [vmem:[#allocation4 + $0x2c] sm:$0xff]
      %v4565 = vld [vmem:[#allocation4 + $0x34] sm:$0xff]
      %v4566 = vld [vmem:[#allocation4 + $0x3c] sm:$0xff]
      %v4567 = vld [vmem:[#allocation4 + $0x44] sm:$0xff]
      %v4568 = vld [vmem:[#allocation4 + $0x4c] sm:$0xff]
      %v4569 = vld [vmem:[#allocation4 + $0x54] sm:$0xff]
      %v4570 = vld [vmem:[#allocation4 + $0x5c] sm:$0xff]
      %v4571 = vld [vmem:[#allocation4 + $0x64] sm:$0xff]
      %v4572 = vld [vmem:[#allocation4 + $0x6c] sm:$0xff]
      %v4573 = vld [vmem:[#allocation4 + $0x74] sm:$0xff]
      %v4574 = vmax.f32 %v4552, %v4563
      %v4575 = vmax.f32 %v4553, %v4564
      %v4576 = vmax.f32 %v4554, %v4565
      %v4577 = vmax.f32 %v4555, %v4566
      %v4578 = vmax.f32 %v4556, %v4567
      %v4579 = vmax.f32 %v4557, %v4568
      %v4580 = vmax.f32 %v4558, %v4569
      %v4581 = vmax.f32 %v4559, %v4570
      %v4582 = vmax.f32 %v4560, %v4571
      %v4583 = vmax.f32 %v4561, %v4572
      %v4584 = vmax.f32 %v4562, %v4573
      %v4585 = vld [vmem:[#allocation4 + $0x25] sm:$0xff]
      %v4586 = vld [vmem:[#allocation4 + $0x2d] sm:$0xff]
      %v4587 = vld [vmem:[#allocation4 + $0x35] sm:$0xff]
      %v4588 = vld [vmem:[#allocation4 + $0x3d] sm:$0xff]
      %v4589 = vld [vmem:[#allocation4 + $0x45] sm:$0xff]
      %v4590 = vld [vmem:[#allocation4 + $0x4d] sm:$0xff]
      %v4591 = vld [vmem:[#allocation4 + $0x55] sm:$0xff]
      %v4592 = vld [vmem:[#allocation4 + $0x5d] sm:$0xff]
      %v4593 = vld [vmem:[#allocation4 + $0x65] sm:$0xff]
      %v4594 = vld [vmem:[#allocation4 + $0x6d] sm:$0xff]
      %v4595 = vld [vmem:[#allocation4 + $0x75] sm:$0xff]
      %v4596 = vmax.f32 %v4574, %v4585
      %v4597 = vmax.f32 %v4575, %v4586
      %v4598 = vmax.f32 %v4576, %v4587
      %v4599 = vmax.f32 %v4577, %v4588
      %v4600 = vmax.f32 %v4578, %v4589
      %v4601 = vmax.f32 %v4579, %v4590
      %v4602 = vmax.f32 %v4580, %v4591
      %v4603 = vmax.f32 %v4581, %v4592
      %v4604 = vmax.f32 %v4582, %v4593
      %v4605 = vmax.f32 %v4583, %v4594
      %v4606 = vmax.f32 %v4584, %v4595
      %v4607 = vld [vmem:[#allocation4 + $0x2a] sm:$0xff]
      %v4608 = vld [vmem:[#allocation4 + $0x32] sm:$0xff]
      %v4609 = vld [vmem:[#allocation4 + $0x3a] sm:$0xff]
      %v4610 = vld [vmem:[#allocation4 + $0x42] sm:$0xff]
      %v4611 = vld [vmem:[#allocation4 + $0x4a] sm:$0xff]
      %v4612 = vld [vmem:[#allocation4 + $0x52] sm:$0xff]
      %v4613 = vld [vmem:[#allocation4 + $0x5a] sm:$0xff]
      %v4614 = vld [vmem:[#allocation4 + $0x62] sm:$0xff]
      %v4615 = vld [vmem:[#allocation4 + $0x6a] sm:$0xff]
      %v4616 = vld [vmem:[#allocation4 + $0x72] sm:$0xff]
      %v4617 = vld [vmem:[#allocation4 + $0x7a] sm:$0xff]
      %v4618 = vmax.f32 %v4596, %v4607
      %v4619 = vmax.f32 %v4597, %v4608
      %v4620 = vmax.f32 %v4598, %v4609
      %v4621 = vmax.f32 %v4599, %v4610
      %v4622 = vmax.f32 %v4600, %v4611
      %v4623 = vmax.f32 %v4601, %v4612
      %v4624 = vmax.f32 %v4602, %v4613
      %v4625 = vmax.f32 %v4603, %v4614
      %v4626 = vmax.f32 %v4604, %v4615
      %v4627 = vmax.f32 %v4605, %v4616
      %v4628 = vmax.f32 %v4606, %v4617
      %v4629 = vld [vmem:[#allocation4 + $0x2b] sm:$0xff]
      %v4630 = vld [vmem:[#allocation4 + $0x33] sm:$0xff]
      %v4631 = vld [vmem:[#allocation4 + $0x3b] sm:$0xff]
      %v4632 = vld [vmem:[#allocation4 + $0x43] sm:$0xff]
      %v4633 = vld [vmem:[#allocation4 + $0x4b] sm:$0xff]
      %v4634 = vld [vmem:[#allocation4 + $0x53] sm:$0xff]
      %v4635 = vld [vmem:[#allocation4 + $0x5b] sm:$0xff]
      %v4636 = vld [vmem:[#allocation4 + $0x63] sm:$0xff]
      %v4637 = vld [vmem:[#allocation4 + $0x6b] sm:$0xff]
      %v4638 = vld [vmem:[#allocation4 + $0x73] sm:$0xff]
      %v4639 = vld [vmem:[#allocation4 + $0x7b] sm:$0xff]
      %v4640 = vmax.f32 %v4618, %v4629
      %v4641 = vmax.f32 %v4619, %v4630
      %v4642 = vmax.f32 %v4620, %v4631
      %v4643 = vmax.f32 %v4621, %v4632
      %v4644 = vmax.f32 %v4622, %v4633
      %v4645 = vmax.f32 %v4623, %v4634
      %v4646 = vmax.f32 %v4624, %v4635
      %v4647 = vmax.f32 %v4625, %v4636
      %v4648 = vmax.f32 %v4626, %v4637
      %v4649 = vmax.f32 %v4627, %v4638
      %v4650 = vmax.f32 %v4628, %v4639
      %v4651 = vlaneseq
      %v4652 = vand.u32 %v4651, 127
      %vm4653 = vcmp.eq.s32.totalorder %v4652, 0
      %v4654 = vsel %vm4653, 1, 0
      %v4655 = vcvt.s32.f32 %v4654
      %v4656 = vadd.f32 %v4655, 0.0
      %vm4657 = vcmp.eq.s32.totalorder %v4652, 2
      %v4658 = vsel %vm4657, 1, 0
      %v4659 = vcvt.s32.f32 %v4658
      %v4660 = vadd.f32 %v4656, %v4659
      %vm4661 = vcmp.eq.s32.totalorder %v4652, 12
      %v4662 = vsel %vm4661, 1, 0
      %v4663 = vcvt.s32.f32 %v4662
      %v4664 = vadd.f32 %v4660, %v4663
      %vm4665 = vcmp.eq.s32.totalorder %v4652, 14
      %v4666 = vsel %vm4665, 1, 0
      %v4667 = vcvt.s32.f32 %v4666
      %v4668 = vadd.f32 %v4664, %v4667
      %vm4669 = vcmp.eq.s32.totalorder %v4652, 72
      %v4670 = vsel %vm4669, 1, 0
      %v4671 = vcvt.s32.f32 %v4670
      %v4672 = vadd.f32 %v4668, %v4671
      %vm4673 = vcmp.eq.s32.totalorder %v4652, 74
      %v4674 = vsel %vm4673, 1, 0
      %v4675 = vcvt.s32.f32 %v4674
      %v4676 = vadd.f32 %v4672, %v4675
      %vm4677 = vcmp.eq.s32.totalorder %v4652, 84
      %v4678 = vsel %vm4677, 1, 0
      %v4679 = vcvt.s32.f32 %v4678
      %v4680 = vadd.f32 %v4676, %v4679
      %vm4681 = vcmp.eq.s32.totalorder %v4652, 86
      %v4682 = vsel %vm4681, 1, 0
      %v4683 = vcvt.s32.f32 %v4682
      %v4684 = vadd.f32 %v4680, %v4683
      %v4685 = vmul.f32 %v4684, 0.125
      %vm4686 = vcmask 719872
      %v4688 = vsel %vm4686, %v4685, 0
      %4690 = vmatpush.msra.mxu0 0.0
      %4691 = vmatpush.msra.mxu0 0.0
      %4692 = vmatpush.msra.mxu0 0.0
      %4693 = vmatpush.msra.mxu0 0.0
      %4694 = vmatpush.msra.mxu0 0.0
      %4695 = vmatpush.msra.mxu0 %v4650
      %4696 = vmatpush.msra.mxu0 %v4649
      %4697 = vmatpush.msra.mxu0 %v4648
      %4698 = vmatpush.msra.mxu0 %v4647
      %4699 = vmatpush.msra.mxu0 %v4646
      %4700 = vmatpush.msra.mxu0 %v4645
      %4701 = vmatpush.msra.mxu0 %v4644
      %4702 = vmatpush.msra.mxu0 %v4643
      %4703 = vmatpush.msra.mxu0 %v4642
      %4704 = vmatpush.msra.mxu0 %v4641
      %4705 = vmatpush.msra.mxu0 %v4640
      %4706 = vmatmul.f32.gmra.mxu0 %v4688
      %v4707 = vpop.f32.mrf.mxu0
      %v4708 = vadd.f32 0.0, %v4707
      %4709 = vdwg.mxu0
      %v4710 = vpack.c.bf16 %v4708, %v4708
      %v4711 = vld [vmem:[%s5] sm:$0xf]
      %v4712 = vld [vmem:[%s5 + $0x4] sm:$0xf]
      %v4713 = vld [vmem:[%s5 + $0x8] sm:$0xf]
      %v4714 = vld [vmem:[%s5 + $0xc] sm:$0xf]
      %v4715 = vld [vmem:[%s5 + $0x10] sm:$0xf]
      %v4716 = vld [vmem:[%s5 + $0x14] sm:$0xf]
      %v4717 = vld [vmem:[%s5 + $0x18] sm:$0xf]
      %v4718 = vld [vmem:[%s5 + $0x1c] sm:$0xf]
      %v4719 = vld [vmem:[%s5 + $0x20] sm:$0xf]
      %v4720 = vld [vmem:[%s5 + $0x24] sm:$0xf]
      %v4721 = vld [vmem:[%s5 + $0x28] sm:$0xf]
      %v4722 = vld [vmem:[%s5 + $0x2c] sm:$0xf]
      %v4723 = vld [vmem:[%s5 + $0x30] sm:$0xf]
      %v4724 = vld [vmem:[%s5 + $0x34] sm:$0xf]
      %v4725 = vld [vmem:[%s5 + $0x38] sm:$0xf]
      %v4726 = vld [vmem:[%s5 + $0x3c] sm:$0xf]
      %v4727 = vld [vmem:[%s6] sm:$0x1]
      %v4744 = vunpack.c.l.b16 %v4711
      %v4745 = vunpack.c.l.b16 %v4712
      %v4746 = vunpack.c.l.b16 %v4713
      %v4747 = vunpack.c.l.b16 %v4714
      %v4748 = vunpack.c.l.b16 %v4715
      %v4749 = vunpack.c.l.b16 %v4716
      %v4750 = vunpack.c.l.b16 %v4717
      %v4751 = vunpack.c.l.b16 %v4718
      %v4752 = vunpack.c.l.b16 %v4719
      %v4753 = vunpack.c.l.b16 %v4720
      %v4754 = vunpack.c.l.b16 %v4721
      %v4755 = vunpack.c.l.b16 %v4722
      %v4756 = vunpack.c.l.b16 %v4723
      %v4757 = vunpack.c.l.b16 %v4724
      %v4758 = vunpack.c.l.b16 %v4725
      %v4759 = vunpack.c.l.b16 %v4726
      %v4760 = vpack.c.b16 %v4745, %v4744
      %v4761 = vpack.c.b16 %v4747, %v4746
      %v4762 = vpack.c.b16 %v4749, %v4748
      %v4763 = vpack.c.b16 %v4751, %v4750
      %v4764 = vpack.c.b16 %v4753, %v4752
      %v4765 = vpack.c.b16 %v4755, %v4754
      %v4766 = vpack.c.b16 %v4757, %v4756
      %v4767 = vpack.c.b16 %v4759, %v4758
      %4776 = vmatpush.bf16.msra.mxu0 %v4767
      %4777 = vmatpush.bf16.msra.mxu0 %v4766
      %4778 = vmatpush.bf16.msra.mxu0 %v4765
      %4779 = vmatpush.bf16.msra.mxu0 %v4764
      %4780 = vmatpush.bf16.msra.mxu0 %v4763
      %4781 = vmatpush.bf16.msra.mxu0 %v4762
      %4782 = vmatpush.bf16.msra.mxu0 %v4761
      %4783 = vmatpush.bf16.msra.mxu0 %v4760
      %4784 = vmatmul.bf16.gmra.mxu0 %v4710
      %v4785 = vpop.f32.mrf.mxu0
      %v4786 = vadd.f32 %v4727, %v4785
      %v4787 = vpop.f32.mrf.mxu0
      %4788 = vdwg.mxu0
      %v4789 = vpack.c.bf16 %v4786, %v4786
      %v4790 = vld [vmem:[%s7] sm:$0xf]
      %v4791 = vld [vmem:[%s7 + $0x4] sm:$0xf]
      %v4792 = vld [vmem:[%s7 + $0x8] sm:$0xf]
      %v4793 = vld [vmem:[%s7 + $0xc] sm:$0xf]
      %v4794 = vld [vmem:[%s7 + $0x10] sm:$0xf]
      %v4795 = vld [vmem:[%s7 + $0x14] sm:$0xf]
      %v4796 = vld [vmem:[%s7 + $0x18] sm:$0xf]
      %v4797 = vld [vmem:[%s7 + $0x1c] sm:$0xf]
      %v4798 = vld [vmem:[%s7 + $0x20] sm:$0xf]
      %v4799 = vld [vmem:[%s7 + $0x24] sm:$0xf]
      %v4800 = vld [vmem:[%s7 + $0x28] sm:$0xf]
      %v4801 = vld [vmem:[%s7 + $0x2c] sm:$0xf]
      %v4802 = vld [vmem:[%s7 + $0x30] sm:$0xf]
      %v4803 = vld [vmem:[%s7 + $0x34] sm:$0xf]
      %v4804 = vld [vmem:[%s7 + $0x38] sm:$0xf]
      %v4805 = vld [vmem:[%s7 + $0x3c] sm:$0xf]
      %v4806 = vld [vmem:[%s8] sm:$0x1]
      %v4823 = vunpack.c.l.b16 %v4790
      %v4824 = vunpack.c.l.b16 %v4791
      %v4825 = vunpack.c.l.b16 %v4792
      %v4826 = vunpack.c.l.b16 %v4793
      %v4827 = vunpack.c.l.b16 %v4794
      %v4828 = vunpack.c.l.b16 %v4795
      %v4829 = vunpack.c.l.b16 %v4796
      %v4830 = vunpack.c.l.b16 %v4797
      %v4831 = vunpack.c.l.b16 %v4798
      %v4832 = vunpack.c.l.b16 %v4799
      %v4833 = vunpack.c.l.b16 %v4800
      %v4834 = vunpack.c.l.b16 %v4801
      %v4835 = vunpack.c.l.b16 %v4802
      %v4836 = vunpack.c.l.b16 %v4803
      %v4837 = vunpack.c.l.b16 %v4804
      %v4838 = vunpack.c.l.b16 %v4805
      %v4839 = vpack.c.b16 %v4824, %v4823
      %v4840 = vpack.c.b16 %v4826, %v4825
      %v4841 = vpack.c.b16 %v4828, %v4827
      %v4842 = vpack.c.b16 %v4830, %v4829
      %v4843 = vpack.c.b16 %v4832, %v4831
      %v4844 = vpack.c.b16 %v4834, %v4833
      %v4845 = vpack.c.b16 %v4836, %v4835
      %v4846 = vpack.c.b16 %v4838, %v4837
      %4855 = vmatpush.bf16.msra.mxu0 %v4846
      %4856 = vmatpush.bf16.msra.mxu0 %v4845
      %4857 = vmatpush.bf16.msra.mxu0 %v4844
      %4858 = vmatpush.bf16.msra.mxu0 %v4843
      %4859 = vmatpush.bf16.msra.mxu0 %v4842
      %4860 = vmatpush.bf16.msra.mxu0 %v4841
      %4861 = vmatpush.bf16.msra.mxu0 %v4840
      %4862 = vmatpush.bf16.msra.mxu0 %v4839
      %4863 = vmatmul.bf16.gmra.mxu0 %v4789
      %v4864 = vpop.f32.mrf.mxu0
      %v4865 = vadd.f32 %v4806, %v4864
      %v4866 = vpop.f32.mrf.mxu0
      %4867 = vdwg.mxu0
      %v4868 = vxor.u32 %v4865, 2147483648
      %v4869 = vmul.f32 %v4868, 1.442695
      %v4870 = vpow.pop %v4869
      %v4871 = vadd.f32 %v4870, 1.0
      %v4872 = vrcp.pop %v4871
      %v4873 = vmul.f32 %v4871, %v4872
      %v4874 = vsub.f32 1.0, %v4873
      %v4875 = vmul.f32 %v4872, %v4874
      %v4876 = vadd.f32 %v4872, %v4875
      %vm4877 = vweird.f32 %v4871
      %vm4878 = vweird.f32 %v4872
      %vm4879 = vmor %vm4877, %vm4878
      %v4880 = vsel %vm4879, %v4872, %v4876
      %v4881 = vand.u32 2147483647, %v4871
      %vm4882 = vcmp.eq.f32.partialorder %v4881, 8.507059e+37
      %v4883 = vand.u32 %v4871, 2147483648
      %v4884 = vor.u32 1.1754944e-38, %v4883
      %v4885 = vsel %vm4882, %v4884, %v4880
      %v4886 = vmul.f32 1.0, %v4885
      %4887 = vst [vmem:[%s330] sm:$0x1] %v4886
      %p4888 = scmp.lt.s32.totalorder %s20, 1
      %s4889 = scalar_select %p4888, %s20, 1
      %s4890 = scalar_lea.vmem %s9, %s4889
      // Predicated region
      $region57: #{simple_cnn_forward.1} parent=55 // pred_check
        %p4891 = pneg %p232
      $region58: #{simple_cnn_forward.1} parent=55 // pred_check_branch
        %4893 = sbr.rel (%p4891) target = $region60
      $region59: #{simple_cnn_forward.1} parent=55 // pred_region
        _
      $region60: #{simple_cnn_forward.1} parent=55 // pred_fallthru
        _
    $region56: #{simple_cnn_forward.1} parent=5 // pred_fallthru
      _
    %p4894 = scmp.le.s32.totalorder 2, %s15
    // Predicated region
    $region61: #{simple_cnn_forward.1} parent=5 // pred_check
      %p4895 = pneg %p4894
    $region62: #{simple_cnn_forward.1} parent=5 // pred_check_branch
      %4897 = sbr.rel (%p4895) target = $region64
    $region63: #{simple_cnn_forward.1} parent=5 // pred_region
      %s4898 = ssub.s32 %s15, 2
      // Predicated region
      $region65: #{simple_cnn_forward.1} parent=63 // pred_check
        %p4899 = pneg %p238
      $region66: #{simple_cnn_forward.1} parent=63 // pred_check_branch
        %4901 = sbr.rel (%p4899) target = $region68
      $region67: #{simple_cnn_forward.1} parent=63 // pred_region
        %p4902 = scmp.lt.s32.totalorder %s21, 1
        %s4903 = scalar_select %p4902, %s21, 1
        %s4904 = scalar_lea.vmem %s9, %s4903
      $region68: #{simple_cnn_forward.1} parent=63 // pred_fallthru
        _
    $region64: #{simple_cnn_forward.1} parent=5 // pred_fallthru
      _
  $region6: #{simple_cnn_forward.1} parent=0 // loop_footer
    %s19 = sadd.s32 1, %s15
  $region7: #{simple_cnn_forward.1} parent=0 // loop_footer_branch
    %14 = sbr.rel target = $region3
  $region8: #{simple_cnn_forward.1} parent=0 // loop_exit
    _

</llo_original>
